<compile_context>
chip_gen: v7x
topology: tpu7x:2x2x1
jax: 0.10.0
libtpu: 0.0.40
codegen_flags: <defaults>
</compile_context>

<pallas_src>
import functools
import math

import jax
import jax.numpy as jnp
from jax.experimental import pallas as pl
from jax.experimental.pallas import tpu as pltpu


# ----------------------------------------------------------------- helpers
def _gelu(x):
    # tanh-approximate GELU; used identically in kernel and reference.
    c = math.sqrt(2.0 / math.pi)
    return 0.5 * x * (1.0 + jnp.tanh(c * (x + 0.044715 * x * x * x)))


def _ln_f32(x, g, b, eps):
    mu = jnp.mean(x, axis=-1, keepdims=True)
    xc = x - mu
    var = jnp.mean(xc * xc, axis=-1, keepdims=True)
    return xc * jax.lax.rsqrt(var + eps) * g + b


# --------------------------------------------------- fused encoder layer
def _encoder_layer_kernel(h_ref, bias_ref,
                          wqkv_ref, bqkv_ref, wo_ref, bo_ref,
                          ln1g_ref, ln1b_ref,
                          wi_ref, bi_ref, wo2_ref, bo2_ref,
                          ln2g_ref, ln2b_ref,
                          o_ref, *, num_heads, head_dim, eps):
    h = h_ref[0].astype(jnp.float32)                      # (S, H)
    bias = bias_ref[0]                                    # (1, S) additive key mask
    hidden = num_heads * head_dim
    scale = 1.0 / math.sqrt(head_dim)

    # Fused QKV projection: single-K matmul, result written straight to vregs.
    qkv = jnp.dot(h, wqkv_ref[...],
                  preferred_element_type=jnp.float32) + bqkv_ref[...]

    # Per-head attention with the output projection folded into the head loop:
    #   attn += softmax(q k^T * scale + bias) v @ wo[h*D:(h+1)*D, :]
    attn = jnp.zeros((h.shape[0], hidden), jnp.float32)
    for hd in range(num_heads):                           # small, static, unrolled
        lo = hd * head_dim
        q = qkv[:, lo:lo + head_dim]                      # (S, D)
        k = qkv[:, hidden + lo:hidden + lo + head_dim]
        v = qkv[:, 2 * hidden + lo:2 * hidden + lo + head_dim]
        s = jax.lax.dot_general(q, k, (((1,), (1,)), ((), ())),
                                preferred_element_type=jnp.float32)
        s = s * scale + bias
        m = jnp.max(s, axis=-1, keepdims=True)
        p = jnp.exp(s - m)
        l = jnp.sum(p, axis=-1, keepdims=True)
        ctx = jnp.dot(p, v, preferred_element_type=jnp.float32)
        # normalize after P.V: (S, D) divide via EUP reciprocal, not (S, S).
        ctx = ctx * pl.reciprocal(l, approx=True)
        attn += jnp.dot(ctx, wo_ref[lo:lo + head_dim, :],
                        preferred_element_type=jnp.float32)
    attn = attn + bo_ref[...]

    # Residual + LayerNorm 1 (fused epilogue).
    h1 = _ln_f32(attn + h, ln1g_ref[...], ln1b_ref[...], eps)

    # FFN: gelu(h1 @ wi + bi) @ wo2 + bo2, then residual + LayerNorm 2.
    ff = _gelu(jnp.dot(h1, wi_ref[...],
                       preferred_element_type=jnp.float32) + bi_ref[...])
    ff = jnp.dot(ff, wo2_ref[...],
                 preferred_element_type=jnp.float32) + bo2_ref[...]
    h2 = _ln_f32(ff + h1, ln2g_ref[...], ln2b_ref[...], eps)

    o_ref[0] = h2.astype(o_ref.dtype)


def encoder_layer(h, mask_bias, L, *, num_heads, eps=1e-12):
    """One fused pallas_call per BERT layer. h: (B, S, H); mask_bias: (B, 1, S)."""
    B, S, H = h.shape
    FF = L["wi"].shape[1]
    head_dim = H // num_heads
    assert H % num_heads == 0

    flops = B * S * (8 * H * H + 4 * S * H + 4 * H * FF)
    transc = B * S * (num_heads * S + FF)
    w_bytes = 4 * (3 * H * H + H * H + 2 * H * FF + 3 * H + 2 * H + FF + 4 * H)
    cost = pl.CostEstimate(flops=flops, transcendentals=transc,
                           bytes_accessed=4 * (2 * B * S * H + B * S) + w_bytes)

    const = lambda b: (0, 0)
    return pl.pallas_call(
        functools.partial(_encoder_layer_kernel, num_heads=num_heads,
                          head_dim=head_dim, eps=eps),
        out_shape=jax.ShapeDtypeStruct((B, S, H), h.dtype),
        grid=(B,),
        in_specs=[
            pl.BlockSpec((1, S, H), lambda b: (b, 0, 0)),     # hidden states
            pl.BlockSpec((1, 1, S), lambda b: (b, 0, 0)),     # additive mask
            pl.BlockSpec((H, 3 * H), const),                  # wqkv (resident)
            pl.BlockSpec((1, 3 * H), const),                  # bqkv
            pl.BlockSpec((H, H), const),                      # wo
            pl.BlockSpec((1, H), const),                      # bo
            pl.BlockSpec((1, H), const),                      # ln1 gamma
            pl.BlockSpec((1, H), const),                      # ln1 beta
            pl.BlockSpec((H, FF), const),                     # wi
            pl.BlockSpec((1, FF), const),                     # bi
            pl.BlockSpec((FF, H), const),                     # wo2
            pl.BlockSpec((1, H), const),                      # bo2
            pl.BlockSpec((1, H), const),                      # ln2 gamma
            pl.BlockSpec((1, H), const),                      # ln2 beta
        ],
        out_specs=pl.BlockSpec((1, S, H), lambda b: (b, 0, 0)),
        compiler_params=pltpu.CompilerParams(
            dimension_semantics=("parallel",)),
        cost_estimate=cost,
    )(h, mask_bias,
      L["wqkv"], L["bqkv"].reshape(1, -1),
      L["wo"], L["bo"].reshape(1, -1),
      L["ln1_g"].reshape(1, -1), L["ln1_b"].reshape(1, -1),
      L["wi"], L["bi"].reshape(1, -1),
      L["wo2"], L["bo2"].reshape(1, -1),
      L["ln2_g"].reshape(1, -1), L["ln2_b"].reshape(1, -1))


# -------------------------------------------- small single-step matmul (pooler)
def _dense_kernel(x_ref, w_ref, b_ref, o_ref, *, activation):
    y = jnp.dot(x_ref[...], w_ref[...],
                preferred_element_type=jnp.float32) + b_ref[...]
    if activation == "tanh":
        y = jnp.tanh(y)
    elif activation == "gelu":
        y = _gelu(y)
    o_ref[...] = y.astype(o_ref.dtype)


def dense(x, w, b, activation=None):
    """activation(x @ w + b) as a single grid-step kernel (K fits in VMEM)."""
    M, K = x.shape
    K2, N = w.shape
    assert K == K2
    return pl.pallas_call(
        functools.partial(_dense_kernel, activation=activation),
        out_shape=jax.ShapeDtypeStruct((M, N), x.dtype),
        grid=(1,),
        in_specs=[pl.BlockSpec((M, K), lambda i: (0, 0)),
                  pl.BlockSpec((K, N), lambda i: (0, 0)),
                  pl.BlockSpec((1, N), lambda i: (0, 0))],
        out_specs=pl.BlockSpec((M, N), lambda i: (0, 0)),
        compiler_params=pltpu.CompilerParams(dimension_semantics=("arbitrary",)),
    )(x, w, b.reshape(1, -1))


# ------------------------------------------------------- standalone LayerNorm
def _ln_kernel(x_ref, g_ref, b_ref, o_ref, *, eps):
    y = _ln_f32(x_ref[...].astype(jnp.float32), g_ref[...], b_ref[...], eps)
    o_ref[...] = y.astype(o_ref.dtype)


def layer_norm(x, gamma, beta, *, eps=1e-12):
    M, H = x.shape
    return pl.pallas_call(
        functools.partial(_ln_kernel, eps=eps),
        out_shape=jax.ShapeDtypeStruct((M, H), x.dtype),
        grid=(1,),                      # single step: whole (M, H) slab in VMEM
        in_specs=[pl.BlockSpec((M, H), lambda i: (0, 0)),
                  pl.BlockSpec((1, H), lambda i: (0, 0)),
                  pl.BlockSpec((1, H), lambda i: (0, 0))],
        out_specs=pl.BlockSpec((M, H), lambda i: (0, 0)),
        compiler_params=pltpu.CompilerParams(dimension_semantics=("arbitrary",)),
    )(x, gamma.reshape(1, -1), beta.reshape(1, -1))


# --------------------------------------------------------------- full forward
@functools.partial(jax.jit, static_argnames=("num_heads",))
def bert_encoder_forward(params, token_ids, *, num_heads):
    B, S = token_ids.shape
    word_emb = params["word_emb"]
    H = word_emb.shape[1]

    # gen_attention_mask: token_ids != 1 (pad id == 1), as float.
    attn_mask = (token_ids != 1).astype(jnp.float32)            # (B, S)
    mask_bias = ((1.0 - attn_mask) * -10000.0).reshape(B, 1, S)

    # Embeddings: word + position + token_type(segment_ids == 0).
    # TODO(synk): data-dependent embedding gather kept in XLA (no tile-dense
    # Pallas mapping at this size); dropout omitted (inference/eval mode).
    ids = token_ids.astype(jnp.int32)
    emb = (word_emb[ids]
           + params["pos_emb"][None, :S, :]
           + params["type_emb"][0][None, None, :])
    h = layer_norm(emb.reshape(B * S, H), params["emb_ln_g"], params["emb_ln_b"])
    h = h.reshape(B, S, H)

    # One fused pallas_call per encoder layer.
    for L in params["layers"]:
        h = encoder_layer(h, mask_bias, L, num_heads=num_heads)

    seq_out = h
    pooled = dense(seq_out[:, 0, :], params["pool_w"], params["pool_b"],
                   activation="tanh")
    return seq_out, pooled


# --------------------------------------------------------------------- params
def init_params(key, *, vocab, hidden, num_layers, num_heads, intermediate,
                max_pos):
    assert hidden % num_heads == 0
    keys = iter(jax.random.split(key, 8 + 8 * num_layers))

    def w(shape, scale=0.02):
        return jax.random.normal(next(keys), shape, jnp.float32) * scale

    params = {
        "word_emb": w((vocab, hidden)),
        "pos_emb": w((max_pos, hidden)),
        "type_emb": w((2, hidden)),
        "emb_ln_g": jnp.ones((hidden,), jnp.float32),
        "emb_ln_b": jnp.zeros((hidden,), jnp.float32),
        "pool_w": w((hidden, hidden)),
        "pool_b": jnp.zeros((hidden,), jnp.float32),
        "layers": [],
    }
    for _ in range(num_layers):
        params["layers"].append({
            "wqkv": w((hidden, 3 * hidden)),
            "bqkv": jnp.zeros((3 * hidden,), jnp.float32),
            "wo": w((hidden, hidden)),
            "bo": jnp.zeros((hidden,), jnp.float32),
            "ln1_g": jnp.ones((hidden,), jnp.float32),
            "ln1_b": jnp.zeros((hidden,), jnp.float32),
            "wi": w((hidden, intermediate)),
            "bi": jnp.zeros((intermediate,), jnp.float32),
            "wo2": w((intermediate, hidden)),
            "bo2": jnp.zeros((hidden,), jnp.float32),
            "ln2_g": jnp.ones((hidden,), jnp.float32),
            "ln2_b": jnp.zeros((hidden,), jnp.float32),
        })
    return params


# ------------------------------------------------------------- pure-JAX ref
def reference_forward(params, token_ids, *, num_heads):
    prec = jax.lax.Precision.HIGHEST
    B, S = token_ids.shape
    H = params["word_emb"].shape[1]
    hd = H // num_heads

    mask = (token_ids != 1).astype(jnp.float32)
    bias = (1.0 - mask) * -10000.0
    ids = token_ids.astype(jnp.int32)
    x = (params["word_emb"][ids] + params["pos_emb"][None, :S, :]
         + params["type_emb"][0][None, None, :])

    def ln(x, g, b, eps=1e-12):
        mu = jnp.mean(x, -1, keepdims=True)
        xc = x - mu
        var = jnp.mean(xc * xc, -1, keepdims=True)
        return xc * jax.lax.rsqrt(var + eps) * g + b

    h = ln(x, params["emb_ln_g"], params["emb_ln_b"])
    for L in params["layers"]:
        qkv = jnp.einsum("bsh,hn->bsn", h, L["wqkv"], precision=prec) + L["bqkv"]
        q, k, v = jnp.split(qkv, 3, axis=-1)

        def sh(t):
            return t.reshape(B, S, num_heads, hd).transpose(0, 2, 1, 3)

        q, k, v = sh(q), sh(k), sh(v)
        s = jnp.einsum("bhqd,bhkd->bhqk", q, k, precision=prec) / math.sqrt(hd)
        s = s + bias[:, None, None, :]
        p = jax.nn.softmax(s, axis=-1)
        ctx = jnp.einsum("bhqk,bhkd->bhqd", p, v, precision=prec)
        ctx = ctx.transpose(0, 2, 1, 3).reshape(B, S, H)
        attn = jnp.einsum("bsh,hn->bsn", ctx, L["wo"], precision=prec) + L["bo"]
        h = ln(attn + h, L["ln1_g"], L["ln1_b"])
        ff = _gelu(jnp.einsum("bsh,hn->bsn", h, L["wi"], precision=prec) + L["bi"])
        ff = jnp.einsum("bsn,nh->bsh", ff, L["wo2"], precision=prec) + L["bo2"]
        h = ln(ff + h, L["ln2_g"], L["ln2_b"])

    pooled = jnp.tanh(jnp.einsum("bh,hn->bn", h[:, 0, :], params["pool_w"],
                                 precision=prec) + params["pool_b"])
    return h, pooled


if __name__ == "__main__":
    # Small but MXU-friendly config: hidden/seq are multiples of 128 so every
    # matmul tile and output store is lane-dense.
    VOCAB, HIDDEN, LAYERS, HEADS, FFN = 512, 128, 2, 2, 512
    BATCH, SEQ = 2, 128

    key = jax.random.PRNGKey(0)
    kp, kt = jax.random.split(key)
    params = init_params(kp, vocab=VOCAB, hidden=HIDDEN, num_layers=LAYERS,
                         num_heads=HEADS, intermediate=FFN, max_pos=SEQ)
    token_ids = jax.random.randint(kt, (BATCH, SEQ), 2, VOCAB, dtype=jnp.int32)
    token_ids = token_ids.at[:, SEQ - 16:].set(1)   # trailing padding (pad id 1)

    seq_out, pooled = bert_encoder_forward(params, token_ids, num_heads=HEADS)
    seq_out = jax.block_until_ready(seq_out)
    pooled = jax.block_until_ready(pooled)

    ref_seq, ref_pool = reference_forward(params, token_ids, num_heads=HEADS)
    assert seq_out.shape == (BATCH, SEQ, HIDDEN)
    assert pooled.shape == (BATCH, HIDDEN)
    assert jnp.allclose(seq_out, ref_seq, atol=1e-3, rtol=1e-3)
    assert jnp.allclose(pooled, ref_pool, atol=1e-3, rtol=1e-3)

    print("KERNEL_OK")
</pallas_src>

<mosaic_0001>
module attributes {stable_mosaic.version = 11 : i64} {
  func.func @_ln_kernel(%arg0: i32, %arg1: memref<256x128xf32, #tpu.memory_space<vmem>>, %arg2: memref<1x128xf32, #tpu.memory_space<vmem>>, %arg3: memref<1x128xf32, #tpu.memory_space<vmem>>, %arg4: memref<256x128xf32, #tpu.memory_space<vmem>>) attributes {dimension_semantics = [#tpu.dimension_semantics<arbitrary>], iteration_bounds = array<i64: 1>, scalar_prefetch = 0 : i64, scratch_operands = 0 : i64, tpu.core_type = #tpu.core_type<tc>, window_params = [{pipeline_mode = #tpu.pipeline_mode<synchronous>, transform_indices = @transform_0, window_bounds = array<i64: 256, 128>}, {pipeline_mode = #tpu.pipeline_mode<synchronous>, transform_indices = @transform_1, window_bounds = array<i64: 1, 128>}, {pipeline_mode = #tpu.pipeline_mode<synchronous>, transform_indices = @transform_2, window_bounds = array<i64: 1, 128>}, {pipeline_mode = #tpu.pipeline_mode<synchronous>, transform_indices = @transform_3, window_bounds = array<i64: 256, 128>}]} {
    %c0 = arith.constant 0 : index
    %c0_0 = arith.constant 0 : index
    %0 = vector.load %arg1[%c0, %c0_0] : memref<256x128xf32, #tpu.memory_space<vmem>>, vector<256x128xf32>
    %c0_1 = arith.constant 0 : index
    %c0_2 = arith.constant 0 : index
    %1 = vector.load %arg2[%c0_1, %c0_2] : memref<1x128xf32, #tpu.memory_space<vmem>>, vector<1x128xf32>
    %c0_3 = arith.constant 0 : index
    %c0_4 = arith.constant 0 : index
    %2 = vector.load %arg3[%c0_3, %c0_4] : memref<1x128xf32, #tpu.memory_space<vmem>>, vector<1x128xf32>
    %cst = arith.constant dense<0.000000e+00> : vector<256xf32>
    %3 = vector.multi_reduction <add>, %0, %cst [1] : vector<256x128xf32> to vector<256xf32>
    %4 = vector.shape_cast %3 : vector<256xf32> to vector<256x1xf32>
    %cst_5 = arith.constant 1.280000e+02 : f32
    %5 = vector.broadcast %cst_5 : f32 to vector<256x1xf32>
    %6 = arith.divf %4, %5 : vector<256x1xf32>
    %7 = vector.broadcast %6 : vector<256x1xf32> to vector<256x128xf32>
    %8 = arith.subf %0, %7 : vector<256x128xf32>
    %9 = arith.mulf %8, %8 : vector<256x128xf32>
    %cst_6 = arith.constant dense<0.000000e+00> : vector<256xf32>
    %10 = vector.multi_reduction <add>, %9, %cst_6 [1] : vector<256x128xf32> to vector<256xf32>
    %11 = vector.shape_cast %10 : vector<256xf32> to vector<256x1xf32>
    %cst_7 = arith.constant 1.280000e+02 : f32
    %12 = vector.broadcast %cst_7 : f32 to vector<256x1xf32>
    %13 = arith.divf %11, %12 : vector<256x1xf32>
    %cst_8 = arith.constant 9.99999996E-13 : f32
    %14 = vector.broadcast %cst_8 : f32 to vector<256x1xf32>
    %15 = arith.addf %13, %14 : vector<256x1xf32>
    %16 = math.rsqrt %15 : vector<256x1xf32>
    %17 = vector.broadcast %16 : vector<256x1xf32> to vector<256x128xf32>
    %18 = arith.mulf %8, %17 : vector<256x128xf32>
    %19 = vector.broadcast %1 : vector<1x128xf32> to vector<256x128xf32>
    %20 = arith.mulf %18, %19 : vector<256x128xf32>
    %21 = vector.broadcast %2 : vector<1x128xf32> to vector<256x128xf32>
    %22 = arith.addf %20, %21 : vector<256x128xf32>
    %c0_9 = arith.constant 0 : index
    %c0_10 = arith.constant 0 : index
    %23 = vector.load %arg4[%c0_9, %c0_10] : memref<256x128xf32, #tpu.memory_space<vmem>>, vector<256x128xf32>
    tpu.vector_store %arg4[%c0_9, %c0_10], %22 {strides = array<i32>} : memref<256x128xf32, #tpu.memory_space<vmem>>, vector<256x128xf32>,
    return
  }
  func.func @transform_0(%arg0: i32) -> (i32, i32) {
    %c0_i32 = arith.constant 0 : i32
    %c0_i32_0 = arith.constant 0 : i32
    %c0_i32_1 = arith.constant 0 : i32
    return %c0_i32, %c0_i32_0 : i32, i32
  }
  func.func @transform_1(%arg0: i32) -> (i32, i32) {
    %c0_i32 = arith.constant 0 : i32
    %c0_i32_0 = arith.constant 0 : i32
    %c0_i32_1 = arith.constant 0 : i32
    return %c0_i32, %c0_i32_0 : i32, i32
  }
  func.func @transform_2(%arg0: i32) -> (i32, i32) {
    %c0_i32 = arith.constant 0 : i32
    %c0_i32_0 = arith.constant 0 : i32
    %c0_i32_1 = arith.constant 0 : i32
    return %c0_i32, %c0_i32_0 : i32, i32
  }
  func.func @transform_3(%arg0: i32) -> (i32, i32) {
    %c0_i32 = arith.constant 0 : i32
    %c0_i32_0 = arith.constant 0 : i32
    %c0_i32_1 = arith.constant 0 : i32
    return %c0_i32, %c0_i32_0 : i32, i32
  }
}

module attributes {stable_mosaic.version = 11 : i64} {
  func.func @_dense_kernel(%arg0: i32, %arg1: memref<2x128xf32, #tpu.memory_space<vmem>>, %arg2: memref<128x128xf32, #tpu.memory_space<vmem>>, %arg3: memref<1x128xf32, #tpu.memory_space<vmem>>, %arg4: memref<2x128xf32, #tpu.memory_space<vmem>>) attributes {dimension_semantics = [#tpu.dimension_semantics<arbitrary>], iteration_bounds = array<i64: 1>, scalar_prefetch = 0 : i64, scratch_operands = 0 : i64, tpu.core_type = #tpu.core_type<tc>, window_params = [{pipeline_mode = #tpu.pipeline_mode<synchronous>, transform_indices = @transform_0, window_bounds = array<i64: 2, 128>}, {pipeline_mode = #tpu.pipeline_mode<synchronous>, transform_indices = @transform_1, window_bounds = array<i64: 128, 128>}, {pipeline_mode = #tpu.pipeline_mode<synchronous>, transform_indices = @transform_2, window_bounds = array<i64: 1, 128>}, {pipeline_mode = #tpu.pipeline_mode<synchronous>, transform_indices = @transform_3, window_bounds = array<i64: 2, 128>}]} {
    %c0 = arith.constant 0 : index
    %c0_0 = arith.constant 0 : index
    %0 = vector.load %arg1[%c0, %c0_0] : memref<2x128xf32, #tpu.memory_space<vmem>>, vector<2x128xf32>
    %c0_1 = arith.constant 0 : index
    %c0_2 = arith.constant 0 : index
    %1 = vector.load %arg2[%c0_1, %c0_2] : memref<128x128xf32, #tpu.memory_space<vmem>>, vector<128x128xf32>
    %cst = arith.constant dense<0.000000e+00> : vector<2x128xf32>
    %2 = tpu.matmul %0, %1, %cst {dimension_numbers = #tpu.dot_dimension_numbers<[1], [0], [0], [1], [0, 0, 1, 1], [], []>} : vector<2x128xf32>, vector<128x128xf32>, vector<2x128xf32> -> vector<2x128xf32>
    %c0_3 = arith.constant 0 : index
    %c0_4 = arith.constant 0 : index
    %3 = vector.load %arg3[%c0_3, %c0_4] : memref<1x128xf32, #tpu.memory_space<vmem>>, vector<1x128xf32>
    %4 = vector.broadcast %3 : vector<1x128xf32> to vector<2x128xf32>
    %5 = arith.addf %2, %4 : vector<2x128xf32>
    %6 = math.tanh %5 : vector<2x128xf32>
    %c0_5 = arith.constant 0 : index
    %c0_6 = arith.constant 0 : index
    %7 = vector.load %arg4[%c0_5, %c0_6] : memref<2x128xf32, #tpu.memory_space<vmem>>, vector<2x128xf32>
    tpu.vector_store %arg4[%c0_5, %c0_6], %6 {strides = array<i32>} : memref<2x128xf32, #tpu.memory_space<vmem>>, vector<2x128xf32>,
    return
  }
  func.func @transform_0(%arg0: i32) -> (i32, i32) {
    %c0_i32 = arith.constant 0 : i32
    %c0_i32_0 = arith.constant 0 : i32
    %c0_i32_1 = arith.constant 0 : i32
    return %c0_i32, %c0_i32_0 : i32, i32
  }
  func.func @transform_1(%arg0: i32) -> (i32, i32) {
    %c0_i32 = arith.constant 0 : i32
    %c0_i32_0 = arith.constant 0 : i32
    %c0_i32_1 = arith.constant 0 : i32
    return %c0_i32, %c0_i32_0 : i32, i32
  }
  func.func @transform_2(%arg0: i32) -> (i32, i32) {
    %c0_i32 = arith.constant 0 : i32
    %c0_i32_0 = arith.constant 0 : i32
    %c0_i32_1 = arith.constant 0 : i32
    return %c0_i32, %c0_i32_0 : i32, i32
  }
  func.func @transform_3(%arg0: i32) -> (i32, i32) {
    %c0_i32 = arith.constant 0 : i32
    %c0_i32_0 = arith.constant 0 : i32
    %c0_i32_1 = arith.constant 0 : i32
    return %c0_i32, %c0_i32_0 : i32, i32
  }
}

module attributes {stable_mosaic.version = 11 : i64} {
  func.func @_encoder_layer_kernel(%arg0: i32, %arg1: memref<1x128x128xf32, #tpu.memory_space<vmem>>, %arg2: memref<1x1x128xf32, #tpu.memory_space<vmem>>, %arg3: memref<128x384xf32, #tpu.memory_space<vmem>>, %arg4: memref<1x384xf32, #tpu.memory_space<vmem>>, %arg5: memref<128x128xf32, #tpu.memory_space<vmem>>, %arg6: memref<1x128xf32, #tpu.memory_space<vmem>>, %arg7: memref<1x128xf32, #tpu.memory_space<vmem>>, %arg8: memref<1x128xf32, #tpu.memory_space<vmem>>, %arg9: memref<128x512xf32, #tpu.memory_space<vmem>>, %arg10: memref<1x512xf32, #tpu.memory_space<vmem>>, %arg11: memref<512x128xf32, #tpu.memory_space<vmem>>, %arg12: memref<1x128xf32, #tpu.memory_space<vmem>>, %arg13: memref<1x128xf32, #tpu.memory_space<vmem>>, %arg14: memref<1x128xf32, #tpu.memory_space<vmem>>, %arg15: memref<1x128x128xf32, #tpu.memory_space<vmem>>) attributes {dimension_semantics = [#tpu.dimension_semantics<parallel>], iteration_bounds = array<i64: 2>, scalar_prefetch = 0 : i64, scratch_operands = 0 : i64, tpu.core_type = #tpu.core_type<tc>, window_params = [{transform_indices = @transform_0, window_bounds = array<i64: 1, 128, 128>}, {transform_indices = @transform_1, window_bounds = array<i64: 1, 1, 128>}, {pipeline_mode = #tpu.pipeline_mode<synchronous>, transform_indices = @transform_2, window_bounds = array<i64: 128, 384>}, {pipeline_mode = #tpu.pipeline_mode<synchronous>, transform_indices = @transform_3, window_bounds = array<i64: 1, 384>}, {pipeline_mode = #tpu.pipeline_mode<synchronous>, transform_indices = @transform_4, window_bounds = array<i64: 128, 128>}, {pipeline_mode = #tpu.pipeline_mode<synchronous>, transform_indices = @transform_5, window_bounds = array<i64: 1, 128>}, {pipeline_mode = #tpu.pipeline_mode<synchronous>, transform_indices = @transform_6, window_bounds = array<i64: 1, 128>}, {pipeline_mode = #tpu.pipeline_mode<synchronous>, transform_indices = @transform_7, window_bounds = array<i64: 1, 128>}, {pipeline_mode = #tpu.pipeline_mode<synchronous>, transform_indices = @transform_8, window_bounds = array<i64: 128, 512>}, {pipeline_mode = #tpu.pipeline_mode<synchronous>, transform_indices = @transform_9, window_bounds = array<i64: 1, 512>}, {pipeline_mode = #tpu.pipeline_mode<synchronous>, transform_indices = @transform_10, window_bounds = array<i64: 512, 128>}, {pipeline_mode = #tpu.pipeline_mode<synchronous>, transform_indices = @transform_11, window_bounds = array<i64: 1, 128>}, {pipeline_mode = #tpu.pipeline_mode<synchronous>, transform_indices = @transform_12, window_bounds = array<i64: 1, 128>}, {pipeline_mode = #tpu.pipeline_mode<synchronous>, transform_indices = @transform_13, window_bounds = array<i64: 1, 128>}, {transform_indices = @transform_14, window_bounds = array<i64: 1, 128, 128>}]} {
    %c0 = arith.constant 0 : index
    %c0_0 = arith.constant 0 : index
    %c0_1 = arith.constant 0 : index
    %0 = vector.load %arg1[%c0, %c0_0, %c0_1] : memref<1x128x128xf32, #tpu.memory_space<vmem>>, vector<1x128x128xf32>
    %1 = vector.shape_cast %0 : vector<1x128x128xf32> to vector<128x128xf32>
    %c0_2 = arith.constant 0 : index
    %c0_3 = arith.constant 0 : index
    %c0_4 = arith.constant 0 : index
    %2 = vector.load %arg2[%c0_2, %c0_3, %c0_4] : memref<1x1x128xf32, #tpu.memory_space<vmem>>, vector<1x1x128xf32>
    %3 = vector.shape_cast %2 : vector<1x1x128xf32> to vector<1x128xf32>
    %c0_5 = arith.constant 0 : index
    %c0_6 = arith.constant 0 : index
    %4 = vector.load %arg3[%c0_5, %c0_6] : memref<128x384xf32, #tpu.memory_space<vmem>>, vector<128x384xf32>
    %cst = arith.constant dense<0.000000e+00> : vector<128x384xf32>
    %5 = tpu.matmul %1, %4, %cst {dimension_numbers = #tpu.dot_dimension_numbers<[1], [0], [0], [1], [0, 0, 1, 1], [], []>} : vector<128x128xf32>, vector<128x384xf32>, vector<128x384xf32> -> vector<128x384xf32>
    %c0_7 = arith.constant 0 : index
    %c0_8 = arith.constant 0 : index
    %6 = vector.load %arg4[%c0_7, %c0_8] : memref<1x384xf32, #tpu.memory_space<vmem>>, vector<1x384xf32>
    %7 = vector.broadcast %6 : vector<1x384xf32> to vector<128x384xf32>
    %8 = arith.addf %5, %7 : vector<128x384xf32>
    %cst_9 = arith.constant 0.000000e+00 : f32
    %9 = vector.broadcast %cst_9 : f32 to vector<128x128xf32>
    %10 = vector.extract_strided_slice %8 {offsets = [0, 0], sizes = [128, 64], strides = [1, 1]} : vector<128x384xf32> to vector<128x64xf32>
    %11 = vector.extract_strided_slice %8 {offsets = [0, 128], sizes = [128, 64], strides = [1, 1]} : vector<128x384xf32> to vector<128x64xf32>
    %12 = vector.extract_strided_slice %8 {offsets = [0, 256], sizes = [128, 64], strides = [1, 1]} : vector<128x384xf32> to vector<128x64xf32>
    %cst_10 = arith.constant dense<0.000000e+00> : vector<128x128xf32>
    %13 = tpu.matmul %10, %11, %cst_10 {dimension_numbers = #tpu.dot_dimension_numbers<[1], [1], [0], [0], [0, 0, 1, 0], [], []>} : vector<128x64xf32>, vector<128x64xf32>, vector<128x128xf32> -> vector<128x128xf32>
    %cst_11 = arith.constant 1.250000e-01 : f32
    %14 = vector.broadcast %cst_11 : f32 to vector<128x128xf32>
    %15 = arith.mulf %13, %14 : vector<128x128xf32>
    %16 = vector.broadcast %3 : vector<1x128xf32> to vector<128x128xf32>
    %17 = arith.addf %15, %16 : vector<128x128xf32>
    %cst_12 = arith.constant dense<0xFF800000> : vector<128xf32>
    %18 = vector.multi_reduction <maximumf>, %17, %cst_12 [1] : vector<128x128xf32> to vector<128xf32>
    %19 = vector.shape_cast %18 : vector<128xf32> to vector<128x1xf32>
    %20 = vector.broadcast %19 : vector<128x1xf32> to vector<128x128xf32>
    %21 = arith.subf %17, %20 : vector<128x128xf32>
    %22 = math.exp %21 : vector<128x128xf32>
    %cst_13 = arith.constant dense<0.000000e+00> : vector<128xf32>
    %23 = vector.multi_reduction <add>, %22, %cst_13 [1] : vector<128x128xf32> to vector<128xf32>
    %24 = vector.shape_cast %23 : vector<128xf32> to vector<128x1xf32>
    %cst_14 = arith.constant dense<0.000000e+00> : vector<128x64xf32>
    %25 = tpu.matmul %22, %12, %cst_14 {dimension_numbers = #tpu.dot_dimension_numbers<[1], [0], [0], [1], [0, 0, 1, 1], [], []>} : vector<128x128xf32>, vector<128x64xf32>, vector<128x64xf32> -> vector<128x64xf32>
    %26 = tpu.reciprocal %24 {approx = true} : vector<128x1xf32> -> vector<128x1xf32>
    %27 = vector.broadcast %26 : vector<128x1xf32> to vector<128x64xf32>
    %28 = arith.mulf %25, %27 : vector<128x64xf32>
    %c0_15 = arith.constant 0 : index
    %c0_16 = arith.constant 0 : index
    %29 = vector.load %arg5[%c0_15, %c0_16] : memref<128x128xf32, #tpu.memory_space<vmem>>, vector<64x128xf32>
    %cst_17 = arith.constant dense<0.000000e+00> : vector<128x128xf32>
    %30 = tpu.matmul %28, %29, %cst_17 {dimension_numbers = #tpu.dot_dimension_numbers<[1], [0], [0], [1], [0, 0, 1, 1], [], []>} : vector<128x64xf32>, vector<64x128xf32>, vector<128x128xf32> -> vector<128x128xf32>
    %31 = arith.addf %9, %30 : vector<128x128xf32>
    %32 = vector.extract_strided_slice %8 {offsets = [0, 64], sizes = [128, 64], strides = [1, 1]} : vector<128x384xf32> to vector<128x64xf32>
    %33 = vector.extract_strided_slice %8 {offsets = [0, 192], sizes = [128, 64], strides = [1, 1]} : vector<128x384xf32> to vector<128x64xf32>
    %34 = vector.extract_strided_slice %8 {offsets = [0, 320], sizes = [128, 64], strides = [1, 1]} : vector<128x384xf32> to vector<128x64xf32>
    %cst_18 = arith.constant dense<0.000000e+00> : vector<128x128xf32>
    %35 = tpu.matmul %32, %33, %cst_18 {dimension_numbers = #tpu.dot_dimension_numbers<[1], [1], [0], [0], [0, 0, 1, 0], [], []>} : vector<128x64xf32>, vector<128x64xf32>, vector<128x128xf32> -> vector<128x128xf32>
    %cst_19 = arith.constant 1.250000e-01 : f32
    %36 = vector.broadcast %cst_19 : f32 to vector<128x128xf32>
    %37 = arith.mulf %35, %36 : vector<128x128xf32>
    %38 = vector.broadcast %3 : vector<1x128xf32> to vector<128x128xf32>
    %39 = arith.addf %37, %38 : vector<128x128xf32>
    %cst_20 = arith.constant dense<0xFF800000> : vector<128xf32>
    %40 = vector.multi_reduction <maximumf>, %39, %cst_20 [1] : vector<128x128xf32> to vector<128xf32>
    %41 = vector.shape_cast %40 : vector<128xf32> to vector<128x1xf32>
    %42 = vector.broadcast %41 : vector<128x1xf32> to vector<128x128xf32>
    %43 = arith.subf %39, %42 : vector<128x128xf32>
    %44 = math.exp %43 : vector<128x128xf32>
    %cst_21 = arith.constant dense<0.000000e+00> : vector<128xf32>
    %45 = vector.multi_reduction <add>, %44, %cst_21 [1] : vector<128x128xf32> to vector<128xf32>
    %46 = vector.shape_cast %45 : vector<128xf32> to vector<128x1xf32>
    %cst_22 = arith.constant dense<0.000000e+00> : vector<128x64xf32>
    %47 = tpu.matmul %44, %34, %cst_22 {dimension_numbers = #tpu.dot_dimension_numbers<[1], [0], [0], [1], [0, 0, 1, 1], [], []>} : vector<128x128xf32>, vector<128x64xf32>, vector<128x64xf32> -> vector<128x64xf32>
    %48 = tpu.reciprocal %46 {approx = true} : vector<128x1xf32> -> vector<128x1xf32>
    %49 = vector.broadcast %48 : vector<128x1xf32> to vector<128x64xf32>
    %50 = arith.mulf %47, %49 : vector<128x64xf32>
    %c64 = arith.constant 64 : index
    %c0_23 = arith.constant 0 : index
    %51 = vector.load %arg5[%c64, %c0_23] : memref<128x128xf32, #tpu.memory_space<vmem>>, vector<64x128xf32>
    %cst_24 = arith.constant dense<0.000000e+00> : vector<128x128xf32>
    %52 = tpu.matmul %50, %51, %cst_24 {dimension_numbers = #tpu.dot_dimension_numbers<[1], [0], [0], [1], [0, 0, 1, 1], [], []>} : vector<128x64xf32>, vector<64x128xf32>, vector<128x128xf32> -> vector<128x128xf32>
    %53 = arith.addf %31, %52 : vector<128x128xf32>
    %c0_25 = arith.constant 0 : index
    %c0_26 = arith.constant 0 : index
    %54 = vector.load %arg6[%c0_25, %c0_26] : memref<1x128xf32, #tpu.memory_space<vmem>>, vector<1x128xf32>
    %55 = vector.broadcast %54 : vector<1x128xf32> to vector<128x128xf32>
    %56 = arith.addf %53, %55 : vector<128x128xf32>
    %57 = arith.addf %56, %1 : vector<128x128xf32>
    %c0_27 = arith.constant 0 : index
    %c0_28 = arith.constant 0 : index
    %58 = vector.load %arg7[%c0_27, %c0_28] : memref<1x128xf32, #tpu.memory_space<vmem>>, vector<1x128xf32>
    %c0_29 = arith.constant 0 : index
    %c0_30 = arith.constant 0 : index
    %59 = vector.load %arg8[%c0_29, %c0_30] : memref<1x128xf32, #tpu.memory_space<vmem>>, vector<1x128xf32>
    %cst_31 = arith.constant dense<0.000000e+00> : vector<128xf32>
    %60 = vector.multi_reduction <add>, %57, %cst_31 [1] : vector<128x128xf32> to vector<128xf32>
    %61 = vector.shape_cast %60 : vector<128xf32> to vector<128x1xf32>
    %cst_32 = arith.constant 1.280000e+02 : f32
    %62 = vector.broadcast %cst_32 : f32 to vector<128x1xf32>
    %63 = arith.divf %61, %62 : vector<128x1xf32>
    %64 = vector.broadcast %63 : vector<128x1xf32> to vector<128x128xf32>
    %65 = arith.subf %57, %64 : vector<128x128xf32>
    %66 = arith.mulf %65, %65 : vector<128x128xf32>
    %cst_33 = arith.constant dense<0.000000e+00> : vector<128xf32>
    %67 = vector.multi_reduction <add>, %66, %cst_33 [1] : vector<128x128xf32> to vector<128xf32>
    %68 = vector.shape_cast %67 : vector<128xf32> to vector<128x1xf32>
    %cst_34 = arith.constant 1.280000e+02 : f32
    %69 = vector.broadcast %cst_34 : f32 to vector<128x1xf32>
    %70 = arith.divf %68, %69 : vector<128x1xf32>
    %cst_35 = arith.constant 9.99999996E-13 : f32
    %71 = vector.broadcast %cst_35 : f32 to vector<128x1xf32>
    %72 = arith.addf %70, %71 : vector<128x1xf32>
    %73 = math.rsqrt %72 : vector<128x1xf32>
    %74 = vector.broadcast %73 : vector<128x1xf32> to vector<128x128xf32>
    %75 = arith.mulf %65, %74 : vector<128x128xf32>
    %76 = vector.broadcast %58 : vector<1x128xf32> to vector<128x128xf32>
    %77 = arith.mulf %75, %76 : vector<128x128xf32>
    %78 = vector.broadcast %59 : vector<1x128xf32> to vector<128x128xf32>
    %79 = arith.addf %77, %78 : vector<128x128xf32>
    %c0_36 = arith.constant 0 : index
    %c0_37 = arith.constant 0 : index
    %80 = vector.load %arg9[%c0_36, %c0_37] : memref<128x512xf32, #tpu.memory_space<vmem>>, vector<128x512xf32>
    %cst_38 = arith.constant dense<0.000000e+00> : vector<128x512xf32>
    %81 = tpu.matmul %79, %80, %cst_38 {dimension_numbers = #tpu.dot_dimension_numbers<[1], [0], [0], [1], [0, 0, 1, 1], [], []>} : vector<128x128xf32>, vector<128x512xf32>, vector<128x512xf32> -> vector<128x512xf32>
    %c0_39 = arith.constant 0 : index
    %c0_40 = arith.constant 0 : index
    %82 = vector.load %arg10[%c0_39, %c0_40] : memref<1x512xf32, #tpu.memory_space<vmem>>, vector<1x512xf32>
    %83 = vector.broadcast %82 : vector<1x512xf32> to vector<128x512xf32>
    %84 = arith.addf %81, %83 : vector<128x512xf32>
    %cst_41 = arith.constant 5.000000e-01 : f32
    %85 = vector.broadcast %cst_41 : f32 to vector<128x512xf32>
    %86 = arith.mulf %85, %84 : vector<128x512xf32>
    %cst_42 = arith.constant 4.471500e-02 : f32
    %87 = vector.broadcast %cst_42 : f32 to vector<128x512xf32>
    %88 = arith.mulf %87, %84 : vector<128x512xf32>
    %89 = arith.mulf %88, %84 : vector<128x512xf32>
    %90 = arith.mulf %89, %84 : vector<128x512xf32>
    %91 = arith.addf %84, %90 : vector<128x512xf32>
    %cst_43 = arith.constant 0.797884583 : f32
    %92 = vector.broadcast %cst_43 : f32 to vector<128x512xf32>
    %93 = arith.mulf %92, %91 : vector<128x512xf32>
    %94 = math.tanh %93 : vector<128x512xf32>
    %cst_44 = arith.constant 1.000000e+00 : f32
    %95 = vector.broadcast %cst_44 : f32 to vector<128x512xf32>
    %96 = arith.addf %95, %94 : vector<128x512xf32>
    %97 = arith.mulf %86, %96 : vector<128x512xf32>
    %c0_45 = arith.constant 0 : index
    %c0_46 = arith.constant 0 : index
    %98 = vector.load %arg11[%c0_45, %c0_46] : memref<512x128xf32, #tpu.memory_space<vmem>>, vector<512x128xf32>
    %cst_47 = arith.constant dense<0.000000e+00> : vector<128x128xf32>
    %99 = tpu.matmul %97, %98, %cst_47 {dimension_numbers = #tpu.dot_dimension_numbers<[1], [0], [0], [1], [0, 0, 1, 1], [], []>} : vector<128x512xf32>, vector<512x128xf32>, vector<128x128xf32> -> vector<128x128xf32>
    %c0_48 = arith.constant 0 : index
    %c0_49 = arith.constant 0 : index
    %100 = vector.load %arg12[%c0_48, %c0_49] : memref<1x128xf32, #tpu.memory_space<vmem>>, vector<1x128xf32>
    %101 = vector.broadcast %100 : vector<1x128xf32> to vector<128x128xf32>
    %102 = arith.addf %99, %101 : vector<128x128xf32>
    %103 = arith.addf %102, %79 : vector<128x128xf32>
    %c0_50 = arith.constant 0 : index
    %c0_51 = arith.constant 0 : index
    %104 = vector.load %arg13[%c0_50, %c0_51] : memref<1x128xf32, #tpu.memory_space<vmem>>, vector<1x128xf32>
    %c0_52 = arith.constant 0 : index
    %c0_53 = arith.constant 0 : index
    %105 = vector.load %arg14[%c0_52, %c0_53] : memref<1x128xf32, #tpu.memory_space<vmem>>, vector<1x128xf32>
    %cst_54 = arith.constant dense<0.000000e+00> : vector<128xf32>
    %106 = vector.multi_reduction <add>, %103, %cst_54 [1] : vector<128x128xf32> to vector<128xf32>
    %107 = vector.shape_cast %106 : vector<128xf32> to vector<128x1xf32>
    %cst_55 = arith.constant 1.280000e+02 : f32
    %108 = vector.broadcast %cst_55 : f32 to vector<128x1xf32>
    %109 = arith.divf %107, %108 : vector<128x1xf32>
    %110 = vector.broadcast %109 : vector<128x1xf32> to vector<128x128xf32>
    %111 = arith.subf %103, %110 : vector<128x128xf32>
    %112 = arith.mulf %111, %111 : vector<128x128xf32>
    %cst_56 = arith.constant dense<0.000000e+00> : vector<128xf32>
    %113 = vector.multi_reduction <add>, %112, %cst_56 [1] : vector<128x128xf32> to vector<128xf32>
    %114 = vector.shape_cast %113 : vector<128xf32> to vector<128x1xf32>
    %cst_57 = arith.constant 1.280000e+02 : f32
    %115 = vector.broadcast %cst_57 : f32 to vector<128x1xf32>
    %116 = arith.divf %114, %115 : vector<128x1xf32>
    %cst_58 = arith.constant 9.99999996E-13 : f32
    %117 = vector.broadcast %cst_58 : f32 to vector<128x1xf32>
    %118 = arith.addf %116, %117 : vector<128x1xf32>
    %119 = math.rsqrt %118 : vector<128x1xf32>
    %120 = vector.broadcast %119 : vector<128x1xf32> to vector<128x128xf32>
    %121 = arith.mulf %111, %120 : vector<128x128xf32>
    %122 = vector.broadcast %104 : vector<1x128xf32> to vector<128x128xf32>
    %123 = arith.mulf %121, %122 : vector<128x128xf32>
    %124 = vector.broadcast %105 : vector<1x128xf32> to vector<128x128xf32>
    %125 = arith.addf %123, %124 : vector<128x128xf32>
    %c0_59 = arith.constant 0 : index
    %c0_60 = arith.constant 0 : index
    %c0_61 = arith.constant 0 : index
    %126 = vector.load %arg15[%c0_59, %c0_60, %c0_61] : memref<1x128x128xf32, #tpu.memory_space<vmem>>, vector<1x128x128xf32>
    %127 = vector.shape_cast %126 : vector<1x128x128xf32> to vector<128x128xf32>
    %128 = vector.shape_cast %125 : vector<128x128xf32> to vector<1x128x128xf32>
    tpu.vector_store %arg15[%c0_59, %c0_60, %c0_61], %128 {strides = array<i32>} : memref<1x128x128xf32, #tpu.memory_space<vmem>>, vector<1x128x128xf32>,
    return
  }
  func.func @transform_0(%arg0: i32) -> (i32, i32, i32) {
    %c0_i32 = arith.constant 0 : i32
    %c0_i32_0 = arith.constant 0 : i32
    %c0_i32_1 = arith.constant 0 : i32
    return %arg0, %c0_i32, %c0_i32_0 : i32, i32, i32
  }
  func.func @transform_1(%arg0: i32) -> (i32, i32, i32) {
    %c0_i32 = arith.constant 0 : i32
    %c0_i32_0 = arith.constant 0 : i32
    %c0_i32_1 = arith.constant 0 : i32
    return %arg0, %c0_i32, %c0_i32_0 : i32, i32, i32
  }
  func.func @transform_2(%arg0: i32) -> (i32, i32) {
    %c0_i32 = arith.constant 0 : i32
    %c0_i32_0 = arith.constant 0 : i32
    %c0_i32_1 = arith.constant 0 : i32
    return %c0_i32, %c0_i32_0 : i32, i32
  }
  func.func @transform_3(%arg0: i32) -> (i32, i32) {
    %c0_i32 = arith.constant 0 : i32
    %c0_i32_0 = arith.constant 0 : i32
    %c0_i32_1 = arith.constant 0 : i32
    return %c0_i32, %c0_i32_0 : i32, i32
  }
  func.func @transform_4(%arg0: i32) -> (i32, i32) {
    %c0_i32 = arith.constant 0 : i32
    %c0_i32_0 = arith.constant 0 : i32
    %c0_i32_1 = arith.constant 0 : i32
    return %c0_i32, %c0_i32_0 : i32, i32
  }
  func.func @transform_5(%arg0: i32) -> (i32, i32) {
    %c0_i32 = arith.constant 0 : i32
    %c0_i32_0 = arith.constant 0 : i32
    %c0_i32_1 = arith.constant 0 : i32
    return %c0_i32, %c0_i32_0 : i32, i32
  }
  func.func @transform_6(%arg0: i32) -> (i32, i32) {
    %c0_i32 = arith.constant 0 : i32
    %c0_i32_0 = arith.constant 0 : i32
    %c0_i32_1 = arith.constant 0 : i32
    return %c0_i32, %c0_i32_0 : i32, i32
  }
  func.func @transform_7(%arg0: i32) -> (i32, i32) {
    %c0_i32 = arith.constant 0 : i32
    %c0_i32_0 = arith.constant 0 : i32
    %c0_i32_1 = arith.constant 0 : i32
    return %c0_i32, %c0_i32_0 : i32, i32
  }
  func.func @transform_8(%arg0: i32) -> (i32, i32) {
    %c0_i32 = arith.constant 0 : i32
    %c0_i32_0 = arith.constant 0 : i32
    %c0_i32_1 = arith.constant 0 : i32
    return %c0_i32, %c0_i32_0 : i32, i32
  }
  func.func @transform_9(%arg0: i32) -> (i32, i32) {
    %c0_i32 = arith.constant 0 : i32
    %c0_i32_0 = arith.constant 0 : i32
    %c0_i32_1 = arith.constant 0 : i32
    return %c0_i32, %c0_i32_0 : i32, i32
  }
  func.func @transform_10(%arg0: i32) -> (i32, i32) {
    %c0_i32 = arith.constant 0 : i32
    %c0_i32_0 = arith.constant 0 : i32
    %c0_i32_1 = arith.constant 0 : i32
    return %c0_i32, %c0_i32_0 : i32, i32
  }
  func.func @transform_11(%arg0: i32) -> (i32, i32) {
    %c0_i32 = arith.constant 0 : i32
    %c0_i32_0 = arith.constant 0 : i32
    %c0_i32_1 = arith.constant 0 : i32
    return %c0_i32, %c0_i32_0 : i32, i32
  }
  func.func @transform_12(%arg0: i32) -> (i32, i32) {
    %c0_i32 = arith.constant 0 : i32
    %c0_i32_0 = arith.constant 0 : i32
    %c0_i32_1 = arith.constant 0 : i32
    return %c0_i32, %c0_i32_0 : i32, i32
  }
  func.func @transform_13(%arg0: i32) -> (i32, i32) {
    %c0_i32 = arith.constant 0 : i32
    %c0_i32_0 = arith.constant 0 : i32
    %c0_i32_1 = arith.constant 0 : i32
    return %c0_i32, %c0_i32_0 : i32, i32
  }
  func.func @transform_14(%arg0: i32) -> (i32, i32, i32) {
    %c0_i32 = arith.constant 0 : i32
    %c0_i32_0 = arith.constant 0 : i32
    %c0_i32_1 = arith.constant 0 : i32
    return %arg0, %c0_i32, %c0_i32_0 : i32, i32, i32
  }
}

</mosaic_0001>

<llo_original>
// kernel: bert_encoder_forward.7
$region0: #{bert_encoder_forward.7}
  #allocation0 [shape = 'u32[]', space=smem, size = 0x4, offset = 0x4, fixed_abs, tag = 'smem constant byte address 0x4 - core index']
  #allocation1 [shape = 'u32[144,128]{1,0:T(1,128)}', space=vmem, size = 0x12000, scoped, tag = 'internal scratch']
  %s0 = inlined_call_operand.vmem [shape: f32[2,128], index: 0, kind: input, shape index: {}]
  %s1 = inlined_call_operand.vmem [shape: f32[128,128], index: 1, kind: input, shape index: {}]
  %s2 = inlined_call_operand.vmem [shape: f32[1,128], index: 2, kind: input, shape index: {}]
  %s3 = inlined_call_operand.hbm [shape: f32[2,128], index: 3, kind: output, shape index: {}]
  %s4 = sld [smem:[#allocation0]]
  $region22: #{bert_encoder_forward.7} parent=0
    _
  %s6 = ssub.s32 1, %s4
  %s7 = scalar_select 0, %s6, %s4
  $region1: #{bert_encoder_forward.7} parent=0
    #allocation2 [shape = 'u8[1024]{0}', space=vmem, size = 0x400, scoped, tag = 'output window, operand 0, single buffered']
    #allocation3 [shape = 's32[1]{0}', space=sflag, size = 0x4, scoped, tag = 'scoped memory for bert_encoder_forward.7']
    %8 = vsyncpa [#allocation3], 0
    // Predicated region
    $region2: #{bert_encoder_forward.7} parent=1 // pred_check
      _
    $region3: #{bert_encoder_forward.7} parent=1 // pred_check_branch
      %10 = sbr.rel (0) target = $region5
    $region4: #{bert_encoder_forward.7} parent=1 // pred_region
      _
    $region5: #{bert_encoder_forward.7} parent=1 // pred_fallthru
      _
    // Predicated region
    $region6: #{bert_encoder_forward.7} parent=1 // pred_check
      _
    $region7: #{bert_encoder_forward.7} parent=1 // pred_check_branch
      %12 = sbr.rel (0) target = $region9
    $region8: #{bert_encoder_forward.7} parent=1 // pred_region
      _
    $region9: #{bert_encoder_forward.7} parent=1 // pred_fallthru
      _
    // Predicated region
    $region10: #{bert_encoder_forward.7} parent=1 // pred_check
      _
    $region11: #{bert_encoder_forward.7} parent=1 // pred_check_branch
      %14 = sbr.rel (0) target = $region13
    $region12: #{bert_encoder_forward.7} parent=1 // pred_region
      _
    $region13: #{bert_encoder_forward.7} parent=1 // pred_fallthru
      _
    %v15 = vld [vmem:[%s0] sm:$0x3]
    %v16 = vld [vmem:[%s1] sm:$0xff]
    %v17 = vld [vmem:[%s1 + $0x8] sm:$0xff]
    %v18 = vld [vmem:[%s1 + $0x10] sm:$0xff]
    %v19 = vld [vmem:[%s1 + $0x18] sm:$0xff]
    %v20 = vld [vmem:[%s1 + $0x20] sm:$0xff]
    %v21 = vld [vmem:[%s1 + $0x28] sm:$0xff]
    %v22 = vld [vmem:[%s1 + $0x30] sm:$0xff]
    %v23 = vld [vmem:[%s1 + $0x38] sm:$0xff]
    %v24 = vld [vmem:[%s1 + $0x40] sm:$0xff]
    %v25 = vld [vmem:[%s1 + $0x48] sm:$0xff]
    %v26 = vld [vmem:[%s1 + $0x50] sm:$0xff]
    %v27 = vld [vmem:[%s1 + $0x58] sm:$0xff]
    %v28 = vld [vmem:[%s1 + $0x60] sm:$0xff]
    %v29 = vld [vmem:[%s1 + $0x68] sm:$0xff]
    %v30 = vld [vmem:[%s1 + $0x70] sm:$0xff]
    %v31 = vld [vmem:[%s1 + $0x78] sm:$0xff]
    %v32 = vld [vmem:[%s2] sm:$0x1]
    %v34 = vlaneseq
    %v35 = vshrl.u32 %v34, 7
    %v36 = vsub.s32 0, %v35
    %v37 = vrot.slane %v32, %v36
    %39 = vmatprep.subr.mxu0 0.0
    %40 = vmatpush1.msra.mxu0 %v16
    %41 = vmatprep.subr.mxu0 0.0
    %42 = vmatpush1.msra.mxu0 %v17
    %43 = vmatprep.subr.mxu0 0.0
    %44 = vmatpush1.msra.mxu0 %v18
    %45 = vmatprep.subr.mxu0 0.0
    %46 = vmatpush1.msra.mxu0 %v19
    %47 = vmatprep.subr.mxu0 0.0
    %48 = vmatpush1.msra.mxu0 %v20
    %49 = vmatprep.subr.mxu0 0.0
    %50 = vmatpush1.msra.mxu0 %v21
    %51 = vmatprep.subr.mxu0 0.0
    %52 = vmatpush1.msra.mxu0 %v22
    %53 = vmatprep.subr.mxu0 0.0
    %54 = vmatpush1.msra.mxu0 %v23
    %55 = vmatprep.subr.mxu0 0.0
    %56 = vmatpush1.msra.mxu0 %v24
    %57 = vmatprep.subr.mxu0 0.0
    %58 = vmatpush1.msra.mxu0 %v25
    %59 = vmatprep.subr.mxu0 0.0
    %60 = vmatpush1.msra.mxu0 %v26
    %61 = vmatprep.subr.mxu0 0.0
    %62 = vmatpush1.msra.mxu0 %v27
    %63 = vmatprep.subr.mxu0 0.0
    %64 = vmatpush1.msra.mxu0 %v28
    %65 = vmatprep.subr.mxu0 0.0
    %66 = vmatpush1.msra.mxu0 %v29
    %67 = vmatprep.subr.mxu0 0.0
    %68 = vmatpush1.msra.mxu0 %v30
    %69 = vmatprep.subr.mxu0 0.0
    %70 = vmatpush1.msra.mxu0 %v31
    %71 = vmatprep.subr.mxu0 0.0
    %72 = vmatpush1.msra.mxu0 0.0
    %73 = vmatprep.subr.mxu0 0.0
    %74 = vmatpush1.msra.mxu0 0.0
    %75 = vmatprep.subr.mxu0 0.0
    %76 = vmatpush1.msra.mxu0 0.0
    %77 = vmatprep.subr.mxu0 0.0
    %78 = vmatpush1.msra.mxu0 0.0
    %79 = vmatprep.subr.mxu0 0.0
    %80 = vmatpush1.msra.mxu0 0.0
    %81 = vmatprep.subr.mxu0 0.0
    %82 = vmatpush1.msra.mxu0 0.0
    %83 = vmatprep.subr.mxu0 0.0
    %84 = vmatpush1.msra.mxu0 0.0
    %85 = vmatprep.subr.mxu0 0.0
    %86 = vmatpush1.msra.mxu0 0.0
    %87 = vmatprep.subr.mxu0 0.0
    %88 = vmatpush1.msra.mxu0 0.0
    %89 = vmatprep.subr.mxu0 0.0
    %90 = vmatpush1.msra.mxu0 0.0
    %91 = vmatprep.subr.mxu0 0.0
    %92 = vmatpush1.msra.mxu0 0.0
    %93 = vmatprep.subr.mxu0 0.0
    %94 = vmatpush1.msra.mxu0 0.0
    %95 = vmatprep.subr.mxu0 0.0
    %96 = vmatpush1.msra.mxu0 0.0
    %97 = vmatprep.subr.mxu0 0.0
    %98 = vmatpush1.msra.mxu0 0.0
    %99 = vmatprep.subr.mxu0 0.0
    %100 = vmatpush1.msra.mxu0 0.0
    %101 = vmatprep.subr.mxu0 0.0
    %102 = vmatpush1.msra.mxu0 0.0
    %103 = vmatprep.mubr.f32.mxu0 0.0
    %104 = vmatmul.mubr.f32.gmra.mrb[0].mxu0 %v15
    %v105 = vpop.f32.mrb[0].mxu0
    %v106 = vadd.f32 %v37, %v105
    %v107 = vpop.f32.mrb[0].mxu0
    %108 = vdwg.mxu0
    %v109 = vtanh.pop %v106
    %110 = vst [vmem:[#allocation2] sm:$0x3] %v109
    // Predicated region
    $region14: #{bert_encoder_forward.7} parent=1 // pred_check
      _
    $region15: #{bert_encoder_forward.7} parent=1 // pred_check_branch
      %112 = sbr.rel (0) target = $region17
    $region16: #{bert_encoder_forward.7} parent=1 // pred_region
      %s114 = ssub.s32 32, 32
      %115 = vsyncadd [#allocation3], %s114
      %s117 = sshll.u32 [#allocation2], 4
      %s118 = int_to_ptr.vmem [resolvable:$true] %s117
      %120 = dma.vmem_to_hbm [thread:$0]  %s118, 32, %s3, [#allocation3]
    $region17: #{bert_encoder_forward.7} parent=1 // pred_fallthru
      _
    // Predicated region
    $region18: #{bert_encoder_forward.7} parent=1 // pred_check
      _
    $region19: #{bert_encoder_forward.7} parent=1 // pred_check_branch
      %122 = sbr.rel (0) target = $region21
    $region20: #{bert_encoder_forward.7} parent=1 // pred_region
      %123 = dma.done [#allocation3], 32
    $region21: #{bert_encoder_forward.7} parent=1 // pred_fallthru
      _
    %124 = vsyncpa [#allocation3], 1

// kernel: bert_encoder_forward.4
$region0: #{bert_encoder_forward.4}
  #allocation0 [shape = 'u32[]', space=smem, size = 0x4, offset = 0x4, fixed_abs, tag = 'smem constant byte address 0x4 - core index']
  #allocation1 [shape = 'u32[144,128]{1,0:T(1,128)}', space=vmem, size = 0x12000, scoped, tag = 'internal scratch']
  %s0 = inlined_call_operand.vmem [shape: f32[256,128], index: 0, kind: input, shape index: {}]
  %s1 = inlined_call_operand.vmem [shape: f32[1,128], index: 1, kind: input, shape index: {}]
  %s2 = inlined_call_operand.vmem [shape: f32[1,128], index: 2, kind: input, shape index: {}]
  %s3 = inlined_call_operand.vmem [shape: f32[256,128], index: 3, kind: output, shape index: {}]
  %s4 = sld [smem:[#allocation0]]
  $region22: #{bert_encoder_forward.4} parent=0
    _
  %s6 = ssub.s32 1, %s4
  %s7 = scalar_select 0, %s6, %s4
  // Predicated region
  $region2: #{bert_encoder_forward.4} parent=0 // pred_check
    _
  $region3: #{bert_encoder_forward.4} parent=0 // pred_check_branch
    %9 = sbr.rel (0) target = $region5
  $region4: #{bert_encoder_forward.4} parent=0 // pred_region
    _
  $region5: #{bert_encoder_forward.4} parent=0 // pred_fallthru
    _
  // Predicated region
  $region6: #{bert_encoder_forward.4} parent=0 // pred_check
    _
  $region7: #{bert_encoder_forward.4} parent=0 // pred_check_branch
    %11 = sbr.rel (0) target = $region9
  $region8: #{bert_encoder_forward.4} parent=0 // pred_region
    _
  $region9: #{bert_encoder_forward.4} parent=0 // pred_fallthru
    _
  // Predicated region
  $region10: #{bert_encoder_forward.4} parent=0 // pred_check
    _
  $region11: #{bert_encoder_forward.4} parent=0 // pred_check_branch
    %13 = sbr.rel (0) target = $region13
  $region12: #{bert_encoder_forward.4} parent=0 // pred_region
    _
  $region13: #{bert_encoder_forward.4} parent=0 // pred_fallthru
    _
  %v14 = vld [vmem:[%s0] sm:$0xff]
  %v15 = vld [vmem:[%s0 + $0x8] sm:$0xff]
  %v16 = vld [vmem:[%s0 + $0x10] sm:$0xff]
  %v17 = vld [vmem:[%s0 + $0x18] sm:$0xff]
  %v18 = vld [vmem:[%s0 + $0x20] sm:$0xff]
  %v19 = vld [vmem:[%s0 + $0x28] sm:$0xff]
  %v20 = vld [vmem:[%s0 + $0x30] sm:$0xff]
  %v21 = vld [vmem:[%s0 + $0x38] sm:$0xff]
  %v22 = vld [vmem:[%s0 + $0x40] sm:$0xff]
  %v23 = vld [vmem:[%s0 + $0x48] sm:$0xff]
  %v24 = vld [vmem:[%s0 + $0x50] sm:$0xff]
  %v25 = vld [vmem:[%s0 + $0x58] sm:$0xff]
  %v26 = vld [vmem:[%s0 + $0x60] sm:$0xff]
  %v27 = vld [vmem:[%s0 + $0x68] sm:$0xff]
  %v28 = vld [vmem:[%s0 + $0x70] sm:$0xff]
  %v29 = vld [vmem:[%s0 + $0x78] sm:$0xff]
  %v30 = vld [vmem:[%s0 + $0x80] sm:$0xff]
  %v31 = vld [vmem:[%s0 + $0x88] sm:$0xff]
  %v32 = vld [vmem:[%s0 + $0x90] sm:$0xff]
  %v33 = vld [vmem:[%s0 + $0x98] sm:$0xff]
  %v34 = vld [vmem:[%s0 + $0xa0] sm:$0xff]
  %v35 = vld [vmem:[%s0 + $0xa8] sm:$0xff]
  %v36 = vld [vmem:[%s0 + $0xb0] sm:$0xff]
  %v37 = vld [vmem:[%s0 + $0xb8] sm:$0xff]
  %v38 = vld [vmem:[%s0 + $0xc0] sm:$0xff]
  %v39 = vld [vmem:[%s0 + $0xc8] sm:$0xff]
  %v40 = vld [vmem:[%s0 + $0xd0] sm:$0xff]
  %v41 = vld [vmem:[%s0 + $0xd8] sm:$0xff]
  %v42 = vld [vmem:[%s0 + $0xe0] sm:$0xff]
  %v43 = vld [vmem:[%s0 + $0xe8] sm:$0xff]
  %v44 = vld [vmem:[%s0 + $0xf0] sm:$0xff]
  %v45 = vld [vmem:[%s0 + $0xf8] sm:$0xff]
  %v46 = vld [vmem:[%s1] sm:$0x1]
  %v47 = vld [vmem:[%s2] sm:$0x1]
  %48 = vadd.xlane.f32.xlu0 %v14
  %v49 = vpop.xlane.xlu0 %48
  %50 = vadd.xlane.f32.xlu0 %v15
  %v51 = vpop.xlane.xlu0 %50
  %52 = vadd.xlane.f32.xlu0 %v16
  %v53 = vpop.xlane.xlu0 %52
  %54 = vadd.xlane.f32.xlu0 %v17
  %v55 = vpop.xlane.xlu0 %54
  %56 = vadd.xlane.f32.xlu0 %v18
  %v57 = vpop.xlane.xlu0 %56
  %58 = vadd.xlane.f32.xlu0 %v19
  %v59 = vpop.xlane.xlu0 %58
  %60 = vadd.xlane.f32.xlu0 %v20
  %v61 = vpop.xlane.xlu0 %60
  %62 = vadd.xlane.f32.xlu0 %v21
  %v63 = vpop.xlane.xlu0 %62
  %64 = vadd.xlane.f32.xlu0 %v22
  %v65 = vpop.xlane.xlu0 %64
  %66 = vadd.xlane.f32.xlu0 %v23
  %v67 = vpop.xlane.xlu0 %66
  %68 = vadd.xlane.f32.xlu0 %v24
  %v69 = vpop.xlane.xlu0 %68
  %70 = vadd.xlane.f32.xlu0 %v25
  %v71 = vpop.xlane.xlu0 %70
  %72 = vadd.xlane.f32.xlu0 %v26
  %v73 = vpop.xlane.xlu0 %72
  %74 = vadd.xlane.f32.xlu0 %v27
  %v75 = vpop.xlane.xlu0 %74
  %76 = vadd.xlane.f32.xlu0 %v28
  %v77 = vpop.xlane.xlu0 %76
  %78 = vadd.xlane.f32.xlu0 %v29
  %v79 = vpop.xlane.xlu0 %78
  %80 = vadd.xlane.f32.xlu0 %v30
  %v81 = vpop.xlane.xlu0 %80
  %82 = vadd.xlane.f32.xlu0 %v31
  %v83 = vpop.xlane.xlu0 %82
  %84 = vadd.xlane.f32.xlu0 %v32
  %v85 = vpop.xlane.xlu0 %84
  %86 = vadd.xlane.f32.xlu0 %v33
  %v87 = vpop.xlane.xlu0 %86
  %88 = vadd.xlane.f32.xlu0 %v34
  %v89 = vpop.xlane.xlu0 %88
  %90 = vadd.xlane.f32.xlu0 %v35
  %v91 = vpop.xlane.xlu0 %90
  %92 = vadd.xlane.f32.xlu0 %v36
  %v93 = vpop.xlane.xlu0 %92
  %94 = vadd.xlane.f32.xlu0 %v37
  %v95 = vpop.xlane.xlu0 %94
  %96 = vadd.xlane.f32.xlu0 %v38
  %v97 = vpop.xlane.xlu0 %96
  %98 = vadd.xlane.f32.xlu0 %v39
  %v99 = vpop.xlane.xlu0 %98
  %100 = vadd.xlane.f32.xlu0 %v40
  %v101 = vpop.xlane.xlu0 %100
  %102 = vadd.xlane.f32.xlu0 %v41
  %v103 = vpop.xlane.xlu0 %102
  %104 = vadd.xlane.f32.xlu0 %v42
  %v105 = vpop.xlane.xlu0 %104
  %106 = vadd.xlane.f32.xlu0 %v43
  %v107 = vpop.xlane.xlu0 %106
  %108 = vadd.xlane.f32.xlu0 %v44
  %v109 = vpop.xlane.xlu0 %108
  %110 = vadd.xlane.f32.xlu0 %v45
  %v111 = vpop.xlane.xlu0 %110
  %v112 = vrcp.pop 128.0
  %v113 = vmul.f32 %v49, %v112
  %v114 = vmul.f32 %v51, %v112
  %v115 = vmul.f32 %v53, %v112
  %v116 = vmul.f32 %v55, %v112
  %v117 = vmul.f32 %v57, %v112
  %v118 = vmul.f32 %v59, %v112
  %v119 = vmul.f32 %v61, %v112
  %v120 = vmul.f32 %v63, %v112
  %v121 = vmul.f32 %v65, %v112
  %v122 = vmul.f32 %v67, %v112
  %v123 = vmul.f32 %v69, %v112
  %v124 = vmul.f32 %v71, %v112
  %v125 = vmul.f32 %v73, %v112
  %v126 = vmul.f32 %v75, %v112
  %v127 = vmul.f32 %v77, %v112
  %v128 = vmul.f32 %v79, %v112
  %v129 = vmul.f32 %v81, %v112
  %v130 = vmul.f32 %v83, %v112
  %v131 = vmul.f32 %v85, %v112
  %v132 = vmul.f32 %v87, %v112
  %v133 = vmul.f32 %v89, %v112
  %v134 = vmul.f32 %v91, %v112
  %v135 = vmul.f32 %v93, %v112
  %v136 = vmul.f32 %v95, %v112
  %v137 = vmul.f32 %v97, %v112
  %v138 = vmul.f32 %v99, %v112
  %v139 = vmul.f32 %v101, %v112
  %v140 = vmul.f32 %v103, %v112
  %v141 = vmul.f32 %v105, %v112
  %v142 = vmul.f32 %v107, %v112
  %v143 = vmul.f32 %v109, %v112
  %v144 = vmul.f32 %v111, %v112
  %v145 = vsub.f32 %v14, %v113
  %v146 = vsub.f32 %v15, %v114
  %v147 = vsub.f32 %v16, %v115
  %v148 = vsub.f32 %v17, %v116
  %v149 = vsub.f32 %v18, %v117
  %v150 = vsub.f32 %v19, %v118
  %v151 = vsub.f32 %v20, %v119
  %v152 = vsub.f32 %v21, %v120
  %v153 = vsub.f32 %v22, %v121
  %v154 = vsub.f32 %v23, %v122
  %v155 = vsub.f32 %v24, %v123
  %v156 = vsub.f32 %v25, %v124
  %v157 = vsub.f32 %v26, %v125
  %v158 = vsub.f32 %v27, %v126
  %v159 = vsub.f32 %v28, %v127
  %v160 = vsub.f32 %v29, %v128
  %v161 = vsub.f32 %v30, %v129
  %v162 = vsub.f32 %v31, %v130
  %v163 = vsub.f32 %v32, %v131
  %v164 = vsub.f32 %v33, %v132
  %v165 = vsub.f32 %v34, %v133
  %v166 = vsub.f32 %v35, %v134
  %v167 = vsub.f32 %v36, %v135
  %v168 = vsub.f32 %v37, %v136
  %v169 = vsub.f32 %v38, %v137
  %v170 = vsub.f32 %v39, %v138
  %v171 = vsub.f32 %v40, %v139
  %v172 = vsub.f32 %v41, %v140
  %v173 = vsub.f32 %v42, %v141
  %v174 = vsub.f32 %v43, %v142
  %v175 = vsub.f32 %v44, %v143
  %v176 = vsub.f32 %v45, %v144
  %v177 = vmul.f32 %v145, %v145
  %v178 = vmul.f32 %v146, %v146
  %v179 = vmul.f32 %v147, %v147
  %v180 = vmul.f32 %v148, %v148
  %v181 = vmul.f32 %v149, %v149
  %v182 = vmul.f32 %v150, %v150
  %v183 = vmul.f32 %v151, %v151
  %v184 = vmul.f32 %v152, %v152
  %v185 = vmul.f32 %v153, %v153
  %v186 = vmul.f32 %v154, %v154
  %v187 = vmul.f32 %v155, %v155
  %v188 = vmul.f32 %v156, %v156
  %v189 = vmul.f32 %v157, %v157
  %v190 = vmul.f32 %v158, %v158
  %v191 = vmul.f32 %v159, %v159
  %v192 = vmul.f32 %v160, %v160
  %v193 = vmul.f32 %v161, %v161
  %v194 = vmul.f32 %v162, %v162
  %v195 = vmul.f32 %v163, %v163
  %v196 = vmul.f32 %v164, %v164
  %v197 = vmul.f32 %v165, %v165
  %v198 = vmul.f32 %v166, %v166
  %v199 = vmul.f32 %v167, %v167
  %v200 = vmul.f32 %v168, %v168
  %v201 = vmul.f32 %v169, %v169
  %v202 = vmul.f32 %v170, %v170
  %v203 = vmul.f32 %v171, %v171
  %v204 = vmul.f32 %v172, %v172
  %v205 = vmul.f32 %v173, %v173
  %v206 = vmul.f32 %v174, %v174
  %v207 = vmul.f32 %v175, %v175
  %v208 = vmul.f32 %v176, %v176
  %209 = vadd.xlane.f32.xlu0 %v177
  %v210 = vpop.xlane.xlu0 %209
  %211 = vadd.xlane.f32.xlu0 %v178
  %v212 = vpop.xlane.xlu0 %211
  %213 = vadd.xlane.f32.xlu0 %v179
  %v214 = vpop.xlane.xlu0 %213
  %215 = vadd.xlane.f32.xlu0 %v180
  %v216 = vpop.xlane.xlu0 %215
  %217 = vadd.xlane.f32.xlu0 %v181
  %v218 = vpop.xlane.xlu0 %217
  %219 = vadd.xlane.f32.xlu0 %v182
  %v220 = vpop.xlane.xlu0 %219
  %221 = vadd.xlane.f32.xlu0 %v183
  %v222 = vpop.xlane.xlu0 %221
  %223 = vadd.xlane.f32.xlu0 %v184
  %v224 = vpop.xlane.xlu0 %223
  %225 = vadd.xlane.f32.xlu0 %v185
  %v226 = vpop.xlane.xlu0 %225
  %227 = vadd.xlane.f32.xlu0 %v186
  %v228 = vpop.xlane.xlu0 %227
  %229 = vadd.xlane.f32.xlu0 %v187
  %v230 = vpop.xlane.xlu0 %229
  %231 = vadd.xlane.f32.xlu0 %v188
  %v232 = vpop.xlane.xlu0 %231
  %233 = vadd.xlane.f32.xlu0 %v189
  %v234 = vpop.xlane.xlu0 %233
  %235 = vadd.xlane.f32.xlu0 %v190
  %v236 = vpop.xlane.xlu0 %235
  %237 = vadd.xlane.f32.xlu0 %v191
  %v238 = vpop.xlane.xlu0 %237
  %239 = vadd.xlane.f32.xlu0 %v192
  %v240 = vpop.xlane.xlu0 %239
  %241 = vadd.xlane.f32.xlu0 %v193
  %v242 = vpop.xlane.xlu0 %241
  %243 = vadd.xlane.f32.xlu0 %v194
  %v244 = vpop.xlane.xlu0 %243
  %245 = vadd.xlane.f32.xlu0 %v195
  %v246 = vpop.xlane.xlu0 %245
  %247 = vadd.xlane.f32.xlu0 %v196
  %v248 = vpop.xlane.xlu0 %247
  %249 = vadd.xlane.f32.xlu0 %v197
  %v250 = vpop.xlane.xlu0 %249
  %251 = vadd.xlane.f32.xlu0 %v198
  %v252 = vpop.xlane.xlu0 %251
  %253 = vadd.xlane.f32.xlu0 %v199
  %v254 = vpop.xlane.xlu0 %253
  %255 = vadd.xlane.f32.xlu0 %v200
  %v256 = vpop.xlane.xlu0 %255
  %257 = vadd.xlane.f32.xlu0 %v201
  %v258 = vpop.xlane.xlu0 %257
  %259 = vadd.xlane.f32.xlu0 %v202
  %v260 = vpop.xlane.xlu0 %259
  %261 = vadd.xlane.f32.xlu0 %v203
  %v262 = vpop.xlane.xlu0 %261
  %263 = vadd.xlane.f32.xlu0 %v204
  %v264 = vpop.xlane.xlu0 %263
  %265 = vadd.xlane.f32.xlu0 %v205
  %v266 = vpop.xlane.xlu0 %265
  %267 = vadd.xlane.f32.xlu0 %v206
  %v268 = vpop.xlane.xlu0 %267
  %269 = vadd.xlane.f32.xlu0 %v207
  %v270 = vpop.xlane.xlu0 %269
  %271 = vadd.xlane.f32.xlu0 %v208
  %v272 = vpop.xlane.xlu0 %271
  %v273 = vmul.f32 %v210, %v112
  %v274 = vmul.f32 %v212, %v112
  %v275 = vmul.f32 %v214, %v112
  %v276 = vmul.f32 %v216, %v112
  %v277 = vmul.f32 %v218, %v112
  %v278 = vmul.f32 %v220, %v112
  %v279 = vmul.f32 %v222, %v112
  %v280 = vmul.f32 %v224, %v112
  %v281 = vmul.f32 %v226, %v112
  %v282 = vmul.f32 %v228, %v112
  %v283 = vmul.f32 %v230, %v112
  %v284 = vmul.f32 %v232, %v112
  %v285 = vmul.f32 %v234, %v112
  %v286 = vmul.f32 %v236, %v112
  %v287 = vmul.f32 %v238, %v112
  %v288 = vmul.f32 %v240, %v112
  %v289 = vmul.f32 %v242, %v112
  %v290 = vmul.f32 %v244, %v112
  %v291 = vmul.f32 %v246, %v112
  %v292 = vmul.f32 %v248, %v112
  %v293 = vmul.f32 %v250, %v112
  %v294 = vmul.f32 %v252, %v112
  %v295 = vmul.f32 %v254, %v112
  %v296 = vmul.f32 %v256, %v112
  %v297 = vmul.f32 %v258, %v112
  %v298 = vmul.f32 %v260, %v112
  %v299 = vmul.f32 %v262, %v112
  %v300 = vmul.f32 %v264, %v112
  %v301 = vmul.f32 %v266, %v112
  %v302 = vmul.f32 %v268, %v112
  %v303 = vmul.f32 %v270, %v112
  %v304 = vmul.f32 %v272, %v112
  %v305 = vadd.f32 %v273, 1e-12
  %v306 = vadd.f32 %v274, 1e-12
  %v307 = vadd.f32 %v275, 1e-12
  %v308 = vadd.f32 %v276, 1e-12
  %v309 = vadd.f32 %v277, 1e-12
  %v310 = vadd.f32 %v278, 1e-12
  %v311 = vadd.f32 %v279, 1e-12
  %v312 = vadd.f32 %v280, 1e-12
  %v313 = vadd.f32 %v281, 1e-12
  %v314 = vadd.f32 %v282, 1e-12
  %v315 = vadd.f32 %v283, 1e-12
  %v316 = vadd.f32 %v284, 1e-12
  %v317 = vadd.f32 %v285, 1e-12
  %v318 = vadd.f32 %v286, 1e-12
  %v319 = vadd.f32 %v287, 1e-12
  %v320 = vadd.f32 %v288, 1e-12
  %v321 = vadd.f32 %v289, 1e-12
  %v322 = vadd.f32 %v290, 1e-12
  %v323 = vadd.f32 %v291, 1e-12
  %v324 = vadd.f32 %v292, 1e-12
  %v325 = vadd.f32 %v293, 1e-12
  %v326 = vadd.f32 %v294, 1e-12
  %v327 = vadd.f32 %v295, 1e-12
  %v328 = vadd.f32 %v296, 1e-12
  %v329 = vadd.f32 %v297, 1e-12
  %v330 = vadd.f32 %v298, 1e-12
  %v331 = vadd.f32 %v299, 1e-12
  %v332 = vadd.f32 %v300, 1e-12
  %v333 = vadd.f32 %v301, 1e-12
  %v334 = vadd.f32 %v302, 1e-12
  %v335 = vadd.f32 %v303, 1e-12
  %v336 = vadd.f32 %v304, 1e-12
  %v337 = vrsqrt.pop %v305
  %v338 = vrsqrt.pop %v306
  %v339 = vrsqrt.pop %v307
  %v340 = vrsqrt.pop %v308
  %v341 = vrsqrt.pop %v309
  %v342 = vrsqrt.pop %v310
  %v343 = vrsqrt.pop %v311
  %v344 = vrsqrt.pop %v312
  %v345 = vrsqrt.pop %v313
  %v346 = vrsqrt.pop %v314
  %v347 = vrsqrt.pop %v315
  %v348 = vrsqrt.pop %v316
  %v349 = vrsqrt.pop %v317
  %v350 = vrsqrt.pop %v318
  %v351 = vrsqrt.pop %v319
  %v352 = vrsqrt.pop %v320
  %v353 = vrsqrt.pop %v321
  %v354 = vrsqrt.pop %v322
  %v355 = vrsqrt.pop %v323
  %v356 = vrsqrt.pop %v324
  %v357 = vrsqrt.pop %v325
  %v358 = vrsqrt.pop %v326
  %v359 = vrsqrt.pop %v327
  %v360 = vrsqrt.pop %v328
  %v361 = vrsqrt.pop %v329
  %v362 = vrsqrt.pop %v330
  %v363 = vrsqrt.pop %v331
  %v364 = vrsqrt.pop %v332
  %v365 = vrsqrt.pop %v333
  %v366 = vrsqrt.pop %v334
  %v367 = vrsqrt.pop %v335
  %v368 = vrsqrt.pop %v336
  %v369 = vmul.f32 %v145, %v337
  %v370 = vmul.f32 %v146, %v338
  %v371 = vmul.f32 %v147, %v339
  %v372 = vmul.f32 %v148, %v340
  %v373 = vmul.f32 %v149, %v341
  %v374 = vmul.f32 %v150, %v342
  %v375 = vmul.f32 %v151, %v343
  %v376 = vmul.f32 %v152, %v344
  %v377 = vmul.f32 %v153, %v345
  %v378 = vmul.f32 %v154, %v346
  %v379 = vmul.f32 %v155, %v347
  %v380 = vmul.f32 %v156, %v348
  %v381 = vmul.f32 %v157, %v349
  %v382 = vmul.f32 %v158, %v350
  %v383 = vmul.f32 %v159, %v351
  %v384 = vmul.f32 %v160, %v352
  %v385 = vmul.f32 %v161, %v353
  %v386 = vmul.f32 %v162, %v354
  %v387 = vmul.f32 %v163, %v355
  %v388 = vmul.f32 %v164, %v356
  %v389 = vmul.f32 %v165, %v357
  %v390 = vmul.f32 %v166, %v358
  %v391 = vmul.f32 %v167, %v359
  %v392 = vmul.f32 %v168, %v360
  %v393 = vmul.f32 %v169, %v361
  %v394 = vmul.f32 %v170, %v362
  %v395 = vmul.f32 %v171, %v363
  %v396 = vmul.f32 %v172, %v364
  %v397 = vmul.f32 %v173, %v365
  %v398 = vmul.f32 %v174, %v366
  %v399 = vmul.f32 %v175, %v367
  %v400 = vmul.f32 %v176, %v368
  %v402 = vlaneseq
  %v403 = vshrl.u32 %v402, 7
  %v404 = vsub.s32 0, %v403
  %v405 = vrot.slane %v46, %v404
  %v407 = vmul.f32 %v369, %v405
  %v408 = vmul.f32 %v370, %v405
  %v409 = vmul.f32 %v371, %v405
  %v410 = vmul.f32 %v372, %v405
  %v411 = vmul.f32 %v373, %v405
  %v412 = vmul.f32 %v374, %v405
  %v413 = vmul.f32 %v375, %v405
  %v414 = vmul.f32 %v376, %v405
  %v415 = vmul.f32 %v377, %v405
  %v416 = vmul.f32 %v378, %v405
  %v417 = vmul.f32 %v379, %v405
  %v418 = vmul.f32 %v380, %v405
  %v419 = vmul.f32 %v381, %v405
  %v420 = vmul.f32 %v382, %v405
  %v421 = vmul.f32 %v383, %v405
  %v422 = vmul.f32 %v384, %v405
  %v423 = vmul.f32 %v385, %v405
  %v424 = vmul.f32 %v386, %v405
  %v425 = vmul.f32 %v387, %v405
  %v426 = vmul.f32 %v388, %v405
  %v427 = vmul.f32 %v389, %v405
  %v428 = vmul.f32 %v390, %v405
  %v429 = vmul.f32 %v391, %v405
  %v430 = vmul.f32 %v392, %v405
  %v431 = vmul.f32 %v393, %v405
  %v432 = vmul.f32 %v394, %v405
  %v433 = vmul.f32 %v395, %v405
  %v434 = vmul.f32 %v396, %v405
  %v435 = vmul.f32 %v397, %v405
  %v436 = vmul.f32 %v398, %v405
  %v437 = vmul.f32 %v399, %v405
  %v438 = vmul.f32 %v400, %v405
  %v440 = vlaneseq
  %v441 = vshrl.u32 %v440, 7
  %v442 = vsub.s32 0, %v441
  %v443 = vrot.slane %v47, %v442
  %v445 = vadd.f32 %v407, %v443
  %v446 = vadd.f32 %v408, %v443
  %v447 = vadd.f32 %v409, %v443
  %v448 = vadd.f32 %v410, %v443
  %v449 = vadd.f32 %v411, %v443
  %v450 = vadd.f32 %v412, %v443
  %v451 = vadd.f32 %v413, %v443
  %v452 = vadd.f32 %v414, %v443
  %v453 = vadd.f32 %v415, %v443
  %v454 = vadd.f32 %v416, %v443
  %v455 = vadd.f32 %v417, %v443
  %v456 = vadd.f32 %v418, %v443
  %v457 = vadd.f32 %v419, %v443
  %v458 = vadd.f32 %v420, %v443
  %v459 = vadd.f32 %v421, %v443
  %v460 = vadd.f32 %v422, %v443
  %v461 = vadd.f32 %v423, %v443
  %v462 = vadd.f32 %v424, %v443
  %v463 = vadd.f32 %v425, %v443
  %v464 = vadd.f32 %v426, %v443
  %v465 = vadd.f32 %v427, %v443
  %v466 = vadd.f32 %v428, %v443
  %v467 = vadd.f32 %v429, %v443
  %v468 = vadd.f32 %v430, %v443
  %v469 = vadd.f32 %v431, %v443
  %v470 = vadd.f32 %v432, %v443
  %v471 = vadd.f32 %v433, %v443
  %v472 = vadd.f32 %v434, %v443
  %v473 = vadd.f32 %v435, %v443
  %v474 = vadd.f32 %v436, %v443
  %v475 = vadd.f32 %v437, %v443
  %v476 = vadd.f32 %v438, %v443
  %477 = vst [vmem:[%s3] sm:$0xff] %v445
  %478 = vst [vmem:[%s3 + $0x8] sm:$0xff] %v446
  %479 = vst [vmem:[%s3 + $0x10] sm:$0xff] %v447
  %480 = vst [vmem:[%s3 + $0x18] sm:$0xff] %v448
  %481 = vst [vmem:[%s3 + $0x20] sm:$0xff] %v449
  %482 = vst [vmem:[%s3 + $0x28] sm:$0xff] %v450
  %483 = vst [vmem:[%s3 + $0x30] sm:$0xff] %v451
  %484 = vst [vmem:[%s3 + $0x38] sm:$0xff] %v452
  %485 = vst [vmem:[%s3 + $0x40] sm:$0xff] %v453
  %486 = vst [vmem:[%s3 + $0x48] sm:$0xff] %v454
  %487 = vst [vmem:[%s3 + $0x50] sm:$0xff] %v455
  %488 = vst [vmem:[%s3 + $0x58] sm:$0xff] %v456
  %489 = vst [vmem:[%s3 + $0x60] sm:$0xff] %v457
  %490 = vst [vmem:[%s3 + $0x68] sm:$0xff] %v458
  %491 = vst [vmem:[%s3 + $0x70] sm:$0xff] %v459
  %492 = vst [vmem:[%s3 + $0x78] sm:$0xff] %v460
  %493 = vst [vmem:[%s3 + $0x80] sm:$0xff] %v461
  %494 = vst [vmem:[%s3 + $0x88] sm:$0xff] %v462
  %495 = vst [vmem:[%s3 + $0x90] sm:$0xff] %v463
  %496 = vst [vmem:[%s3 + $0x98] sm:$0xff] %v464
  %497 = vst [vmem:[%s3 + $0xa0] sm:$0xff] %v465
  %498 = vst [vmem:[%s3 + $0xa8] sm:$0xff] %v466
  %499 = vst [vmem:[%s3 + $0xb0] sm:$0xff] %v467
  %500 = vst [vmem:[%s3 + $0xb8] sm:$0xff] %v468
  %501 = vst [vmem:[%s3 + $0xc0] sm:$0xff] %v469
  %502 = vst [vmem:[%s3 + $0xc8] sm:$0xff] %v470
  %503 = vst [vmem:[%s3 + $0xd0] sm:$0xff] %v471
  %504 = vst [vmem:[%s3 + $0xd8] sm:$0xff] %v472
  %505 = vst [vmem:[%s3 + $0xe0] sm:$0xff] %v473
  %506 = vst [vmem:[%s3 + $0xe8] sm:$0xff] %v474
  %507 = vst [vmem:[%s3 + $0xf0] sm:$0xff] %v475
  %508 = vst [vmem:[%s3 + $0xf8] sm:$0xff] %v476
  // Predicated region
  $region14: #{bert_encoder_forward.4} parent=0 // pred_check
    _
  $region15: #{bert_encoder_forward.4} parent=0 // pred_check_branch
    %510 = sbr.rel (0) target = $region17
  $region16: #{bert_encoder_forward.4} parent=0 // pred_region
    _
  $region17: #{bert_encoder_forward.4} parent=0 // pred_fallthru
    _
  // Predicated region
  $region18: #{bert_encoder_forward.4} parent=0 // pred_check
    _
  $region19: #{bert_encoder_forward.4} parent=0 // pred_check_branch
    %512 = sbr.rel (0) target = $region21
  $region20: #{bert_encoder_forward.4} parent=0 // pred_region
    _
  $region21: #{bert_encoder_forward.4} parent=0 // pred_fallthru
    _

// kernel: bert_encoder_forward.5
$region0: #{bert_encoder_forward.5}
  #allocation0 [shape = 'u32[]', space=smem, size = 0x4, offset = 0x4, fixed_abs, tag = 'smem constant byte address 0x4 - core index']
  #allocation1 [shape = 'u32[144,128]{1,0:T(1,128)}', space=vmem, size = 0x12000, scoped, tag = 'internal scratch']
  %s0 = inlined_call_operand.vmem [shape: f32[2,128,128], index: 0, kind: input, shape index: {}]
  %s1 = inlined_call_operand.vmem [shape: f32[2,1,128], index: 1, kind: input, shape index: {}]
  %s2 = inlined_call_operand.vmem [shape: f32[128,384], index: 2, kind: input, shape index: {}]
  %s3 = inlined_call_operand.vmem [shape: f32[1,384], index: 3, kind: input, shape index: {}]
  %s4 = inlined_call_operand.vmem [shape: f32[128,128], index: 4, kind: input, shape index: {}]
  %s5 = inlined_call_operand.vmem [shape: f32[1,128], index: 5, kind: input, shape index: {}]
  %s6 = inlined_call_operand.vmem [shape: f32[1,128], index: 6, kind: input, shape index: {}]
  %s7 = inlined_call_operand.vmem [shape: f32[1,128], index: 7, kind: input, shape index: {}]
  %s8 = inlined_call_operand.vmem [shape: f32[128,512], index: 8, kind: input, shape index: {}]
  %s9 = inlined_call_operand.vmem [shape: f32[1,512], index: 9, kind: input, shape index: {}]
  %s10 = inlined_call_operand.vmem [shape: f32[512,128], index: 10, kind: input, shape index: {}]
  %s11 = inlined_call_operand.vmem [shape: f32[1,128], index: 11, kind: input, shape index: {}]
  %s12 = inlined_call_operand.vmem [shape: f32[1,128], index: 12, kind: input, shape index: {}]
  %s13 = inlined_call_operand.vmem [shape: f32[1,128], index: 13, kind: input, shape index: {}]
  %s14 = inlined_call_operand.vmem [shape: f32[2,128,128], index: 14, kind: output, shape index: {}]
  %s15 = sld [smem:[#allocation0]]
  $region89: #{bert_encoder_forward.5} parent=0
    _
  %s17 = ssub.s32 1, %s15
  %s18 = scalar_select 0, %s17, %s15
  loop: start=0, step=1, limit=4
  $region2: #{bert_encoder_forward.5} parent=0 // loop_pre_header
    _
  $region3: #{bert_encoder_forward.5} parent=0 // loop_header
    %s20 = sphi 0, %s24
    %p21 = scmp.ge.s32.totalorder %s20, 4
    %s30 = sphi 0, %s32
    %s33 = sphi 0, %s30
    %s34 = sphi 0, %s33
    %s50 = sphi 0, %s34
    %s56 = sphi 0, %s58
    %s59 = sphi 0, %s56
    %s60 = sphi 0, %s59
    %s76 = sphi 0, %s60
    %s80 = sphi 0, %s80
    %s82 = sphi 0, %s80
    %s83 = sphi 0, %s82
    %s97 = sphi 0, %s83
    %s101 = sphi 0, %s101
    %s103 = sphi 0, %s101
    %s104 = sphi 0, %s103
    %s118 = sphi 0, %s104
    %s122 = sphi 0, %s122
    %s124 = sphi 0, %s122
    %s125 = sphi 0, %s124
    %s139 = sphi 0, %s125
    %s143 = sphi 0, %s143
    %s145 = sphi 0, %s143
    %s146 = sphi 0, %s145
    %s160 = sphi 0, %s146
    %s164 = sphi 0, %s164
    %s166 = sphi 0, %s164
    %s167 = sphi 0, %s166
    %s181 = sphi 0, %s167
    %s185 = sphi 0, %s185
    %s187 = sphi 0, %s185
    %s188 = sphi 0, %s187
    %s202 = sphi 0, %s188
    %s206 = sphi 0, %s206
    %s208 = sphi 0, %s206
    %s209 = sphi 0, %s208
    %s223 = sphi 0, %s209
    %s227 = sphi 0, %s227
    %s229 = sphi 0, %s227
    %s230 = sphi 0, %s229
    %s244 = sphi 0, %s230
    %s248 = sphi 0, %s248
    %s250 = sphi 0, %s248
    %s251 = sphi 0, %s250
    %s265 = sphi 0, %s251
    %s269 = sphi 0, %s269
    %s271 = sphi 0, %s269
    %s272 = sphi 0, %s271
    %s286 = sphi 0, %s272
    %s290 = sphi 0, %s290
    %s292 = sphi 0, %s290
    %s293 = sphi 0, %s292
    %s307 = sphi 0, %s293
    %s311 = sphi 0, %s311
    %s313 = sphi 0, %s311
    %s314 = sphi 0, %s313
    %s328 = sphi 0, %s314
    %s334 = sphi 0, %s336
    %s337 = sphi 0, %s334
    %s338 = sphi 0, %s337
    %s354 = sphi 0, %s338
  $region4: #{bert_encoder_forward.5} parent=0 // loop_header_branch
    %23 = sbr.rel (%p21) target = $region8
  $region5: #{bert_encoder_forward.5} parent=0 // loop_body
    %s25 = ssub.s32 %s20, 1
    %s26 = ssub.s32 %s20, 2
    %s27 = sadd.s32 %s20, 1
    %s28 = ssub.s32 %s20, %s27
    %p29 = scmp.eq.s32.totalorder %s28, 0
    %s31 = sadd.s32 %s30, 1
    %s32 = scalar_select %p29, %s30, %s31
    %p35 = pneg %p29
    %p36 = scmp.eq.s32.totalorder %s20, 1
    %p37 = por %p35, %p36
    %p38 = scmp.ne.s32.totalorder %s30, %s33
    %p39 = scmp.eq.s32.totalorder %s20, 0
    %p40 = por %p38, %p39
    %p41 = scmp.ne.s32.totalorder %s30, %s33
    %p42 = scmp.eq.s32.totalorder %s25, 1
    %p43 = por %p41, %p42
    %p44 = scmp.ne.s32.totalorder %s33, %s34
    %p45 = scmp.eq.s32.totalorder %s25, 0
    %p46 = por %p44, %p45
    %p47 = scmp.ne.s32.totalorder %s33, %s34
    %p48 = scmp.eq.s32.totalorder %s26, 1
    %p49 = por %p47, %p48
    %p51 = scmp.ne.s32.totalorder %s34, %s50
    %p52 = scmp.eq.s32.totalorder %s26, 0
    %p53 = por %p51, %p52
    %s54 = ssub.s32 %s20, %s27
    %p55 = scmp.eq.s32.totalorder %s54, 0
    %s57 = sadd.s32 %s56, 1
    %s58 = scalar_select %p55, %s56, %s57
    %p61 = pneg %p55
    %p62 = scmp.eq.s32.totalorder %s20, 1
    %p63 = por %p61, %p62
    %p64 = scmp.ne.s32.totalorder %s56, %s59
    %p65 = scmp.eq.s32.totalorder %s20, 0
    %p66 = por %p64, %p65
    %p67 = scmp.ne.s32.totalorder %s56, %s59
    %p68 = scmp.eq.s32.totalorder %s25, 1
    %p69 = por %p67, %p68
    %p70 = scmp.ne.s32.totalorder %s59, %s60
    %p71 = scmp.eq.s32.totalorder %s25, 0
    %p72 = por %p70, %p71
    %p73 = scmp.ne.s32.totalorder %s59, %s60
    %p74 = scmp.eq.s32.totalorder %s26, 1
    %p75 = por %p73, %p74
    %p77 = scmp.ne.s32.totalorder %s60, %s76
    %p78 = scmp.eq.s32.totalorder %s26, 0
    %p79 = por %p77, %p78
    %s81 = sadd.s32 %s80, 1
    %p84 = scmp.eq.s32.totalorder %s20, 1
    %p85 = scmp.ne.s32.totalorder %s80, %s82
    %p86 = scmp.eq.s32.totalorder %s20, 0
    %p87 = por %p85, %p86
    %p88 = scmp.ne.s32.totalorder %s80, %s82
    %p89 = scmp.eq.s32.totalorder %s25, 1
    %p90 = por %p88, %p89
    %p91 = scmp.ne.s32.totalorder %s82, %s83
    %p92 = scmp.eq.s32.totalorder %s25, 0
    %p93 = por %p91, %p92
    %p94 = scmp.ne.s32.totalorder %s82, %s83
    %p95 = scmp.eq.s32.totalorder %s26, 1
    %p96 = por %p94, %p95
    %p98 = scmp.ne.s32.totalorder %s83, %s97
    %p99 = scmp.eq.s32.totalorder %s26, 0
    %p100 = por %p98, %p99
    %s102 = sadd.s32 %s101, 1
    %p105 = scmp.eq.s32.totalorder %s20, 1
    %p106 = scmp.ne.s32.totalorder %s101, %s103
    %p107 = scmp.eq.s32.totalorder %s20, 0
    %p108 = por %p106, %p107
    %p109 = scmp.ne.s32.totalorder %s101, %s103
    %p110 = scmp.eq.s32.totalorder %s25, 1
    %p111 = por %p109, %p110
    %p112 = scmp.ne.s32.totalorder %s103, %s104
    %p113 = scmp.eq.s32.totalorder %s25, 0
    %p114 = por %p112, %p113
    %p115 = scmp.ne.s32.totalorder %s103, %s104
    %p116 = scmp.eq.s32.totalorder %s26, 1
    %p117 = por %p115, %p116
    %p119 = scmp.ne.s32.totalorder %s104, %s118
    %p120 = scmp.eq.s32.totalorder %s26, 0
    %p121 = por %p119, %p120
    %s123 = sadd.s32 %s122, 1
    %p126 = scmp.eq.s32.totalorder %s20, 1
    %p127 = scmp.ne.s32.totalorder %s122, %s124
    %p128 = scmp.eq.s32.totalorder %s20, 0
    %p129 = por %p127, %p128
    %p130 = scmp.ne.s32.totalorder %s122, %s124
    %p131 = scmp.eq.s32.totalorder %s25, 1
    %p132 = por %p130, %p131
    %p133 = scmp.ne.s32.totalorder %s124, %s125
    %p134 = scmp.eq.s32.totalorder %s25, 0
    %p135 = por %p133, %p134
    %p136 = scmp.ne.s32.totalorder %s124, %s125
    %p137 = scmp.eq.s32.totalorder %s26, 1
    %p138 = por %p136, %p137
    %p140 = scmp.ne.s32.totalorder %s125, %s139
    %p141 = scmp.eq.s32.totalorder %s26, 0
    %p142 = por %p140, %p141
    %s144 = sadd.s32 %s143, 1
    %p147 = scmp.eq.s32.totalorder %s20, 1
    %p148 = scmp.ne.s32.totalorder %s143, %s145
    %p149 = scmp.eq.s32.totalorder %s20, 0
    %p150 = por %p148, %p149
    %p151 = scmp.ne.s32.totalorder %s143, %s145
    %p152 = scmp.eq.s32.totalorder %s25, 1
    %p153 = por %p151, %p152
    %p154 = scmp.ne.s32.totalorder %s145, %s146
    %p155 = scmp.eq.s32.totalorder %s25, 0
    %p156 = por %p154, %p155
    %p157 = scmp.ne.s32.totalorder %s145, %s146
    %p158 = scmp.eq.s32.totalorder %s26, 1
    %p159 = por %p157, %p158
    %p161 = scmp.ne.s32.totalorder %s146, %s160
    %p162 = scmp.eq.s32.totalorder %s26, 0
    %p163 = por %p161, %p162
    %s165 = sadd.s32 %s164, 1
    %p168 = scmp.eq.s32.totalorder %s20, 1
    %p169 = scmp.ne.s32.totalorder %s164, %s166
    %p170 = scmp.eq.s32.totalorder %s20, 0
    %p171 = por %p169, %p170
    %p172 = scmp.ne.s32.totalorder %s164, %s166
    %p173 = scmp.eq.s32.totalorder %s25, 1
    %p174 = por %p172, %p173
    %p175 = scmp.ne.s32.totalorder %s166, %s167
    %p176 = scmp.eq.s32.totalorder %s25, 0
    %p177 = por %p175, %p176
    %p178 = scmp.ne.s32.totalorder %s166, %s167
    %p179 = scmp.eq.s32.totalorder %s26, 1
    %p180 = por %p178, %p179
    %p182 = scmp.ne.s32.totalorder %s167, %s181
    %p183 = scmp.eq.s32.totalorder %s26, 0
    %p184 = por %p182, %p183
    %s186 = sadd.s32 %s185, 1
    %p189 = scmp.eq.s32.totalorder %s20, 1
    %p190 = scmp.ne.s32.totalorder %s185, %s187
    %p191 = scmp.eq.s32.totalorder %s20, 0
    %p192 = por %p190, %p191
    %p193 = scmp.ne.s32.totalorder %s185, %s187
    %p194 = scmp.eq.s32.totalorder %s25, 1
    %p195 = por %p193, %p194
    %p196 = scmp.ne.s32.totalorder %s187, %s188
    %p197 = scmp.eq.s32.totalorder %s25, 0
    %p198 = por %p196, %p197
    %p199 = scmp.ne.s32.totalorder %s187, %s188
    %p200 = scmp.eq.s32.totalorder %s26, 1
    %p201 = por %p199, %p200
    %p203 = scmp.ne.s32.totalorder %s188, %s202
    %p204 = scmp.eq.s32.totalorder %s26, 0
    %p205 = por %p203, %p204
    %s207 = sadd.s32 %s206, 1
    %p210 = scmp.eq.s32.totalorder %s20, 1
    %p211 = scmp.ne.s32.totalorder %s206, %s208
    %p212 = scmp.eq.s32.totalorder %s20, 0
    %p213 = por %p211, %p212
    %p214 = scmp.ne.s32.totalorder %s206, %s208
    %p215 = scmp.eq.s32.totalorder %s25, 1
    %p216 = por %p214, %p215
    %p217 = scmp.ne.s32.totalorder %s208, %s209
    %p218 = scmp.eq.s32.totalorder %s25, 0
    %p219 = por %p217, %p218
    %p220 = scmp.ne.s32.totalorder %s208, %s209
    %p221 = scmp.eq.s32.totalorder %s26, 1
    %p222 = por %p220, %p221
    %p224 = scmp.ne.s32.totalorder %s209, %s223
    %p225 = scmp.eq.s32.totalorder %s26, 0
    %p226 = por %p224, %p225
    %s228 = sadd.s32 %s227, 1
    %p231 = scmp.eq.s32.totalorder %s20, 1
    %p232 = scmp.ne.s32.totalorder %s227, %s229
    %p233 = scmp.eq.s32.totalorder %s20, 0
    %p234 = por %p232, %p233
    %p235 = scmp.ne.s32.totalorder %s227, %s229
    %p236 = scmp.eq.s32.totalorder %s25, 1
    %p237 = por %p235, %p236
    %p238 = scmp.ne.s32.totalorder %s229, %s230
    %p239 = scmp.eq.s32.totalorder %s25, 0
    %p240 = por %p238, %p239
    %p241 = scmp.ne.s32.totalorder %s229, %s230
    %p242 = scmp.eq.s32.totalorder %s26, 1
    %p243 = por %p241, %p242
    %p245 = scmp.ne.s32.totalorder %s230, %s244
    %p246 = scmp.eq.s32.totalorder %s26, 0
    %p247 = por %p245, %p246
    %s249 = sadd.s32 %s248, 1
    %p252 = scmp.eq.s32.totalorder %s20, 1
    %p253 = scmp.ne.s32.totalorder %s248, %s250
    %p254 = scmp.eq.s32.totalorder %s20, 0
    %p255 = por %p253, %p254
    %p256 = scmp.ne.s32.totalorder %s248, %s250
    %p257 = scmp.eq.s32.totalorder %s25, 1
    %p258 = por %p256, %p257
    %p259 = scmp.ne.s32.totalorder %s250, %s251
    %p260 = scmp.eq.s32.totalorder %s25, 0
    %p261 = por %p259, %p260
    %p262 = scmp.ne.s32.totalorder %s250, %s251
    %p263 = scmp.eq.s32.totalorder %s26, 1
    %p264 = por %p262, %p263
    %p266 = scmp.ne.s32.totalorder %s251, %s265
    %p267 = scmp.eq.s32.totalorder %s26, 0
    %p268 = por %p266, %p267
    %s270 = sadd.s32 %s269, 1
    %p273 = scmp.eq.s32.totalorder %s20, 1
    %p274 = scmp.ne.s32.totalorder %s269, %s271
    %p275 = scmp.eq.s32.totalorder %s20, 0
    %p276 = por %p274, %p275
    %p277 = scmp.ne.s32.totalorder %s269, %s271
    %p278 = scmp.eq.s32.totalorder %s25, 1
    %p279 = por %p277, %p278
    %p280 = scmp.ne.s32.totalorder %s271, %s272
    %p281 = scmp.eq.s32.totalorder %s25, 0
    %p282 = por %p280, %p281
    %p283 = scmp.ne.s32.totalorder %s271, %s272
    %p284 = scmp.eq.s32.totalorder %s26, 1
    %p285 = por %p283, %p284
    %p287 = scmp.ne.s32.totalorder %s272, %s286
    %p288 = scmp.eq.s32.totalorder %s26, 0
    %p289 = por %p287, %p288
    %s291 = sadd.s32 %s290, 1
    %p294 = scmp.eq.s32.totalorder %s20, 1
    %p295 = scmp.ne.s32.totalorder %s290, %s292
    %p296 = scmp.eq.s32.totalorder %s20, 0
    %p297 = por %p295, %p296
    %p298 = scmp.ne.s32.totalorder %s290, %s292
    %p299 = scmp.eq.s32.totalorder %s25, 1
    %p300 = por %p298, %p299
    %p301 = scmp.ne.s32.totalorder %s292, %s293
    %p302 = scmp.eq.s32.totalorder %s25, 0
    %p303 = por %p301, %p302
    %p304 = scmp.ne.s32.totalorder %s292, %s293
    %p305 = scmp.eq.s32.totalorder %s26, 1
    %p306 = por %p304, %p305
    %p308 = scmp.ne.s32.totalorder %s293, %s307
    %p309 = scmp.eq.s32.totalorder %s26, 0
    %p310 = por %p308, %p309
    %s312 = sadd.s32 %s311, 1
    %p315 = scmp.eq.s32.totalorder %s20, 1
    %p316 = scmp.ne.s32.totalorder %s311, %s313
    %p317 = scmp.eq.s32.totalorder %s20, 0
    %p318 = por %p316, %p317
    %p319 = scmp.ne.s32.totalorder %s311, %s313
    %p320 = scmp.eq.s32.totalorder %s25, 1
    %p321 = por %p319, %p320
    %p322 = scmp.ne.s32.totalorder %s313, %s314
    %p323 = scmp.eq.s32.totalorder %s25, 0
    %p324 = por %p322, %p323
    %p325 = scmp.ne.s32.totalorder %s313, %s314
    %p326 = scmp.eq.s32.totalorder %s26, 1
    %p327 = por %p325, %p326
    %p329 = scmp.ne.s32.totalorder %s314, %s328
    %p330 = scmp.eq.s32.totalorder %s26, 0
    %p331 = por %p329, %p330
    %s332 = ssub.s32 %s20, %s27
    %p333 = scmp.eq.s32.totalorder %s332, 0
    %s335 = sadd.s32 %s334, 1
    %s336 = scalar_select %p333, %s334, %s335
    %p339 = pneg %p333
    %p340 = scmp.eq.s32.totalorder %s20, 1
    %p341 = por %p339, %p340
    %p342 = scmp.ne.s32.totalorder %s334, %s337
    %p343 = scmp.eq.s32.totalorder %s20, 0
    %p344 = por %p342, %p343
    %p345 = scmp.ne.s32.totalorder %s334, %s337
    %p346 = scmp.eq.s32.totalorder %s25, 1
    %p347 = por %p345, %p346
    %p348 = scmp.ne.s32.totalorder %s337, %s338
    %p349 = scmp.eq.s32.totalorder %s25, 0
    %p350 = por %p348, %p349
    %p351 = scmp.ne.s32.totalorder %s337, %s338
    %p352 = scmp.eq.s32.totalorder %s26, 1
    %p353 = por %p351, %p352
    %p355 = scmp.ne.s32.totalorder %s338, %s354
    %p356 = scmp.eq.s32.totalorder %s26, 0
    %p357 = por %p355, %p356
    %p358 = scmp.le.s32.totalorder 1, %s20
    %p359 = scmp.lt.s32.totalorder %s20, 3
    %p360 = pnand %p358, %p359
    %p361 = pneg %p360
    // Predicated region
    $region9: #{bert_encoder_forward.5} parent=5 // pred_check
      _
    $region10: #{bert_encoder_forward.5} parent=5 // pred_check_branch
      %363 = sbr.rel (%p360) target = $region12
    $region11: #{bert_encoder_forward.5} parent=5 // pred_region
      %s364 = ssub.s32 %s20, 1
      // Predicated region
      $region13: #{bert_encoder_forward.5} parent=11 // pred_check
        %p365 = pneg %p93
      $region14: #{bert_encoder_forward.5} parent=11 // pred_check_branch
        %367 = sbr.rel (%p365) target = $region16
      $region15: #{bert_encoder_forward.5} parent=11 // pred_region
        _
      $region16: #{bert_encoder_forward.5} parent=11 // pred_fallthru
        _
      // Predicated region
      $region17: #{bert_encoder_forward.5} parent=11 // pred_check
        %p368 = pneg %p114
      $region18: #{bert_encoder_forward.5} parent=11 // pred_check_branch
        %370 = sbr.rel (%p368) target = $region20
      $region19: #{bert_encoder_forward.5} parent=11 // pred_region
        _
      $region20: #{bert_encoder_forward.5} parent=11 // pred_fallthru
        _
      // Predicated region
      $region21: #{bert_encoder_forward.5} parent=11 // pred_check
        %p371 = pneg %p135
      $region22: #{bert_encoder_forward.5} parent=11 // pred_check_branch
        %373 = sbr.rel (%p371) target = $region24
      $region23: #{bert_encoder_forward.5} parent=11 // pred_region
        _
      $region24: #{bert_encoder_forward.5} parent=11 // pred_fallthru
        _
      // Predicated region
      $region25: #{bert_encoder_forward.5} parent=11 // pred_check
        %p374 = pneg %p156
      $region26: #{bert_encoder_forward.5} parent=11 // pred_check_branch
        %376 = sbr.rel (%p374) target = $region28
      $region27: #{bert_encoder_forward.5} parent=11 // pred_region
        _
      $region28: #{bert_encoder_forward.5} parent=11 // pred_fallthru
        _
      // Predicated region
      $region29: #{bert_encoder_forward.5} parent=11 // pred_check
        %p377 = pneg %p177
      $region30: #{bert_encoder_forward.5} parent=11 // pred_check_branch
        %379 = sbr.rel (%p377) target = $region32
      $region31: #{bert_encoder_forward.5} parent=11 // pred_region
        _
      $region32: #{bert_encoder_forward.5} parent=11 // pred_fallthru
        _
      // Predicated region
      $region33: #{bert_encoder_forward.5} parent=11 // pred_check
        %p380 = pneg %p198
      $region34: #{bert_encoder_forward.5} parent=11 // pred_check_branch
        %382 = sbr.rel (%p380) target = $region36
      $region35: #{bert_encoder_forward.5} parent=11 // pred_region
        _
      $region36: #{bert_encoder_forward.5} parent=11 // pred_fallthru
        _
      // Predicated region
      $region37: #{bert_encoder_forward.5} parent=11 // pred_check
        %p383 = pneg %p219
      $region38: #{bert_encoder_forward.5} parent=11 // pred_check_branch
        %385 = sbr.rel (%p383) target = $region40
      $region39: #{bert_encoder_forward.5} parent=11 // pred_region
        _
      $region40: #{bert_encoder_forward.5} parent=11 // pred_fallthru
        _
      // Predicated region
      $region41: #{bert_encoder_forward.5} parent=11 // pred_check
        %p386 = pneg %p240
      $region42: #{bert_encoder_forward.5} parent=11 // pred_check_branch
        %388 = sbr.rel (%p386) target = $region44
      $region43: #{bert_encoder_forward.5} parent=11 // pred_region
        _
      $region44: #{bert_encoder_forward.5} parent=11 // pred_fallthru
        _
      // Predicated region
      $region45: #{bert_encoder_forward.5} parent=11 // pred_check
        %p389 = pneg %p261
      $region46: #{bert_encoder_forward.5} parent=11 // pred_check_branch
        %391 = sbr.rel (%p389) target = $region48
      $region47: #{bert_encoder_forward.5} parent=11 // pred_region
        _
      $region48: #{bert_encoder_forward.5} parent=11 // pred_fallthru
        _
      // Predicated region
      $region49: #{bert_encoder_forward.5} parent=11 // pred_check
        %p392 = pneg %p282
      $region50: #{bert_encoder_forward.5} parent=11 // pred_check_branch
        %394 = sbr.rel (%p392) target = $region52
      $region51: #{bert_encoder_forward.5} parent=11 // pred_region
        _
      $region52: #{bert_encoder_forward.5} parent=11 // pred_fallthru
        _
      // Predicated region
      $region53: #{bert_encoder_forward.5} parent=11 // pred_check
        %p395 = pneg %p303
      $region54: #{bert_encoder_forward.5} parent=11 // pred_check_branch
        %397 = sbr.rel (%p395) target = $region56
      $region55: #{bert_encoder_forward.5} parent=11 // pred_region
        _
      $region56: #{bert_encoder_forward.5} parent=11 // pred_fallthru
        _
      // Predicated region
      $region57: #{bert_encoder_forward.5} parent=11 // pred_check
        %p398 = pneg %p324
      $region58: #{bert_encoder_forward.5} parent=11 // pred_check_branch
        %400 = sbr.rel (%p398) target = $region60
      $region59: #{bert_encoder_forward.5} parent=11 // pred_region
        _
      $region60: #{bert_encoder_forward.5} parent=11 // pred_fallthru
        _
    $region12: #{bert_encoder_forward.5} parent=5 // pred_fallthru
      _
    %p401 = scmp.lt.s32.totalorder %s20, 2
    // Predicated region
    $region61: #{bert_encoder_forward.5} parent=5 // pred_check
      %p402 = pneg %p401
    $region62: #{bert_encoder_forward.5} parent=5 // pred_check_branch
      %404 = sbr.rel (%p402) target = $region64
    $region63: #{bert_encoder_forward.5} parent=5 // pred_region
      // Predicated region
      $region65: #{bert_encoder_forward.5} parent=63 // pred_check
        %p405 = pneg %p40
      $region66: #{bert_encoder_forward.5} parent=63 // pred_check_branch
        %407 = sbr.rel (%p405) target = $region68
      $region67: #{bert_encoder_forward.5} parent=63 // pred_region
        %p408 = scmp.lt.s32.totalorder %s20, 1
        %s409 = scalar_select %p408, %s20, 1
        %s410 = smul.addr %s409, 16
        %s411 = smul.addr %s410, 8
        %s412 = scalar_lea.vmem %s0, %s411
      $region68: #{bert_encoder_forward.5} parent=63 // pred_fallthru
        _
      // Predicated region
      $region69: #{bert_encoder_forward.5} parent=63 // pred_check
        %p413 = pneg %p66
      $region70: #{bert_encoder_forward.5} parent=63 // pred_check_branch
        %415 = sbr.rel (%p413) target = $region72
      $region71: #{bert_encoder_forward.5} parent=63 // pred_region
        %p416 = scmp.lt.s32.totalorder %s20, 1
        %s417 = scalar_select %p416, %s20, 1
        %s418 = scalar_lea.vmem %s1, %s417
      $region72: #{bert_encoder_forward.5} parent=63 // pred_fallthru
        _
    $region64: #{bert_encoder_forward.5} parent=5 // pred_fallthru
      _
    %p419 = scmp.le.s32.totalorder 1, %s20
    %p420 = scmp.lt.s32.totalorder %s20, 3
    %p421 = pnand %p419, %p420
    %p422 = pneg %p421
    // Predicated region
    $region73: #{bert_encoder_forward.5} parent=5 // pred_check
      _
    $region74: #{bert_encoder_forward.5} parent=5 // pred_check_branch
      %424 = sbr.rel (%p421) target = $region76
    $region75: #{bert_encoder_forward.5} parent=5 // pred_region
      %s425 = ssub.s32 %s20, 1
      %p426 = scmp.lt.s32.totalorder %s25, 1
      %s427 = scalar_select %p426, %s25, 1
      %s428 = smul.addr %s427, 16
      %s429 = smul.addr %s428, 8
      %s430 = scalar_lea.vmem %s0, %s429
      %p431 = pneg %p46
      %p432 = pneg %p43
      %p433 = scmp.lt.s32.totalorder %s25, 1
      %s434 = scalar_select %p433, %s25, 1
      %s435 = scalar_lea.vmem %s1, %s434
      %p436 = pneg %p72
      %p437 = pneg %p69
      %p438 = pneg %p93
      %p439 = pneg %p90
      %p440 = pneg %p114
      %p441 = pneg %p111
      %p442 = pneg %p135
      %p443 = pneg %p132
      %p444 = pneg %p156
      %p445 = pneg %p153
      %p446 = pneg %p177
      %p447 = pneg %p174
      %p448 = pneg %p198
      %p449 = pneg %p195
      %p450 = pneg %p219
      %p451 = pneg %p216
      %p452 = pneg %p240
      %p453 = pneg %p237
      %p454 = pneg %p261
      %p455 = pneg %p258
      %p456 = pneg %p282
      %p457 = pneg %p279
      %p458 = pneg %p303
      %p459 = pneg %p300
      %p460 = pneg %p324
      %p461 = pneg %p321
      %p462 = pneg %p350
      %p463 = pneg %p347
      %p464 = scmp.lt.s32.totalorder %s25, 1
      %s465 = scalar_select %p464, %s25, 1
      %s466 = smul.addr %s465, 16
      %s467 = smul.addr %s466, 8
      %s468 = scalar_lea.vmem %s14, %s467
      %p469 = scmp.lt.s32.totalorder %s25, 1
      %s470 = scalar_select %p469, %s25, 1
      %s471 = smul.addr %s470, 16
      %s472 = smul.addr %s471, 8
      %s473 = scalar_lea.vmem %s0, %s472
      %p474 = scmp.lt.s32.totalorder %s25, 1
      %s475 = scalar_select %p474, %s25, 1
      %s476 = scalar_lea.vmem %s1, %s475
      %p477 = scmp.lt.s32.totalorder %s25, 1
      %s478 = scalar_select %p477, %s25, 1
      %s479 = smul.addr %s478, 16
      %s480 = smul.addr %s479, 8
      %s481 = scalar_lea.vmem %s14, %s480
      %v482 = vld [vmem:[%s473] sm:$0xff]
      %v483 = vld [vmem:[%s473 + $0x8] sm:$0xff]
      %v484 = vld [vmem:[%s473 + $0x10] sm:$0xff]
      %v485 = vld [vmem:[%s473 + $0x18] sm:$0xff]
      %v486 = vld [vmem:[%s473 + $0x20] sm:$0xff]
      %v487 = vld [vmem:[%s473 + $0x28] sm:$0xff]
      %v488 = vld [vmem:[%s473 + $0x30] sm:$0xff]
      %v489 = vld [vmem:[%s473 + $0x38] sm:$0xff]
      %v490 = vld [vmem:[%s473 + $0x40] sm:$0xff]
      %v491 = vld [vmem:[%s473 + $0x48] sm:$0xff]
      %v492 = vld [vmem:[%s473 + $0x50] sm:$0xff]
      %v493 = vld [vmem:[%s473 + $0x58] sm:$0xff]
      %v494 = vld [vmem:[%s473 + $0x60] sm:$0xff]
      %v495 = vld [vmem:[%s473 + $0x68] sm:$0xff]
      %v496 = vld [vmem:[%s473 + $0x70] sm:$0xff]
      %v497 = vld [vmem:[%s473 + $0x78] sm:$0xff]
      %v498 = vld [vmem:[%s476] sm:$0x1]
      %v499 = vld [vmem:[%s2] sm:$0xff]
      %v500 = vld [vmem:[%s2 + $0x8] sm:$0xff]
      %v501 = vld [vmem:[%s2 + $0x10] sm:$0xff]
      %v502 = vld [vmem:[%s2 + $0x18] sm:$0xff]
      %v503 = vld [vmem:[%s2 + $0x20] sm:$0xff]
      %v504 = vld [vmem:[%s2 + $0x28] sm:$0xff]
      %v505 = vld [vmem:[%s2 + $0x30] sm:$0xff]
      %v506 = vld [vmem:[%s2 + $0x38] sm:$0xff]
      %v507 = vld [vmem:[%s2 + $0x40] sm:$0xff]
      %v508 = vld [vmem:[%s2 + $0x48] sm:$0xff]
      %v509 = vld [vmem:[%s2 + $0x50] sm:$0xff]
      %v510 = vld [vmem:[%s2 + $0x58] sm:$0xff]
      %v511 = vld [vmem:[%s2 + $0x60] sm:$0xff]
      %v512 = vld [vmem:[%s2 + $0x68] sm:$0xff]
      %v513 = vld [vmem:[%s2 + $0x70] sm:$0xff]
      %v514 = vld [vmem:[%s2 + $0x78] sm:$0xff]
      %v515 = vld [vmem:[%s2 + $0x80] sm:$0xff]
      %v516 = vld [vmem:[%s2 + $0x88] sm:$0xff]
      %v517 = vld [vmem:[%s2 + $0x90] sm:$0xff]
      %v518 = vld [vmem:[%s2 + $0x98] sm:$0xff]
      %v519 = vld [vmem:[%s2 + $0xa0] sm:$0xff]
      %v520 = vld [vmem:[%s2 + $0xa8] sm:$0xff]
      %v521 = vld [vmem:[%s2 + $0xb0] sm:$0xff]
      %v522 = vld [vmem:[%s2 + $0xb8] sm:$0xff]
      %v523 = vld [vmem:[%s2 + $0xc0] sm:$0xff]
      %v524 = vld [vmem:[%s2 + $0xc8] sm:$0xff]
      %v525 = vld [vmem:[%s2 + $0xd0] sm:$0xff]
      %v526 = vld [vmem:[%s2 + $0xd8] sm:$0xff]
      %v527 = vld [vmem:[%s2 + $0xe0] sm:$0xff]
      %v528 = vld [vmem:[%s2 + $0xe8] sm:$0xff]
      %v529 = vld [vmem:[%s2 + $0xf0] sm:$0xff]
      %v530 = vld [vmem:[%s2 + $0xf8] sm:$0xff]
      %v531 = vld [vmem:[%s2 + $0x100] sm:$0xff]
      %v532 = vld [vmem:[%s2 + $0x108] sm:$0xff]
      %v533 = vld [vmem:[%s2 + $0x110] sm:$0xff]
      %v534 = vld [vmem:[%s2 + $0x118] sm:$0xff]
      %v535 = vld [vmem:[%s2 + $0x120] sm:$0xff]
      %v536 = vld [vmem:[%s2 + $0x128] sm:$0xff]
      %v537 = vld [vmem:[%s2 + $0x130] sm:$0xff]
      %v538 = vld [vmem:[%s2 + $0x138] sm:$0xff]
      %v539 = vld [vmem:[%s2 + $0x140] sm:$0xff]
      %v540 = vld [vmem:[%s2 + $0x148] sm:$0xff]
      %v541 = vld [vmem:[%s2 + $0x150] sm:$0xff]
      %v542 = vld [vmem:[%s2 + $0x158] sm:$0xff]
      %v543 = vld [vmem:[%s2 + $0x160] sm:$0xff]
      %v544 = vld [vmem:[%s2 + $0x168] sm:$0xff]
      %v545 = vld [vmem:[%s2 + $0x170] sm:$0xff]
      %v546 = vld [vmem:[%s2 + $0x178] sm:$0xff]
      %v547 = vld [vmem:[%s3] sm:$0x7]
      %v549 = vlaneseq
      %v550 = vshrl.u32 %v549, 7
      %v551 = vsub.s32 0, %v550
      %v552 = vrot.slane %v547, %v551
      %v553 = vlaneseq
      %v554 = vshrl.u32 %v553, 7
      %v555 = vsub.s32 1, %v554
      %v556 = vrot.slane %v547, %v555
      %v557 = vlaneseq
      %v558 = vshrl.u32 %v557, 7
      %v559 = vsub.s32 2, %v558
      %v560 = vrot.slane %v547, %v559
      %564 = vmatprep.subr.mxu0 %v500
      %565 = vmatpush1.msra.mxu0 %v499
      %566 = vmatprep.subr.mxu0 %v503
      %567 = vmatpush1.msra.mxu0 %v502
      %568 = vmatprep.subr.mxu0 %v506
      %569 = vmatpush1.msra.mxu0 %v505
      %570 = vmatprep.subr.mxu0 %v509
      %571 = vmatpush1.msra.mxu0 %v508
      %572 = vmatprep.subr.mxu0 %v512
      %573 = vmatpush1.msra.mxu0 %v511
      %574 = vmatprep.subr.mxu0 %v515
      %575 = vmatpush1.msra.mxu0 %v514
      %576 = vmatprep.subr.mxu0 %v518
      %577 = vmatpush1.msra.mxu0 %v517
      %578 = vmatprep.subr.mxu0 %v521
      %579 = vmatpush1.msra.mxu0 %v520
      %580 = vmatprep.subr.mxu0 %v524
      %581 = vmatpush1.msra.mxu0 %v523
      %582 = vmatprep.subr.mxu0 %v527
      %583 = vmatpush1.msra.mxu0 %v526
      %584 = vmatprep.subr.mxu0 %v530
      %585 = vmatpush1.msra.mxu0 %v529
      %586 = vmatprep.subr.mxu0 %v533
      %587 = vmatpush1.msra.mxu0 %v532
      %588 = vmatprep.subr.mxu0 %v536
      %589 = vmatpush1.msra.mxu0 %v535
      %590 = vmatprep.subr.mxu0 %v539
      %591 = vmatpush1.msra.mxu0 %v538
      %592 = vmatprep.subr.mxu0 %v542
      %593 = vmatpush1.msra.mxu0 %v541
      %594 = vmatprep.subr.mxu0 %v545
      %595 = vmatpush1.msra.mxu0 %v544
      %596 = vmatprep.subr.mxu0 0.0
      %597 = vmatpush1.msra.mxu0 0.0
      %598 = vmatprep.subr.mxu0 0.0
      %599 = vmatpush1.msra.mxu0 0.0
      %600 = vmatprep.subr.mxu0 0.0
      %601 = vmatpush1.msra.mxu0 0.0
      %602 = vmatprep.subr.mxu0 0.0
      %603 = vmatpush1.msra.mxu0 0.0
      %604 = vmatprep.subr.mxu0 0.0
      %605 = vmatpush1.msra.mxu0 0.0
      %606 = vmatprep.subr.mxu0 0.0
      %607 = vmatpush1.msra.mxu0 0.0
      %608 = vmatprep.subr.mxu0 0.0
      %609 = vmatpush1.msra.mxu0 0.0
      %610 = vmatprep.subr.mxu0 0.0
      %611 = vmatpush1.msra.mxu0 0.0
      %612 = vmatprep.subr.mxu0 0.0
      %613 = vmatpush1.msra.mxu0 0.0
      %614 = vmatprep.subr.mxu0 0.0
      %615 = vmatpush1.msra.mxu0 0.0
      %616 = vmatprep.subr.mxu0 0.0
      %617 = vmatpush1.msra.mxu0 0.0
      %618 = vmatprep.subr.mxu0 0.0
      %619 = vmatpush1.msra.mxu0 0.0
      %620 = vmatprep.subr.mxu0 0.0
      %621 = vmatpush1.msra.mxu0 0.0
      %622 = vmatprep.subr.mxu0 0.0
      %623 = vmatpush1.msra.mxu0 0.0
      %624 = vmatprep.subr.mxu0 0.0
      %625 = vmatpush1.msra.mxu0 0.0
      %626 = vmatprep.subr.mxu0 0.0
      %627 = vmatpush1.msra.mxu0 0.0
      %628 = vmatprep.mubr.f32.mxu0 0.0
      %629 = vmatmul.mubr.f32.gmra.mrb[0].mxu0 %v482
      %v630 = vpop.f32.mrb[0].mxu0
      %v631 = vadd.f32 %v552, %v630
      %v632 = vpop.f32.mrb[0].mxu0
      %v633 = vadd.f32 %v556, %v632
      %634 = vmatprep.mubr.f32.mxu0 0.0
      %635 = vmatmul.mubr.f32.gmra.mrb[0].mxu0 %v483
      %v636 = vpop.f32.mrb[0].mxu0
      %v637 = vadd.f32 %v552, %v636
      %v638 = vpop.f32.mrb[0].mxu0
      %v639 = vadd.f32 %v556, %v638
      %640 = vmatprep.mubr.f32.mxu0 0.0
      %641 = vmatmul.mubr.f32.gmra.mrb[0].mxu0 %v484
      %v642 = vpop.f32.mrb[0].mxu0
      %v643 = vadd.f32 %v552, %v642
      %v644 = vpop.f32.mrb[0].mxu0
      %v645 = vadd.f32 %v556, %v644
      %646 = vmatprep.mubr.f32.mxu0 0.0
      %647 = vmatmul.mubr.f32.gmra.mrb[0].mxu0 %v485
      %v648 = vpop.f32.mrb[0].mxu0
      %v649 = vadd.f32 %v552, %v648
      %v650 = vpop.f32.mrb[0].mxu0
      %v651 = vadd.f32 %v556, %v650
      %652 = vmatprep.mubr.f32.mxu0 0.0
      %653 = vmatmul.mubr.f32.gmra.mrb[0].mxu0 %v486
      %v654 = vpop.f32.mrb[0].mxu0
      %v655 = vadd.f32 %v552, %v654
      %v656 = vpop.f32.mrb[0].mxu0
      %v657 = vadd.f32 %v556, %v656
      %658 = vmatprep.mubr.f32.mxu0 0.0
      %659 = vmatmul.mubr.f32.gmra.mrb[0].mxu0 %v487
      %v660 = vpop.f32.mrb[0].mxu0
      %v661 = vadd.f32 %v552, %v660
      %v662 = vpop.f32.mrb[0].mxu0
      %v663 = vadd.f32 %v556, %v662
      %664 = vmatprep.mubr.f32.mxu0 0.0
      %665 = vmatmul.mubr.f32.gmra.mrb[0].mxu0 %v488
      %v666 = vpop.f32.mrb[0].mxu0
      %v667 = vadd.f32 %v552, %v666
      %v668 = vpop.f32.mrb[0].mxu0
      %v669 = vadd.f32 %v556, %v668
      %670 = vmatprep.mubr.f32.mxu0 0.0
      %671 = vmatmul.mubr.f32.gmra.mrb[0].mxu0 %v489
      %v672 = vpop.f32.mrb[0].mxu0
      %v673 = vadd.f32 %v552, %v672
      %v674 = vpop.f32.mrb[0].mxu0
      %v675 = vadd.f32 %v556, %v674
      %676 = vmatprep.mubr.f32.mxu0 0.0
      %677 = vmatmul.mubr.f32.gmra.mrb[0].mxu0 %v490
      %v678 = vpop.f32.mrb[0].mxu0
      %v679 = vadd.f32 %v552, %v678
      %v680 = vpop.f32.mrb[0].mxu0
      %v681 = vadd.f32 %v556, %v680
      %682 = vmatprep.mubr.f32.mxu0 0.0
      %683 = vmatmul.mubr.f32.gmra.mrb[0].mxu0 %v491
      %v684 = vpop.f32.mrb[0].mxu0
      %v685 = vadd.f32 %v552, %v684
      %v686 = vpop.f32.mrb[0].mxu0
      %v687 = vadd.f32 %v556, %v686
      %688 = vmatprep.mubr.f32.mxu0 0.0
      %689 = vmatmul.mubr.f32.gmra.mrb[0].mxu0 %v492
      %v690 = vpop.f32.mrb[0].mxu0
      %v691 = vadd.f32 %v552, %v690
      %v692 = vpop.f32.mrb[0].mxu0
      %v693 = vadd.f32 %v556, %v692
      %694 = vmatprep.mubr.f32.mxu0 0.0
      %695 = vmatmul.mubr.f32.gmra.mrb[0].mxu0 %v493
      %v696 = vpop.f32.mrb[0].mxu0
      %v697 = vadd.f32 %v552, %v696
      %v698 = vpop.f32.mrb[0].mxu0
      %v699 = vadd.f32 %v556, %v698
      %700 = vmatprep.mubr.f32.mxu0 0.0
      %701 = vmatmul.mubr.f32.gmra.mrb[0].mxu0 %v494
      %v702 = vpop.f32.mrb[0].mxu0
      %v703 = vadd.f32 %v552, %v702
      %v704 = vpop.f32.mrb[0].mxu0
      %v705 = vadd.f32 %v556, %v704
      %706 = vmatprep.mubr.f32.mxu0 0.0
      %707 = vmatmul.mubr.f32.gmra.mrb[0].mxu0 %v495
      %v708 = vpop.f32.mrb[0].mxu0
      %v709 = vadd.f32 %v552, %v708
      %v710 = vpop.f32.mrb[0].mxu0
      %v711 = vadd.f32 %v556, %v710
      %712 = vmatprep.mubr.f32.mxu0 0.0
      %713 = vmatmul.mubr.f32.gmra.mrb[0].mxu0 %v496
      %v714 = vpop.f32.mrb[0].mxu0
      %v715 = vadd.f32 %v552, %v714
      %v716 = vpop.f32.mrb[0].mxu0
      %v717 = vadd.f32 %v556, %v716
      %718 = vmatprep.mubr.f32.mxu0 0.0
      %719 = vmatmul.mubr.f32.gmra.mrb[0].mxu0 %v497
      %v720 = vpop.f32.mrb[0].mxu0
      %v721 = vadd.f32 %v552, %v720
      %v722 = vpop.f32.mrb[0].mxu0
      %v723 = vadd.f32 %v556, %v722
      %724 = vdwg.mxu0
      %725 = vmatprep.subr.mxu0 0.0
      %726 = vmatpush1.msra.mxu0 %v501
      %727 = vmatprep.subr.mxu0 0.0
      %728 = vmatpush1.msra.mxu0 %v504
      %729 = vmatprep.subr.mxu0 0.0
      %730 = vmatpush1.msra.mxu0 %v507
      %731 = vmatprep.subr.mxu0 0.0
      %732 = vmatpush1.msra.mxu0 %v510
      %733 = vmatprep.subr.mxu0 0.0
      %734 = vmatpush1.msra.mxu0 %v513
      %735 = vmatprep.subr.mxu0 0.0
      %736 = vmatpush1.msra.mxu0 %v516
      %737 = vmatprep.subr.mxu0 0.0
      %738 = vmatpush1.msra.mxu0 %v519
      %739 = vmatprep.subr.mxu0 0.0
      %740 = vmatpush1.msra.mxu0 %v522
      %741 = vmatprep.subr.mxu0 0.0
      %742 = vmatpush1.msra.mxu0 %v525
      %743 = vmatprep.subr.mxu0 0.0
      %744 = vmatpush1.msra.mxu0 %v528
      %745 = vmatprep.subr.mxu0 0.0
      %746 = vmatpush1.msra.mxu0 %v531
      %747 = vmatprep.subr.mxu0 0.0
      %748 = vmatpush1.msra.mxu0 %v534
      %749 = vmatprep.subr.mxu0 0.0
      %750 = vmatpush1.msra.mxu0 %v537
      %751 = vmatprep.subr.mxu0 0.0
      %752 = vmatpush1.msra.mxu0 %v540
      %753 = vmatprep.subr.mxu0 0.0
      %754 = vmatpush1.msra.mxu0 %v543
      %755 = vmatprep.subr.mxu0 0.0
      %756 = vmatpush1.msra.mxu0 %v546
      %757 = vmatprep.subr.mxu0 0.0
      %758 = vmatpush1.msra.mxu0 0.0
      %759 = vmatprep.subr.mxu0 0.0
      %760 = vmatpush1.msra.mxu0 0.0
      %761 = vmatprep.subr.mxu0 0.0
      %762 = vmatpush1.msra.mxu0 0.0
      %763 = vmatprep.subr.mxu0 0.0
      %764 = vmatpush1.msra.mxu0 0.0
      %765 = vmatprep.subr.mxu0 0.0
      %766 = vmatpush1.msra.mxu0 0.0
      %767 = vmatprep.subr.mxu0 0.0
      %768 = vmatpush1.msra.mxu0 0.0
      %769 = vmatprep.subr.mxu0 0.0
      %770 = vmatpush1.msra.mxu0 0.0
      %771 = vmatprep.subr.mxu0 0.0
      %772 = vmatpush1.msra.mxu0 0.0
      %773 = vmatprep.subr.mxu0 0.0
      %774 = vmatpush1.msra.mxu0 0.0
      %775 = vmatprep.subr.mxu0 0.0
      %776 = vmatpush1.msra.mxu0 0.0
      %777 = vmatprep.subr.mxu0 0.0
      %778 = vmatpush1.msra.mxu0 0.0
      %779 = vmatprep.subr.mxu0 0.0
      %780 = vmatpush1.msra.mxu0 0.0
      %781 = vmatprep.subr.mxu0 0.0
      %782 = vmatpush1.msra.mxu0 0.0
      %783 = vmatprep.subr.mxu0 0.0
      %784 = vmatpush1.msra.mxu0 0.0
      %785 = vmatprep.subr.mxu0 0.0
      %786 = vmatpush1.msra.mxu0 0.0
      %787 = vmatprep.subr.mxu0 0.0
      %788 = vmatpush1.msra.mxu0 0.0
      %789 = vmatprep.mubr.f32.mxu0 0.0
      %790 = vmatmul.mubr.f32.gmra.mrb[0].mxu0 %v482
      %v791 = vpop.f32.mrb[0].mxu0
      %v792 = vadd.f32 %v560, %v791
      %v793 = vpop.f32.mrb[0].mxu0
      %794 = vmatprep.mubr.f32.mxu0 0.0
      %795 = vmatmul.mubr.f32.gmra.mrb[0].mxu0 %v483
      %v796 = vpop.f32.mrb[0].mxu0
      %v797 = vadd.f32 %v560, %v796
      %v798 = vpop.f32.mrb[0].mxu0
      %799 = vmatprep.mubr.f32.mxu0 0.0
      %800 = vmatmul.mubr.f32.gmra.mrb[0].mxu0 %v484
      %v801 = vpop.f32.mrb[0].mxu0
      %v802 = vadd.f32 %v560, %v801
      %v803 = vpop.f32.mrb[0].mxu0
      %804 = vmatprep.mubr.f32.mxu0 0.0
      %805 = vmatmul.mubr.f32.gmra.mrb[0].mxu0 %v485
      %v806 = vpop.f32.mrb[0].mxu0
      %v807 = vadd.f32 %v560, %v806
      %v808 = vpop.f32.mrb[0].mxu0
      %809 = vmatprep.mubr.f32.mxu0 0.0
      %810 = vmatmul.mubr.f32.gmra.mrb[0].mxu0 %v486
      %v811 = vpop.f32.mrb[0].mxu0
      %v812 = vadd.f32 %v560, %v811
      %v813 = vpop.f32.mrb[0].mxu0
      %814 = vmatprep.mubr.f32.mxu0 0.0
      %815 = vmatmul.mubr.f32.gmra.mrb[0].mxu0 %v487
      %v816 = vpop.f32.mrb[0].mxu0
      %v817 = vadd.f32 %v560, %v816
      %v818 = vpop.f32.mrb[0].mxu0
      %819 = vmatprep.mubr.f32.mxu0 0.0
      %820 = vmatmul.mubr.f32.gmra.mrb[0].mxu0 %v488
      %v821 = vpop.f32.mrb[0].mxu0
      %v822 = vadd.f32 %v560, %v821
      %v823 = vpop.f32.mrb[0].mxu0
      %824 = vmatprep.mubr.f32.mxu0 0.0
      %825 = vmatmul.mubr.f32.gmra.mrb[0].mxu0 %v489
      %v826 = vpop.f32.mrb[0].mxu0
      %v827 = vadd.f32 %v560, %v826
      %v828 = vpop.f32.mrb[0].mxu0
      %829 = vmatprep.mubr.f32.mxu0 0.0
      %830 = vmatmul.mubr.f32.gmra.mrb[0].mxu0 %v490
      %v831 = vpop.f32.mrb[0].mxu0
      %v832 = vadd.f32 %v560, %v831
      %v833 = vpop.f32.mrb[0].mxu0
      %834 = vmatprep.mubr.f32.mxu0 0.0
      %835 = vmatmul.mubr.f32.gmra.mrb[0].mxu0 %v491
      %v836 = vpop.f32.mrb[0].mxu0
      %v837 = vadd.f32 %v560, %v836
      %v838 = vpop.f32.mrb[0].mxu0
      %839 = vmatprep.mubr.f32.mxu0 0.0
      %840 = vmatmul.mubr.f32.gmra.mrb[0].mxu0 %v492
      %v841 = vpop.f32.mrb[0].mxu0
      %v842 = vadd.f32 %v560, %v841
      %v843 = vpop.f32.mrb[0].mxu0
      %844 = vmatprep.mubr.f32.mxu0 0.0
      %845 = vmatmul.mubr.f32.gmra.mrb[0].mxu0 %v493
      %v846 = vpop.f32.mrb[0].mxu0
      %v847 = vadd.f32 %v560, %v846
      %v848 = vpop.f32.mrb[0].mxu0
      %849 = vmatprep.mubr.f32.mxu0 0.0
      %850 = vmatmul.mubr.f32.gmra.mrb[0].mxu0 %v494
      %v851 = vpop.f32.mrb[0].mxu0
      %v852 = vadd.f32 %v560, %v851
      %v853 = vpop.f32.mrb[0].mxu0
      %854 = vmatprep.mubr.f32.mxu0 0.0
      %855 = vmatmul.mubr.f32.gmra.mrb[0].mxu0 %v495
      %v856 = vpop.f32.mrb[0].mxu0
      %v857 = vadd.f32 %v560, %v856
      %v858 = vpop.f32.mrb[0].mxu0
      %859 = vmatprep.mubr.f32.mxu0 0.0
      %860 = vmatmul.mubr.f32.gmra.mrb[0].mxu0 %v496
      %v861 = vpop.f32.mrb[0].mxu0
      %v862 = vadd.f32 %v560, %v861
      %v863 = vpop.f32.mrb[0].mxu0
      %864 = vmatprep.mubr.f32.mxu0 0.0
      %865 = vmatmul.mubr.f32.gmra.mrb[0].mxu0 %v497
      %v866 = vpop.f32.mrb[0].mxu0
      %v867 = vadd.f32 %v560, %v866
      %v868 = vpop.f32.mrb[0].mxu0
      %869 = vdwg.mxu0
      %vm870 = vcmask 523264
      %v872 = vsel %vm870, %v631, 0
      %v875 = vsel %vm870, %v637, 0
      %v878 = vsel %vm870, %v643, 0
      %v881 = vsel %vm870, %v649, 0
      %v884 = vsel %vm870, %v655, 0
      %v887 = vsel %vm870, %v661, 0
      %v890 = vsel %vm870, %v667, 0
      %v893 = vsel %vm870, %v673, 0
      %v896 = vsel %vm870, %v679, 0
      %v899 = vsel %vm870, %v685, 0
      %v902 = vsel %vm870, %v691, 0
      %v905 = vsel %vm870, %v697, 0
      %v908 = vsel %vm870, %v703, 0
      %v911 = vsel %vm870, %v709, 0
      %v914 = vsel %vm870, %v715, 0
      %v917 = vsel %vm870, %v721, 0
      %v920 = vsel %vm870, %v633, 0
      %v923 = vsel %vm870, %v639, 0
      %v926 = vsel %vm870, %v645, 0
      %v929 = vsel %vm870, %v651, 0
      %v932 = vsel %vm870, %v657, 0
      %v935 = vsel %vm870, %v663, 0
      %v938 = vsel %vm870, %v669, 0
      %v941 = vsel %vm870, %v675, 0
      %v944 = vsel %vm870, %v681, 0
      %v947 = vsel %vm870, %v687, 0
      %v950 = vsel %vm870, %v693, 0
      %v953 = vsel %vm870, %v699, 0
      %v956 = vsel %vm870, %v705, 0
      %v959 = vsel %vm870, %v711, 0
      %v962 = vsel %vm870, %v717, 0
      %v965 = vsel %vm870, %v723, 0
      %967 = vmatprep.subr.mxu0 0.0
      %968 = vmatpush1.xpose.msra.mxu0 %v920
      %969 = vmatprep.subr.mxu0 0.0
      %970 = vmatpush1.xpose.msra.mxu0 %v923
      %971 = vmatprep.subr.mxu0 0.0
      %972 = vmatpush1.xpose.msra.mxu0 %v926
      %973 = vmatprep.subr.mxu0 0.0
      %974 = vmatpush1.xpose.msra.mxu0 %v929
      %975 = vmatprep.subr.mxu0 0.0
      %976 = vmatpush1.xpose.msra.mxu0 %v932
      %977 = vmatprep.subr.mxu0 0.0
      %978 = vmatpush1.xpose.msra.mxu0 %v935
      %979 = vmatprep.subr.mxu0 0.0
      %980 = vmatpush1.xpose.msra.mxu0 %v938
      %981 = vmatprep.subr.mxu0 0.0
      %982 = vmatpush1.xpose.msra.mxu0 %v941
      %983 = vmatprep.subr.mxu0 0.0
      %984 = vmatpush1.xpose.msra.mxu0 %v944
      %985 = vmatprep.subr.mxu0 0.0
      %986 = vmatpush1.xpose.msra.mxu0 %v947
      %987 = vmatprep.subr.mxu0 0.0
      %988 = vmatpush1.xpose.msra.mxu0 %v950
      %989 = vmatprep.subr.mxu0 0.0
      %990 = vmatpush1.xpose.msra.mxu0 %v953
      %991 = vmatprep.subr.mxu0 0.0
      %992 = vmatpush1.xpose.msra.mxu0 %v956
      %993 = vmatprep.subr.mxu0 0.0
      %994 = vmatpush1.xpose.msra.mxu0 %v959
      %995 = vmatprep.subr.mxu0 0.0
      %996 = vmatpush1.xpose.msra.mxu0 %v962
      %997 = vmatprep.subr.mxu0 0.0
      %998 = vmatpush1.xpose.msra.mxu0 %v965
      %999 = vmatprep.subr.mxu0 0.0
      %1000 = vmatpush1.xpose.msra.mxu0 0.0
      %1001 = vmatprep.subr.mxu0 0.0
      %1002 = vmatpush1.xpose.msra.mxu0 0.0
      %1003 = vmatprep.subr.mxu0 0.0
      %1004 = vmatpush1.xpose.msra.mxu0 0.0
      %1005 = vmatprep.subr.mxu0 0.0
      %1006 = vmatpush1.xpose.msra.mxu0 0.0
      %1007 = vmatprep.subr.mxu0 0.0
      %1008 = vmatpush1.xpose.msra.mxu0 0.0
      %1009 = vmatprep.subr.mxu0 0.0
      %1010 = vmatpush1.xpose.msra.mxu0 0.0
      %1011 = vmatprep.subr.mxu0 0.0
      %1012 = vmatpush1.xpose.msra.mxu0 0.0
      %1013 = vmatprep.subr.mxu0 0.0
      %1014 = vmatpush1.xpose.msra.mxu0 0.0
      %1015 = vmatprep.subr.mxu0 0.0
      %1016 = vmatpush1.xpose.msra.mxu0 0.0
      %1017 = vmatprep.subr.mxu0 0.0
      %1018 = vmatpush1.xpose.msra.mxu0 0.0
      %1019 = vmatprep.subr.mxu0 0.0
      %1020 = vmatpush1.xpose.msra.mxu0 0.0
      %1021 = vmatprep.subr.mxu0 0.0
      %1022 = vmatpush1.xpose.msra.mxu0 0.0
      %1023 = vmatprep.subr.mxu0 0.0
      %1024 = vmatpush1.xpose.msra.mxu0 0.0
      %1025 = vmatprep.subr.mxu0 0.0
      %1026 = vmatpush1.xpose.msra.mxu0 0.0
      %1027 = vmatprep.subr.mxu0 0.0
      %1028 = vmatpush1.xpose.msra.mxu0 0.0
      %1029 = vmatprep.subr.mxu0 0.0
      %1030 = vmatpush1.xpose.msra.mxu0 0.0
      %1031 = vmatprep.mubr.f32.mxu0 0.0
      %1032 = vmatmul.mubr.f32.gmra.mrb[0].mxu0 %v872
      %v1033 = vpop.f32.mrb[0].mxu0
      %v1034 = vadd.f32 0.0, %v1033
      %v1035 = vpop.f32.mrb[0].mxu0
      %1036 = vmatprep.mubr.f32.mxu0 0.0
      %1037 = vmatmul.mubr.f32.gmra.mrb[0].mxu0 %v875
      %v1038 = vpop.f32.mrb[0].mxu0
      %v1039 = vadd.f32 0.0, %v1038
      %v1040 = vpop.f32.mrb[0].mxu0
      %1041 = vmatprep.mubr.f32.mxu0 0.0
      %1042 = vmatmul.mubr.f32.gmra.mrb[0].mxu0 %v878
      %v1043 = vpop.f32.mrb[0].mxu0
      %v1044 = vadd.f32 0.0, %v1043
      %v1045 = vpop.f32.mrb[0].mxu0
      %1046 = vmatprep.mubr.f32.mxu0 0.0
      %1047 = vmatmul.mubr.f32.gmra.mrb[0].mxu0 %v881
      %v1048 = vpop.f32.mrb[0].mxu0
      %v1049 = vadd.f32 0.0, %v1048
      %v1050 = vpop.f32.mrb[0].mxu0
      %1051 = vmatprep.mubr.f32.mxu0 0.0
      %1052 = vmatmul.mubr.f32.gmra.mrb[0].mxu0 %v884
      %v1053 = vpop.f32.mrb[0].mxu0
      %v1054 = vadd.f32 0.0, %v1053
      %v1055 = vpop.f32.mrb[0].mxu0
      %1056 = vmatprep.mubr.f32.mxu0 0.0
      %1057 = vmatmul.mubr.f32.gmra.mrb[0].mxu0 %v887
      %v1058 = vpop.f32.mrb[0].mxu0
      %v1059 = vadd.f32 0.0, %v1058
      %v1060 = vpop.f32.mrb[0].mxu0
      %1061 = vmatprep.mubr.f32.mxu0 0.0
      %1062 = vmatmul.mubr.f32.gmra.mrb[0].mxu0 %v890
      %v1063 = vpop.f32.mrb[0].mxu0
      %v1064 = vadd.f32 0.0, %v1063
      %v1065 = vpop.f32.mrb[0].mxu0
      %1066 = vmatprep.mubr.f32.mxu0 0.0
      %1067 = vmatmul.mubr.f32.gmra.mrb[0].mxu0 %v893
      %v1068 = vpop.f32.mrb[0].mxu0
      %v1069 = vadd.f32 0.0, %v1068
      %v1070 = vpop.f32.mrb[0].mxu0
      %1071 = vmatprep.mubr.f32.mxu0 0.0
      %1072 = vmatmul.mubr.f32.gmra.mrb[0].mxu0 %v896
      %v1073 = vpop.f32.mrb[0].mxu0
      %v1074 = vadd.f32 0.0, %v1073
      %v1075 = vpop.f32.mrb[0].mxu0
      %1076 = vmatprep.mubr.f32.mxu0 0.0
      %1077 = vmatmul.mubr.f32.gmra.mrb[0].mxu0 %v899
      %v1078 = vpop.f32.mrb[0].mxu0
      %v1079 = vadd.f32 0.0, %v1078
      %v1080 = vpop.f32.mrb[0].mxu0
      %1081 = vmatprep.mubr.f32.mxu0 0.0
      %1082 = vmatmul.mubr.f32.gmra.mrb[0].mxu0 %v902
      %v1083 = vpop.f32.mrb[0].mxu0
      %v1084 = vadd.f32 0.0, %v1083
      %v1085 = vpop.f32.mrb[0].mxu0
      %1086 = vmatprep.mubr.f32.mxu0 0.0
      %1087 = vmatmul.mubr.f32.gmra.mrb[0].mxu0 %v905
      %v1088 = vpop.f32.mrb[0].mxu0
      %v1089 = vadd.f32 0.0, %v1088
      %v1090 = vpop.f32.mrb[0].mxu0
      %1091 = vmatprep.mubr.f32.mxu0 0.0
      %1092 = vmatmul.mubr.f32.gmra.mrb[0].mxu0 %v908
      %v1093 = vpop.f32.mrb[0].mxu0
      %v1094 = vadd.f32 0.0, %v1093
      %v1095 = vpop.f32.mrb[0].mxu0
      %1096 = vmatprep.mubr.f32.mxu0 0.0
      %1097 = vmatmul.mubr.f32.gmra.mrb[0].mxu0 %v911
      %v1098 = vpop.f32.mrb[0].mxu0
      %v1099 = vadd.f32 0.0, %v1098
      %v1100 = vpop.f32.mrb[0].mxu0
      %1101 = vmatprep.mubr.f32.mxu0 0.0
      %1102 = vmatmul.mubr.f32.gmra.mrb[0].mxu0 %v914
      %v1103 = vpop.f32.mrb[0].mxu0
      %v1104 = vadd.f32 0.0, %v1103
      %v1105 = vpop.f32.mrb[0].mxu0
      %1106 = vmatprep.mubr.f32.mxu0 0.0
      %1107 = vmatmul.mubr.f32.gmra.mrb[0].mxu0 %v917
      %v1108 = vpop.f32.mrb[0].mxu0
      %v1109 = vadd.f32 0.0, %v1108
      %v1110 = vpop.f32.mrb[0].mxu0
      %1111 = vdwg.mxu0
      %v1112 = vmul.f32 %v1034, 0.125
      %v1113 = vmul.f32 %v1039, 0.125
      %v1114 = vmul.f32 %v1044, 0.125
      %v1115 = vmul.f32 %v1049, 0.125
      %v1116 = vmul.f32 %v1054, 0.125
      %v1117 = vmul.f32 %v1059, 0.125
      %v1118 = vmul.f32 %v1064, 0.125
      %v1119 = vmul.f32 %v1069, 0.125
      %v1120 = vmul.f32 %v1074, 0.125
      %v1121 = vmul.f32 %v1079, 0.125
      %v1122 = vmul.f32 %v1084, 0.125
      %v1123 = vmul.f32 %v1089, 0.125
      %v1124 = vmul.f32 %v1094, 0.125
      %v1125 = vmul.f32 %v1099, 0.125
      %v1126 = vmul.f32 %v1104, 0.125
      %v1127 = vmul.f32 %v1109, 0.125
      %v1129 = vlaneseq
      %v1130 = vshrl.u32 %v1129, 7
      %v1131 = vsub.s32 0, %v1130
      %v1132 = vrot.slane %v498, %v1131
      %v1134 = vadd.f32 %v1112, %v1132
      %v1135 = vadd.f32 %v1113, %v1132
      %v1136 = vadd.f32 %v1114, %v1132
      %v1137 = vadd.f32 %v1115, %v1132
      %v1138 = vadd.f32 %v1116, %v1132
      %v1139 = vadd.f32 %v1117, %v1132
      %v1140 = vadd.f32 %v1118, %v1132
      %v1141 = vadd.f32 %v1119, %v1132
      %v1142 = vadd.f32 %v1120, %v1132
      %v1143 = vadd.f32 %v1121, %v1132
      %v1144 = vadd.f32 %v1122, %v1132
      %v1145 = vadd.f32 %v1123, %v1132
      %v1146 = vadd.f32 %v1124, %v1132
      %v1147 = vadd.f32 %v1125, %v1132
      %v1148 = vadd.f32 %v1126, %v1132
      %v1149 = vadd.f32 %v1127, %v1132
      %1150 = vmax.xlane.f32.xlu0 %v1134
      %v1151 = vpop.xlane.xlu0 %1150
      %1152 = vmax.xlane.f32.xlu0 %v1135
      %v1153 = vpop.xlane.xlu0 %1152
      %1154 = vmax.xlane.f32.xlu0 %v1136
      %v1155 = vpop.xlane.xlu0 %1154
      %1156 = vmax.xlane.f32.xlu0 %v1137
      %v1157 = vpop.xlane.xlu0 %1156
      %1158 = vmax.xlane.f32.xlu0 %v1138
      %v1159 = vpop.xlane.xlu0 %1158
      %1160 = vmax.xlane.f32.xlu0 %v1139
      %v1161 = vpop.xlane.xlu0 %1160
      %1162 = vmax.xlane.f32.xlu0 %v1140
      %v1163 = vpop.xlane.xlu0 %1162
      %1164 = vmax.xlane.f32.xlu0 %v1141
      %v1165 = vpop.xlane.xlu0 %1164
      %1166 = vmax.xlane.f32.xlu0 %v1142
      %v1167 = vpop.xlane.xlu0 %1166
      %1168 = vmax.xlane.f32.xlu0 %v1143
      %v1169 = vpop.xlane.xlu0 %1168
      %1170 = vmax.xlane.f32.xlu0 %v1144
      %v1171 = vpop.xlane.xlu0 %1170
      %1172 = vmax.xlane.f32.xlu0 %v1145
      %v1173 = vpop.xlane.xlu0 %1172
      %1174 = vmax.xlane.f32.xlu0 %v1146
      %v1175 = vpop.xlane.xlu0 %1174
      %1176 = vmax.xlane.f32.xlu0 %v1147
      %v1177 = vpop.xlane.xlu0 %1176
      %1178 = vmax.xlane.f32.xlu0 %v1148
      %v1179 = vpop.xlane.xlu0 %1178
      %1180 = vmax.xlane.f32.xlu0 %v1149
      %v1181 = vpop.xlane.xlu0 %1180
      %v1182 = vsub.f32 %v1134, %v1151
      %v1183 = vsub.f32 %v1135, %v1153
      %v1184 = vsub.f32 %v1136, %v1155
      %v1185 = vsub.f32 %v1137, %v1157
      %v1186 = vsub.f32 %v1138, %v1159
      %v1187 = vsub.f32 %v1139, %v1161
      %v1188 = vsub.f32 %v1140, %v1163
      %v1189 = vsub.f32 %v1141, %v1165
      %v1190 = vsub.f32 %v1142, %v1167
      %v1191 = vsub.f32 %v1143, %v1169
      %v1192 = vsub.f32 %v1144, %v1171
      %v1193 = vsub.f32 %v1145, %v1173
      %v1194 = vsub.f32 %v1146, %v1175
      %v1195 = vsub.f32 %v1147, %v1177
      %v1196 = vsub.f32 %v1148, %v1179
      %v1197 = vsub.f32 %v1149, %v1181
      %v1198 = vmul.f32 %v1182, 1.442695
      %v1199 = vpow.pop %v1198
      %v1200 = vmul.f32 %v1183, 1.442695
      %v1201 = vpow.pop %v1200
      %v1202 = vmul.f32 %v1184, 1.442695
      %v1203 = vpow.pop %v1202
      %v1204 = vmul.f32 %v1185, 1.442695
      %v1205 = vpow.pop %v1204
      %v1206 = vmul.f32 %v1186, 1.442695
      %v1207 = vpow.pop %v1206
      %v1208 = vmul.f32 %v1187, 1.442695
      %v1209 = vpow.pop %v1208
      %v1210 = vmul.f32 %v1188, 1.442695
      %v1211 = vpow.pop %v1210
      %v1212 = vmul.f32 %v1189, 1.442695
      %v1213 = vpow.pop %v1212
      %v1214 = vmul.f32 %v1190, 1.442695
      %v1215 = vpow.pop %v1214
      %v1216 = vmul.f32 %v1191, 1.442695
      %v1217 = vpow.pop %v1216
      %v1218 = vmul.f32 %v1192, 1.442695
      %v1219 = vpow.pop %v1218
      %v1220 = vmul.f32 %v1193, 1.442695
      %v1221 = vpow.pop %v1220
      %v1222 = vmul.f32 %v1194, 1.442695
      %v1223 = vpow.pop %v1222
      %v1224 = vmul.f32 %v1195, 1.442695
      %v1225 = vpow.pop %v1224
      %v1226 = vmul.f32 %v1196, 1.442695
      %v1227 = vpow.pop %v1226
      %v1228 = vmul.f32 %v1197, 1.442695
      %v1229 = vpow.pop %v1228
      %1230 = vadd.xlane.f32.xlu0 %v1199
      %v1231 = vpop.xlane.xlu0 %1230
      %1232 = vadd.xlane.f32.xlu0 %v1201
      %v1233 = vpop.xlane.xlu0 %1232
      %1234 = vadd.xlane.f32.xlu0 %v1203
      %v1235 = vpop.xlane.xlu0 %1234
      %1236 = vadd.xlane.f32.xlu0 %v1205
      %v1237 = vpop.xlane.xlu0 %1236
      %1238 = vadd.xlane.f32.xlu0 %v1207
      %v1239 = vpop.xlane.xlu0 %1238
      %1240 = vadd.xlane.f32.xlu0 %v1209
      %v1241 = vpop.xlane.xlu0 %1240
      %1242 = vadd.xlane.f32.xlu0 %v1211
      %v1243 = vpop.xlane.xlu0 %1242
      %1244 = vadd.xlane.f32.xlu0 %v1213
      %v1245 = vpop.xlane.xlu0 %1244
      %1246 = vadd.xlane.f32.xlu0 %v1215
      %v1247 = vpop.xlane.xlu0 %1246
      %1248 = vadd.xlane.f32.xlu0 %v1217
      %v1249 = vpop.xlane.xlu0 %1248
      %1250 = vadd.xlane.f32.xlu0 %v1219
      %v1251 = vpop.xlane.xlu0 %1250
      %1252 = vadd.xlane.f32.xlu0 %v1221
      %v1253 = vpop.xlane.xlu0 %1252
      %1254 = vadd.xlane.f32.xlu0 %v1223
      %v1255 = vpop.xlane.xlu0 %1254
      %1256 = vadd.xlane.f32.xlu0 %v1225
      %v1257 = vpop.xlane.xlu0 %1256
      %1258 = vadd.xlane.f32.xlu0 %v1227
      %v1259 = vpop.xlane.xlu0 %1258
      %1260 = vadd.xlane.f32.xlu0 %v1229
      %v1261 = vpop.xlane.xlu0 %1260
      %1262 = vmatprep.subr.mxu0 0.0
      %1263 = vmatpush1.msra.mxu0 %v792
      %1264 = vmatprep.subr.mxu0 0.0
      %1265 = vmatpush1.msra.mxu0 %v797
      %1266 = vmatprep.subr.mxu0 0.0
      %1267 = vmatpush1.msra.mxu0 %v802
      %1268 = vmatprep.subr.mxu0 0.0
      %1269 = vmatpush1.msra.mxu0 %v807
      %1270 = vmatprep.subr.mxu0 0.0
      %1271 = vmatpush1.msra.mxu0 %v812
      %1272 = vmatprep.subr.mxu0 0.0
      %1273 = vmatpush1.msra.mxu0 %v817
      %1274 = vmatprep.subr.mxu0 0.0
      %1275 = vmatpush1.msra.mxu0 %v822
      %1276 = vmatprep.subr.mxu0 0.0
      %1277 = vmatpush1.msra.mxu0 %v827
      %1278 = vmatprep.subr.mxu0 0.0
      %1279 = vmatpush1.msra.mxu0 %v832
      %1280 = vmatprep.subr.mxu0 0.0
      %1281 = vmatpush1.msra.mxu0 %v837
      %1282 = vmatprep.subr.mxu0 0.0
      %1283 = vmatpush1.msra.mxu0 %v842
      %1284 = vmatprep.subr.mxu0 0.0
      %1285 = vmatpush1.msra.mxu0 %v847
      %1286 = vmatprep.subr.mxu0 0.0
      %1287 = vmatpush1.msra.mxu0 %v852
      %1288 = vmatprep.subr.mxu0 0.0
      %1289 = vmatpush1.msra.mxu0 %v857
      %1290 = vmatprep.subr.mxu0 0.0
      %1291 = vmatpush1.msra.mxu0 %v862
      %1292 = vmatprep.subr.mxu0 0.0
      %1293 = vmatpush1.msra.mxu0 %v867
      %1294 = vmatprep.subr.mxu0 0.0
      %1295 = vmatpush1.msra.mxu0 0.0
      %1296 = vmatprep.subr.mxu0 0.0
      %1297 = vmatpush1.msra.mxu0 0.0
      %1298 = vmatprep.subr.mxu0 0.0
      %1299 = vmatpush1.msra.mxu0 0.0
      %1300 = vmatprep.subr.mxu0 0.0
      %1301 = vmatpush1.msra.mxu0 0.0
      %1302 = vmatprep.subr.mxu0 0.0
      %1303 = vmatpush1.msra.mxu0 0.0
      %1304 = vmatprep.subr.mxu0 0.0
      %1305 = vmatpush1.msra.mxu0 0.0
      %1306 = vmatprep.subr.mxu0 0.0
      %1307 = vmatpush1.msra.mxu0 0.0
      %1308 = vmatprep.subr.mxu0 0.0
      %1309 = vmatpush1.msra.mxu0 0.0
      %1310 = vmatprep.subr.mxu0 0.0
      %1311 = vmatpush1.msra.mxu0 0.0
      %1312 = vmatprep.subr.mxu0 0.0
      %1313 = vmatpush1.msra.mxu0 0.0
      %1314 = vmatprep.subr.mxu0 0.0
      %1315 = vmatpush1.msra.mxu0 0.0
      %1316 = vmatprep.subr.mxu0 0.0
      %1317 = vmatpush1.msra.mxu0 0.0
      %1318 = vmatprep.subr.mxu0 0.0
      %1319 = vmatpush1.msra.mxu0 0.0
      %1320 = vmatprep.subr.mxu0 0.0
      %1321 = vmatpush1.msra.mxu0 0.0
      %1322 = vmatprep.subr.mxu0 0.0
      %1323 = vmatpush1.msra.mxu0 0.0
      %1324 = vmatprep.subr.mxu0 0.0
      %1325 = vmatpush1.msra.mxu0 0.0
      %1326 = vmatprep.mubr.f32.mxu0 0.0
      %1327 = vmatmul.mubr.f32.gmra.mrb[0].mxu0 %v1199
      %v1328 = vpop.f32.mrb[0].mxu0
      %v1329 = vadd.f32 0.0, %v1328
      %v1330 = vpop.f32.mrb[0].mxu0
      %1331 = vmatprep.mubr.f32.mxu0 0.0
      %1332 = vmatmul.mubr.f32.gmra.mrb[0].mxu0 %v1201
      %v1333 = vpop.f32.mrb[0].mxu0
      %v1334 = vadd.f32 0.0, %v1333
      %v1335 = vpop.f32.mrb[0].mxu0
      %1336 = vmatprep.mubr.f32.mxu0 0.0
      %1337 = vmatmul.mubr.f32.gmra.mrb[0].mxu0 %v1203
      %v1338 = vpop.f32.mrb[0].mxu0
      %v1339 = vadd.f32 0.0, %v1338
      %v1340 = vpop.f32.mrb[0].mxu0
      %1341 = vmatprep.mubr.f32.mxu0 0.0
      %1342 = vmatmul.mubr.f32.gmra.mrb[0].mxu0 %v1205
      %v1343 = vpop.f32.mrb[0].mxu0
      %v1344 = vadd.f32 0.0, %v1343
      %v1345 = vpop.f32.mrb[0].mxu0
      %1346 = vmatprep.mubr.f32.mxu0 0.0
      %1347 = vmatmul.mubr.f32.gmra.mrb[0].mxu0 %v1207
      %v1348 = vpop.f32.mrb[0].mxu0
      %v1349 = vadd.f32 0.0, %v1348
      %v1350 = vpop.f32.mrb[0].mxu0
      %1351 = vmatprep.mubr.f32.mxu0 0.0
      %1352 = vmatmul.mubr.f32.gmra.mrb[0].mxu0 %v1209
      %v1353 = vpop.f32.mrb[0].mxu0
      %v1354 = vadd.f32 0.0, %v1353
      %v1355 = vpop.f32.mrb[0].mxu0
      %1356 = vmatprep.mubr.f32.mxu0 0.0
      %1357 = vmatmul.mubr.f32.gmra.mrb[0].mxu0 %v1211
      %v1358 = vpop.f32.mrb[0].mxu0
      %v1359 = vadd.f32 0.0, %v1358
      %v1360 = vpop.f32.mrb[0].mxu0
      %1361 = vmatprep.mubr.f32.mxu0 0.0
      %1362 = vmatmul.mubr.f32.gmra.mrb[0].mxu0 %v1213
      %v1363 = vpop.f32.mrb[0].mxu0
      %v1364 = vadd.f32 0.0, %v1363
      %v1365 = vpop.f32.mrb[0].mxu0
      %1366 = vmatprep.mubr.f32.mxu0 0.0
      %1367 = vmatmul.mubr.f32.gmra.mrb[0].mxu0 %v1215
      %v1368 = vpop.f32.mrb[0].mxu0
      %v1369 = vadd.f32 0.0, %v1368
      %v1370 = vpop.f32.mrb[0].mxu0
      %1371 = vmatprep.mubr.f32.mxu0 0.0
      %1372 = vmatmul.mubr.f32.gmra.mrb[0].mxu0 %v1217
      %v1373 = vpop.f32.mrb[0].mxu0
      %v1374 = vadd.f32 0.0, %v1373
      %v1375 = vpop.f32.mrb[0].mxu0
      %1376 = vmatprep.mubr.f32.mxu0 0.0
      %1377 = vmatmul.mubr.f32.gmra.mrb[0].mxu0 %v1219
      %v1378 = vpop.f32.mrb[0].mxu0
      %v1379 = vadd.f32 0.0, %v1378
      %v1380 = vpop.f32.mrb[0].mxu0
      %1381 = vmatprep.mubr.f32.mxu0 0.0
      %1382 = vmatmul.mubr.f32.gmra.mrb[0].mxu0 %v1221
      %v1383 = vpop.f32.mrb[0].mxu0
      %v1384 = vadd.f32 0.0, %v1383
      %v1385 = vpop.f32.mrb[0].mxu0
      %1386 = vmatprep.mubr.f32.mxu0 0.0
      %1387 = vmatmul.mubr.f32.gmra.mrb[0].mxu0 %v1223
      %v1388 = vpop.f32.mrb[0].mxu0
      %v1389 = vadd.f32 0.0, %v1388
      %v1390 = vpop.f32.mrb[0].mxu0
      %1391 = vmatprep.mubr.f32.mxu0 0.0
      %1392 = vmatmul.mubr.f32.gmra.mrb[0].mxu0 %v1225
      %v1393 = vpop.f32.mrb[0].mxu0
      %v1394 = vadd.f32 0.0, %v1393
      %v1395 = vpop.f32.mrb[0].mxu0
      %1396 = vmatprep.mubr.f32.mxu0 0.0
      %1397 = vmatmul.mubr.f32.gmra.mrb[0].mxu0 %v1227
      %v1398 = vpop.f32.mrb[0].mxu0
      %v1399 = vadd.f32 0.0, %v1398
      %v1400 = vpop.f32.mrb[0].mxu0
      %1401 = vmatprep.mubr.f32.mxu0 0.0
      %1402 = vmatmul.mubr.f32.gmra.mrb[0].mxu0 %v1229
      %v1403 = vpop.f32.mrb[0].mxu0
      %v1404 = vadd.f32 0.0, %v1403
      %v1405 = vpop.f32.mrb[0].mxu0
      %1406 = vdwg.mxu0
      %v1407 = vrcp.pop %v1231
      %v1408 = vrcp.pop %v1233
      %v1409 = vrcp.pop %v1235
      %v1410 = vrcp.pop %v1237
      %v1411 = vrcp.pop %v1239
      %v1412 = vrcp.pop %v1241
      %v1413 = vrcp.pop %v1243
      %v1414 = vrcp.pop %v1245
      %v1415 = vrcp.pop %v1247
      %v1416 = vrcp.pop %v1249
      %v1417 = vrcp.pop %v1251
      %v1418 = vrcp.pop %v1253
      %v1419 = vrcp.pop %v1255
      %v1420 = vrcp.pop %v1257
      %v1421 = vrcp.pop %v1259
      %v1422 = vrcp.pop %v1261
      %v1423 = vmul.f32 %v1329, %v1407
      %v1424 = vmul.f32 %v1334, %v1408
      %v1425 = vmul.f32 %v1339, %v1409
      %v1426 = vmul.f32 %v1344, %v1410
      %v1427 = vmul.f32 %v1349, %v1411
      %v1428 = vmul.f32 %v1354, %v1412
      %v1429 = vmul.f32 %v1359, %v1413
      %v1430 = vmul.f32 %v1364, %v1414
      %v1431 = vmul.f32 %v1369, %v1415
      %v1432 = vmul.f32 %v1374, %v1416
      %v1433 = vmul.f32 %v1379, %v1417
      %v1434 = vmul.f32 %v1384, %v1418
      %v1435 = vmul.f32 %v1389, %v1419
      %v1436 = vmul.f32 %v1394, %v1420
      %v1437 = vmul.f32 %v1399, %v1421
      %v1438 = vmul.f32 %v1404, %v1422
      %v1439 = vld [vmem:[%s4] sm:$0xff]
      %v1440 = vld [vmem:[%s4 + $0x8] sm:$0xff]
      %v1441 = vld [vmem:[%s4 + $0x10] sm:$0xff]
      %v1442 = vld [vmem:[%s4 + $0x18] sm:$0xff]
      %v1443 = vld [vmem:[%s4 + $0x20] sm:$0xff]
      %v1444 = vld [vmem:[%s4 + $0x28] sm:$0xff]
      %v1445 = vld [vmem:[%s4 + $0x30] sm:$0xff]
      %v1446 = vld [vmem:[%s4 + $0x38] sm:$0xff]
      %1447 = vrot.lane.b32.xlu0 %v631, 64
      %v1448 = vpop.permute.xlu0 %1447
      %1449 = vrot.lane.b32.xlu0 %v637, 64
      %v1450 = vpop.permute.xlu0 %1449
      %1451 = vrot.lane.b32.xlu0 %v643, 64
      %v1452 = vpop.permute.xlu0 %1451
      %1453 = vrot.lane.b32.xlu0 %v649, 64
      %v1454 = vpop.permute.xlu0 %1453
      %1455 = vrot.lane.b32.xlu0 %v655, 64
      %v1456 = vpop.permute.xlu0 %1455
      %1457 = vrot.lane.b32.xlu0 %v661, 64
      %v1458 = vpop.permute.xlu0 %1457
      %1459 = vrot.lane.b32.xlu0 %v667, 64
      %v1460 = vpop.permute.xlu0 %1459
      %1461 = vrot.lane.b32.xlu0 %v673, 64
      %v1462 = vpop.permute.xlu0 %1461
      %1463 = vrot.lane.b32.xlu0 %v679, 64
      %v1464 = vpop.permute.xlu0 %1463
      %1465 = vrot.lane.b32.xlu0 %v685, 64
      %v1466 = vpop.permute.xlu0 %1465
      %1467 = vrot.lane.b32.xlu0 %v691, 64
      %v1468 = vpop.permute.xlu0 %1467
      %1469 = vrot.lane.b32.xlu0 %v697, 64
      %v1470 = vpop.permute.xlu0 %1469
      %1471 = vrot.lane.b32.xlu0 %v703, 64
      %v1472 = vpop.permute.xlu0 %1471
      %1473 = vrot.lane.b32.xlu0 %v709, 64
      %v1474 = vpop.permute.xlu0 %1473
      %1475 = vrot.lane.b32.xlu0 %v715, 64
      %v1476 = vpop.permute.xlu0 %1475
      %1477 = vrot.lane.b32.xlu0 %v721, 64
      %v1478 = vpop.permute.xlu0 %1477
      %1479 = vrot.lane.b32.xlu0 %v633, 64
      %v1480 = vpop.permute.xlu0 %1479
      %1481 = vrot.lane.b32.xlu0 %v639, 64
      %v1482 = vpop.permute.xlu0 %1481
      %1483 = vrot.lane.b32.xlu0 %v645, 64
      %v1484 = vpop.permute.xlu0 %1483
      %1485 = vrot.lane.b32.xlu0 %v651, 64
      %v1486 = vpop.permute.xlu0 %1485
      %1487 = vrot.lane.b32.xlu0 %v657, 64
      %v1488 = vpop.permute.xlu0 %1487
      %1489 = vrot.lane.b32.xlu0 %v663, 64
      %v1490 = vpop.permute.xlu0 %1489
      %1491 = vrot.lane.b32.xlu0 %v669, 64
      %v1492 = vpop.permute.xlu0 %1491
      %1493 = vrot.lane.b32.xlu0 %v675, 64
      %v1494 = vpop.permute.xlu0 %1493
      %1495 = vrot.lane.b32.xlu0 %v681, 64
      %v1496 = vpop.permute.xlu0 %1495
      %1497 = vrot.lane.b32.xlu0 %v687, 64
      %v1498 = vpop.permute.xlu0 %1497
      %1499 = vrot.lane.b32.xlu0 %v693, 64
      %v1500 = vpop.permute.xlu0 %1499
      %1501 = vrot.lane.b32.xlu0 %v699, 64
      %v1502 = vpop.permute.xlu0 %1501
      %1503 = vrot.lane.b32.xlu0 %v705, 64
      %v1504 = vpop.permute.xlu0 %1503
      %1505 = vrot.lane.b32.xlu0 %v711, 64
      %v1506 = vpop.permute.xlu0 %1505
      %1507 = vrot.lane.b32.xlu0 %v717, 64
      %v1508 = vpop.permute.xlu0 %1507
      %1509 = vrot.lane.b32.xlu0 %v723, 64
      %v1510 = vpop.permute.xlu0 %1509
      %v1511 = vsel %vm870, %v1448, 0
      %v1513 = vsel %vm870, %v1450, 0
      %v1515 = vsel %vm870, %v1452, 0
      %v1517 = vsel %vm870, %v1454, 0
      %v1519 = vsel %vm870, %v1456, 0
      %v1521 = vsel %vm870, %v1458, 0
      %v1523 = vsel %vm870, %v1460, 0
      %v1525 = vsel %vm870, %v1462, 0
      %v1527 = vsel %vm870, %v1464, 0
      %v1529 = vsel %vm870, %v1466, 0
      %v1531 = vsel %vm870, %v1468, 0
      %v1533 = vsel %vm870, %v1470, 0
      %v1535 = vsel %vm870, %v1472, 0
      %v1537 = vsel %vm870, %v1474, 0
      %v1539 = vsel %vm870, %v1476, 0
      %v1541 = vsel %vm870, %v1478, 0
      %v1543 = vsel %vm870, %v1480, 0
      %v1545 = vsel %vm870, %v1482, 0
      %v1547 = vsel %vm870, %v1484, 0
      %v1549 = vsel %vm870, %v1486, 0
      %v1551 = vsel %vm870, %v1488, 0
      %v1553 = vsel %vm870, %v1490, 0
      %v1555 = vsel %vm870, %v1492, 0
      %v1557 = vsel %vm870, %v1494, 0
      %v1559 = vsel %vm870, %v1496, 0
      %v1561 = vsel %vm870, %v1498, 0
      %v1563 = vsel %vm870, %v1500, 0
      %v1565 = vsel %vm870, %v1502, 0
      %v1567 = vsel %vm870, %v1504, 0
      %v1569 = vsel %vm870, %v1506, 0
      %v1571 = vsel %vm870, %v1508, 0
      %v1573 = vsel %vm870, %v1510, 0
      %1575 = vmatprep.subr.mxu0 0.0
      %1576 = vmatpush1.xpose.msra.mxu0 %v1543
      %1577 = vmatprep.subr.mxu0 0.0
      %1578 = vmatpush1.xpose.msra.mxu0 %v1545
      %1579 = vmatprep.subr.mxu0 0.0
      %1580 = vmatpush1.xpose.msra.mxu0 %v1547
      %1581 = vmatprep.subr.mxu0 0.0
      %1582 = vmatpush1.xpose.msra.mxu0 %v1549
      %1583 = vmatprep.subr.mxu0 0.0
      %1584 = vmatpush1.xpose.msra.mxu0 %v1551
      %1585 = vmatprep.subr.mxu0 0.0
      %1586 = vmatpush1.xpose.msra.mxu0 %v1553
      %1587 = vmatprep.subr.mxu0 0.0
      %1588 = vmatpush1.xpose.msra.mxu0 %v1555
      %1589 = vmatprep.subr.mxu0 0.0
      %1590 = vmatpush1.xpose.msra.mxu0 %v1557
      %1591 = vmatprep.subr.mxu0 0.0
      %1592 = vmatpush1.xpose.msra.mxu0 %v1559
      %1593 = vmatprep.subr.mxu0 0.0
      %1594 = vmatpush1.xpose.msra.mxu0 %v1561
      %1595 = vmatprep.subr.mxu0 0.0
      %1596 = vmatpush1.xpose.msra.mxu0 %v1563
      %1597 = vmatprep.subr.mxu0 0.0
      %1598 = vmatpush1.xpose.msra.mxu0 %v1565
      %1599 = vmatprep.subr.mxu0 0.0
      %1600 = vmatpush1.xpose.msra.mxu0 %v1567
      %1601 = vmatprep.subr.mxu0 0.0
      %1602 = vmatpush1.xpose.msra.mxu0 %v1569
      %1603 = vmatprep.subr.mxu0 0.0
      %1604 = vmatpush1.xpose.msra.mxu0 %v1571
      %1605 = vmatprep.subr.mxu0 0.0
      %1606 = vmatpush1.xpose.msra.mxu0 %v1573
      %1607 = vmatprep.subr.mxu0 0.0
      %1608 = vmatpush1.xpose.msra.mxu0 0.0
      %1609 = vmatprep.subr.mxu0 0.0
      %1610 = vmatpush1.xpose.msra.mxu0 0.0
      %1611 = vmatprep.subr.mxu0 0.0
      %1612 = vmatpush1.xpose.msra.mxu0 0.0
      %1613 = vmatprep.subr.mxu0 0.0
      %1614 = vmatpush1.xpose.msra.mxu0 0.0
      %1615 = vmatprep.subr.mxu0 0.0
      %1616 = vmatpush1.xpose.msra.mxu0 0.0
      %1617 = vmatprep.subr.mxu0 0.0
      %1618 = vmatpush1.xpose.msra.mxu0 0.0
      %1619 = vmatprep.subr.mxu0 0.0
      %1620 = vmatpush1.xpose.msra.mxu0 0.0
      %1621 = vmatprep.subr.mxu0 0.0
      %1622 = vmatpush1.xpose.msra.mxu0 0.0
      %1623 = vmatprep.subr.mxu0 0.0
      %1624 = vmatpush1.xpose.msra.mxu0 0.0
      %1625 = vmatprep.subr.mxu0 0.0
      %1626 = vmatpush1.xpose.msra.mxu0 0.0
      %1627 = vmatprep.subr.mxu0 0.0
      %1628 = vmatpush1.xpose.msra.mxu0 0.0
      %1629 = vmatprep.subr.mxu0 0.0
      %1630 = vmatpush1.xpose.msra.mxu0 0.0
      %1631 = vmatprep.subr.mxu0 0.0
      %1632 = vmatpush1.xpose.msra.mxu0 0.0
      %1633 = vmatprep.subr.mxu0 0.0
      %1634 = vmatpush1.xpose.msra.mxu0 0.0
      %1635 = vmatprep.subr.mxu0 0.0
      %1636 = vmatpush1.xpose.msra.mxu0 0.0
      %1637 = vmatprep.subr.mxu0 0.0
      %1638 = vmatpush1.xpose.msra.mxu0 0.0
      %1639 = vmatprep.mubr.f32.mxu0 0.0
      %1640 = vmatmul.mubr.f32.gmra.mrb[0].mxu0 %v1511
      %v1641 = vpop.f32.mrb[0].mxu0
      %v1642 = vadd.f32 0.0, %v1641
      %v1643 = vpop.f32.mrb[0].mxu0
      %1644 = vmatprep.mubr.f32.mxu0 0.0
      %1645 = vmatmul.mubr.f32.gmra.mrb[0].mxu0 %v1513
      %v1646 = vpop.f32.mrb[0].mxu0
      %v1647 = vadd.f32 0.0, %v1646
      %v1648 = vpop.f32.mrb[0].mxu0
      %1649 = vmatprep.mubr.f32.mxu0 0.0
      %1650 = vmatmul.mubr.f32.gmra.mrb[0].mxu0 %v1515
      %v1651 = vpop.f32.mrb[0].mxu0
      %v1652 = vadd.f32 0.0, %v1651
      %v1653 = vpop.f32.mrb[0].mxu0
      %1654 = vmatprep.mubr.f32.mxu0 0.0
      %1655 = vmatmul.mubr.f32.gmra.mrb[0].mxu0 %v1517
      %v1656 = vpop.f32.mrb[0].mxu0
      %v1657 = vadd.f32 0.0, %v1656
      %v1658 = vpop.f32.mrb[0].mxu0
      %1659 = vmatprep.mubr.f32.mxu0 0.0
      %1660 = vmatmul.mubr.f32.gmra.mrb[0].mxu0 %v1519
      %v1661 = vpop.f32.mrb[0].mxu0
      %v1662 = vadd.f32 0.0, %v1661
      %v1663 = vpop.f32.mrb[0].mxu0
      %1664 = vmatprep.mubr.f32.mxu0 0.0
      %1665 = vmatmul.mubr.f32.gmra.mrb[0].mxu0 %v1521
      %v1666 = vpop.f32.mrb[0].mxu0
      %v1667 = vadd.f32 0.0, %v1666
      %v1668 = vpop.f32.mrb[0].mxu0
      %1669 = vmatprep.mubr.f32.mxu0 0.0
      %1670 = vmatmul.mubr.f32.gmra.mrb[0].mxu0 %v1523
      %v1671 = vpop.f32.mrb[0].mxu0
      %v1672 = vadd.f32 0.0, %v1671
      %v1673 = vpop.f32.mrb[0].mxu0
      %1674 = vmatprep.mubr.f32.mxu0 0.0
      %1675 = vmatmul.mubr.f32.gmra.mrb[0].mxu0 %v1525
      %v1676 = vpop.f32.mrb[0].mxu0
      %v1677 = vadd.f32 0.0, %v1676
      %v1678 = vpop.f32.mrb[0].mxu0
      %1679 = vmatprep.mubr.f32.mxu0 0.0
      %1680 = vmatmul.mubr.f32.gmra.mrb[0].mxu0 %v1527
      %v1681 = vpop.f32.mrb[0].mxu0
      %v1682 = vadd.f32 0.0, %v1681
      %v1683 = vpop.f32.mrb[0].mxu0
      %1684 = vmatprep.mubr.f32.mxu0 0.0
      %1685 = vmatmul.mubr.f32.gmra.mrb[0].mxu0 %v1529
      %v1686 = vpop.f32.mrb[0].mxu0
      %v1687 = vadd.f32 0.0, %v1686
      %v1688 = vpop.f32.mrb[0].mxu0
      %1689 = vmatprep.mubr.f32.mxu0 0.0
      %1690 = vmatmul.mubr.f32.gmra.mrb[0].mxu0 %v1531
      %v1691 = vpop.f32.mrb[0].mxu0
      %v1692 = vadd.f32 0.0, %v1691
      %v1693 = vpop.f32.mrb[0].mxu0
      %1694 = vmatprep.mubr.f32.mxu0 0.0
      %1695 = vmatmul.mubr.f32.gmra.mrb[0].mxu0 %v1533
      %v1696 = vpop.f32.mrb[0].mxu0
      %v1697 = vadd.f32 0.0, %v1696
      %v1698 = vpop.f32.mrb[0].mxu0
      %1699 = vmatprep.mubr.f32.mxu0 0.0
      %1700 = vmatmul.mubr.f32.gmra.mrb[0].mxu0 %v1535
      %v1701 = vpop.f32.mrb[0].mxu0
      %v1702 = vadd.f32 0.0, %v1701
      %v1703 = vpop.f32.mrb[0].mxu0
      %1704 = vmatprep.mubr.f32.mxu0 0.0
      %1705 = vmatmul.mubr.f32.gmra.mrb[0].mxu0 %v1537
      %v1706 = vpop.f32.mrb[0].mxu0
      %v1707 = vadd.f32 0.0, %v1706
      %v1708 = vpop.f32.mrb[0].mxu0
      %1709 = vmatprep.mubr.f32.mxu0 0.0
      %1710 = vmatmul.mubr.f32.gmra.mrb[0].mxu0 %v1539
      %v1711 = vpop.f32.mrb[0].mxu0
      %v1712 = vadd.f32 0.0, %v1711
      %v1713 = vpop.f32.mrb[0].mxu0
      %1714 = vmatprep.mubr.f32.mxu0 0.0
      %1715 = vmatmul.mubr.f32.gmra.mrb[0].mxu0 %v1541
      %v1716 = vpop.f32.mrb[0].mxu0
      %v1717 = vadd.f32 0.0, %v1716
      %v1718 = vpop.f32.mrb[0].mxu0
      %1719 = vdwg.mxu0
      %v1720 = vmul.f32 %v1642, 0.125
      %v1721 = vmul.f32 %v1647, 0.125
      %v1722 = vmul.f32 %v1652, 0.125
      %v1723 = vmul.f32 %v1657, 0.125
      %v1724 = vmul.f32 %v1662, 0.125
      %v1725 = vmul.f32 %v1667, 0.125
      %v1726 = vmul.f32 %v1672, 0.125
      %v1727 = vmul.f32 %v1677, 0.125
      %v1728 = vmul.f32 %v1682, 0.125
      %v1729 = vmul.f32 %v1687, 0.125
      %v1730 = vmul.f32 %v1692, 0.125
      %v1731 = vmul.f32 %v1697, 0.125
      %v1732 = vmul.f32 %v1702, 0.125
      %v1733 = vmul.f32 %v1707, 0.125
      %v1734 = vmul.f32 %v1712, 0.125
      %v1735 = vmul.f32 %v1717, 0.125
      %v1736 = vadd.f32 %v1720, %v1132
      %v1737 = vadd.f32 %v1721, %v1132
      %v1738 = vadd.f32 %v1722, %v1132
      %v1739 = vadd.f32 %v1723, %v1132
      %v1740 = vadd.f32 %v1724, %v1132
      %v1741 = vadd.f32 %v1725, %v1132
      %v1742 = vadd.f32 %v1726, %v1132
      %v1743 = vadd.f32 %v1727, %v1132
      %v1744 = vadd.f32 %v1728, %v1132
      %v1745 = vadd.f32 %v1729, %v1132
      %v1746 = vadd.f32 %v1730, %v1132
      %v1747 = vadd.f32 %v1731, %v1132
      %v1748 = vadd.f32 %v1732, %v1132
      %v1749 = vadd.f32 %v1733, %v1132
      %v1750 = vadd.f32 %v1734, %v1132
      %v1751 = vadd.f32 %v1735, %v1132
      %1752 = vmax.xlane.f32.xlu0 %v1736
      %v1753 = vpop.xlane.xlu0 %1752
      %1754 = vmax.xlane.f32.xlu0 %v1737
      %v1755 = vpop.xlane.xlu0 %1754
      %1756 = vmax.xlane.f32.xlu0 %v1738
      %v1757 = vpop.xlane.xlu0 %1756
      %1758 = vmax.xlane.f32.xlu0 %v1739
      %v1759 = vpop.xlane.xlu0 %1758
      %1760 = vmax.xlane.f32.xlu0 %v1740
      %v1761 = vpop.xlane.xlu0 %1760
      %1762 = vmax.xlane.f32.xlu0 %v1741
      %v1763 = vpop.xlane.xlu0 %1762
      %1764 = vmax.xlane.f32.xlu0 %v1742
      %v1765 = vpop.xlane.xlu0 %1764
      %1766 = vmax.xlane.f32.xlu0 %v1743
      %v1767 = vpop.xlane.xlu0 %1766
      %1768 = vmax.xlane.f32.xlu0 %v1744
      %v1769 = vpop.xlane.xlu0 %1768
      %1770 = vmax.xlane.f32.xlu0 %v1745
      %v1771 = vpop.xlane.xlu0 %1770
      %1772 = vmax.xlane.f32.xlu0 %v1746
      %v1773 = vpop.xlane.xlu0 %1772
      %1774 = vmax.xlane.f32.xlu0 %v1747
      %v1775 = vpop.xlane.xlu0 %1774
      %1776 = vmax.xlane.f32.xlu0 %v1748
      %v1777 = vpop.xlane.xlu0 %1776
      %1778 = vmax.xlane.f32.xlu0 %v1749
      %v1779 = vpop.xlane.xlu0 %1778
      %1780 = vmax.xlane.f32.xlu0 %v1750
      %v1781 = vpop.xlane.xlu0 %1780
      %1782 = vmax.xlane.f32.xlu0 %v1751
      %v1783 = vpop.xlane.xlu0 %1782
      %v1784 = vsub.f32 %v1736, %v1753
      %v1785 = vsub.f32 %v1737, %v1755
      %v1786 = vsub.f32 %v1738, %v1757
      %v1787 = vsub.f32 %v1739, %v1759
      %v1788 = vsub.f32 %v1740, %v1761
      %v1789 = vsub.f32 %v1741, %v1763
      %v1790 = vsub.f32 %v1742, %v1765
      %v1791 = vsub.f32 %v1743, %v1767
      %v1792 = vsub.f32 %v1744, %v1769
      %v1793 = vsub.f32 %v1745, %v1771
      %v1794 = vsub.f32 %v1746, %v1773
      %v1795 = vsub.f32 %v1747, %v1775
      %v1796 = vsub.f32 %v1748, %v1777
      %v1797 = vsub.f32 %v1749, %v1779
      %v1798 = vsub.f32 %v1750, %v1781
      %v1799 = vsub.f32 %v1751, %v1783
      %v1800 = vmul.f32 %v1784, 1.442695
      %v1801 = vpow.pop %v1800
      %v1802 = vmul.f32 %v1785, 1.442695
      %v1803 = vpow.pop %v1802
      %v1804 = vmul.f32 %v1786, 1.442695
      %v1805 = vpow.pop %v1804
      %v1806 = vmul.f32 %v1787, 1.442695
      %v1807 = vpow.pop %v1806
      %v1808 = vmul.f32 %v1788, 1.442695
      %v1809 = vpow.pop %v1808
      %v1810 = vmul.f32 %v1789, 1.442695
      %v1811 = vpow.pop %v1810
      %v1812 = vmul.f32 %v1790, 1.442695
      %v1813 = vpow.pop %v1812
      %v1814 = vmul.f32 %v1791, 1.442695
      %v1815 = vpow.pop %v1814
      %v1816 = vmul.f32 %v1792, 1.442695
      %v1817 = vpow.pop %v1816
      %v1818 = vmul.f32 %v1793, 1.442695
      %v1819 = vpow.pop %v1818
      %v1820 = vmul.f32 %v1794, 1.442695
      %v1821 = vpow.pop %v1820
      %v1822 = vmul.f32 %v1795, 1.442695
      %v1823 = vpow.pop %v1822
      %v1824 = vmul.f32 %v1796, 1.442695
      %v1825 = vpow.pop %v1824
      %v1826 = vmul.f32 %v1797, 1.442695
      %v1827 = vpow.pop %v1826
      %v1828 = vmul.f32 %v1798, 1.442695
      %v1829 = vpow.pop %v1828
      %v1830 = vmul.f32 %v1799, 1.442695
      %v1831 = vpow.pop %v1830
      %1832 = vadd.xlane.f32.xlu0 %v1801
      %v1833 = vpop.xlane.xlu0 %1832
      %1834 = vadd.xlane.f32.xlu0 %v1803
      %v1835 = vpop.xlane.xlu0 %1834
      %1836 = vadd.xlane.f32.xlu0 %v1805
      %v1837 = vpop.xlane.xlu0 %1836
      %1838 = vadd.xlane.f32.xlu0 %v1807
      %v1839 = vpop.xlane.xlu0 %1838
      %1840 = vadd.xlane.f32.xlu0 %v1809
      %v1841 = vpop.xlane.xlu0 %1840
      %1842 = vadd.xlane.f32.xlu0 %v1811
      %v1843 = vpop.xlane.xlu0 %1842
      %1844 = vadd.xlane.f32.xlu0 %v1813
      %v1845 = vpop.xlane.xlu0 %1844
      %1846 = vadd.xlane.f32.xlu0 %v1815
      %v1847 = vpop.xlane.xlu0 %1846
      %1848 = vadd.xlane.f32.xlu0 %v1817
      %v1849 = vpop.xlane.xlu0 %1848
      %1850 = vadd.xlane.f32.xlu0 %v1819
      %v1851 = vpop.xlane.xlu0 %1850
      %1852 = vadd.xlane.f32.xlu0 %v1821
      %v1853 = vpop.xlane.xlu0 %1852
      %1854 = vadd.xlane.f32.xlu0 %v1823
      %v1855 = vpop.xlane.xlu0 %1854
      %1856 = vadd.xlane.f32.xlu0 %v1825
      %v1857 = vpop.xlane.xlu0 %1856
      %1858 = vadd.xlane.f32.xlu0 %v1827
      %v1859 = vpop.xlane.xlu0 %1858
      %1860 = vadd.xlane.f32.xlu0 %v1829
      %v1861 = vpop.xlane.xlu0 %1860
      %1862 = vadd.xlane.f32.xlu0 %v1831
      %v1863 = vpop.xlane.xlu0 %1862
      %1880 = vrot.lane.b32.xlu0 %v792, 64
      %v1881 = vpop.permute.xlu0 %1880
      %1882 = vrot.lane.b32.xlu0 %v797, 64
      %v1883 = vpop.permute.xlu0 %1882
      %1884 = vrot.lane.b32.xlu0 %v802, 64
      %v1885 = vpop.permute.xlu0 %1884
      %1886 = vrot.lane.b32.xlu0 %v807, 64
      %v1887 = vpop.permute.xlu0 %1886
      %1888 = vrot.lane.b32.xlu0 %v812, 64
      %v1889 = vpop.permute.xlu0 %1888
      %1890 = vrot.lane.b32.xlu0 %v817, 64
      %v1891 = vpop.permute.xlu0 %1890
      %1892 = vrot.lane.b32.xlu0 %v822, 64
      %v1893 = vpop.permute.xlu0 %1892
      %1894 = vrot.lane.b32.xlu0 %v827, 64
      %v1895 = vpop.permute.xlu0 %1894
      %1896 = vrot.lane.b32.xlu0 %v832, 64
      %v1897 = vpop.permute.xlu0 %1896
      %1898 = vrot.lane.b32.xlu0 %v837, 64
      %v1899 = vpop.permute.xlu0 %1898
      %1900 = vrot.lane.b32.xlu0 %v842, 64
      %v1901 = vpop.permute.xlu0 %1900
      %1902 = vrot.lane.b32.xlu0 %v847, 64
      %v1903 = vpop.permute.xlu0 %1902
      %1904 = vrot.lane.b32.xlu0 %v852, 64
      %v1905 = vpop.permute.xlu0 %1904
      %1906 = vrot.lane.b32.xlu0 %v857, 64
      %v1907 = vpop.permute.xlu0 %1906
      %1908 = vrot.lane.b32.xlu0 %v862, 64
      %v1909 = vpop.permute.xlu0 %1908
      %1910 = vrot.lane.b32.xlu0 %v867, 64
      %v1911 = vpop.permute.xlu0 %1910
      %1928 = vmatprep.subr.mxu0 0.0
      %1929 = vmatpush1.msra.mxu0 %v1881
      %1930 = vmatprep.subr.mxu0 0.0
      %1931 = vmatpush1.msra.mxu0 %v1883
      %1932 = vmatprep.subr.mxu0 0.0
      %1933 = vmatpush1.msra.mxu0 %v1885
      %1934 = vmatprep.subr.mxu0 0.0
      %1935 = vmatpush1.msra.mxu0 %v1887
      %1936 = vmatprep.subr.mxu0 0.0
      %1937 = vmatpush1.msra.mxu0 %v1889
      %1938 = vmatprep.subr.mxu0 0.0
      %1939 = vmatpush1.msra.mxu0 %v1891
      %1940 = vmatprep.subr.mxu0 0.0
      %1941 = vmatpush1.msra.mxu0 %v1893
      %1942 = vmatprep.subr.mxu0 0.0
      %1943 = vmatpush1.msra.mxu0 %v1895
      %1944 = vmatprep.subr.mxu0 0.0
      %1945 = vmatpush1.msra.mxu0 %v1897
      %1946 = vmatprep.subr.mxu0 0.0
      %1947 = vmatpush1.msra.mxu0 %v1899
      %1948 = vmatprep.subr.mxu0 0.0
      %1949 = vmatpush1.msra.mxu0 %v1901
      %1950 = vmatprep.subr.mxu0 0.0
      %1951 = vmatpush1.msra.mxu0 %v1903
      %1952 = vmatprep.subr.mxu0 0.0
      %1953 = vmatpush1.msra.mxu0 %v1905
      %1954 = vmatprep.subr.mxu0 0.0
      %1955 = vmatpush1.msra.mxu0 %v1907
      %1956 = vmatprep.subr.mxu0 0.0
      %1957 = vmatpush1.msra.mxu0 %v1909
      %1958 = vmatprep.subr.mxu0 0.0
      %1959 = vmatpush1.msra.mxu0 %v1911
      %1960 = vmatprep.subr.mxu0 0.0
      %1961 = vmatpush1.msra.mxu0 0.0
      %1962 = vmatprep.subr.mxu0 0.0
      %1963 = vmatpush1.msra.mxu0 0.0
      %1964 = vmatprep.subr.mxu0 0.0
      %1965 = vmatpush1.msra.mxu0 0.0
      %1966 = vmatprep.subr.mxu0 0.0
      %1967 = vmatpush1.msra.mxu0 0.0
      %1968 = vmatprep.subr.mxu0 0.0
      %1969 = vmatpush1.msra.mxu0 0.0
      %1970 = vmatprep.subr.mxu0 0.0
      %1971 = vmatpush1.msra.mxu0 0.0
      %1972 = vmatprep.subr.mxu0 0.0
      %1973 = vmatpush1.msra.mxu0 0.0
      %1974 = vmatprep.subr.mxu0 0.0
      %1975 = vmatpush1.msra.mxu0 0.0
      %1976 = vmatprep.subr.mxu0 0.0
      %1977 = vmatpush1.msra.mxu0 0.0
      %1978 = vmatprep.subr.mxu0 0.0
      %1979 = vmatpush1.msra.mxu0 0.0
      %1980 = vmatprep.subr.mxu0 0.0
      %1981 = vmatpush1.msra.mxu0 0.0
      %1982 = vmatprep.subr.mxu0 0.0
      %1983 = vmatpush1.msra.mxu0 0.0
      %1984 = vmatprep.subr.mxu0 0.0
      %1985 = vmatpush1.msra.mxu0 0.0
      %1986 = vmatprep.subr.mxu0 0.0
      %1987 = vmatpush1.msra.mxu0 0.0
      %1988 = vmatprep.subr.mxu0 0.0
      %1989 = vmatpush1.msra.mxu0 0.0
      %1990 = vmatprep.subr.mxu0 0.0
      %1991 = vmatpush1.msra.mxu0 0.0
      %1992 = vmatprep.mubr.f32.mxu0 0.0
      %1993 = vmatmul.mubr.f32.gmra.mrb[0].mxu0 %v1801
      %v1994 = vpop.f32.mrb[0].mxu0
      %v1995 = vadd.f32 0.0, %v1994
      %v1996 = vpop.f32.mrb[0].mxu0
      %1997 = vmatprep.mubr.f32.mxu0 0.0
      %1998 = vmatmul.mubr.f32.gmra.mrb[0].mxu0 %v1803
      %v1999 = vpop.f32.mrb[0].mxu0
      %v2000 = vadd.f32 0.0, %v1999
      %v2001 = vpop.f32.mrb[0].mxu0
      %2002 = vmatprep.mubr.f32.mxu0 0.0
      %2003 = vmatmul.mubr.f32.gmra.mrb[0].mxu0 %v1805
      %v2004 = vpop.f32.mrb[0].mxu0
      %v2005 = vadd.f32 0.0, %v2004
      %v2006 = vpop.f32.mrb[0].mxu0
      %2007 = vmatprep.mubr.f32.mxu0 0.0
      %2008 = vmatmul.mubr.f32.gmra.mrb[0].mxu0 %v1807
      %v2009 = vpop.f32.mrb[0].mxu0
      %v2010 = vadd.f32 0.0, %v2009
      %v2011 = vpop.f32.mrb[0].mxu0
      %2012 = vmatprep.mubr.f32.mxu0 0.0
      %2013 = vmatmul.mubr.f32.gmra.mrb[0].mxu0 %v1809
      %v2014 = vpop.f32.mrb[0].mxu0
      %v2015 = vadd.f32 0.0, %v2014
      %v2016 = vpop.f32.mrb[0].mxu0
      %2017 = vmatprep.mubr.f32.mxu0 0.0
      %2018 = vmatmul.mubr.f32.gmra.mrb[0].mxu0 %v1811
      %v2019 = vpop.f32.mrb[0].mxu0
      %v2020 = vadd.f32 0.0, %v2019
      %v2021 = vpop.f32.mrb[0].mxu0
      %2022 = vmatprep.mubr.f32.mxu0 0.0
      %2023 = vmatmul.mubr.f32.gmra.mrb[0].mxu0 %v1813
      %v2024 = vpop.f32.mrb[0].mxu0
      %v2025 = vadd.f32 0.0, %v2024
      %v2026 = vpop.f32.mrb[0].mxu0
      %2027 = vmatprep.mubr.f32.mxu0 0.0
      %2028 = vmatmul.mubr.f32.gmra.mrb[0].mxu0 %v1815
      %v2029 = vpop.f32.mrb[0].mxu0
      %v2030 = vadd.f32 0.0, %v2029
      %v2031 = vpop.f32.mrb[0].mxu0
      %2032 = vmatprep.mubr.f32.mxu0 0.0
      %2033 = vmatmul.mubr.f32.gmra.mrb[0].mxu0 %v1817
      %v2034 = vpop.f32.mrb[0].mxu0
      %v2035 = vadd.f32 0.0, %v2034
      %v2036 = vpop.f32.mrb[0].mxu0
      %2037 = vmatprep.mubr.f32.mxu0 0.0
      %2038 = vmatmul.mubr.f32.gmra.mrb[0].mxu0 %v1819
      %v2039 = vpop.f32.mrb[0].mxu0
      %v2040 = vadd.f32 0.0, %v2039
      %v2041 = vpop.f32.mrb[0].mxu0
      %2042 = vmatprep.mubr.f32.mxu0 0.0
      %2043 = vmatmul.mubr.f32.gmra.mrb[0].mxu0 %v1821
      %v2044 = vpop.f32.mrb[0].mxu0
      %v2045 = vadd.f32 0.0, %v2044
      %v2046 = vpop.f32.mrb[0].mxu0
      %2047 = vmatprep.mubr.f32.mxu0 0.0
      %2048 = vmatmul.mubr.f32.gmra.mrb[0].mxu0 %v1823
      %v2049 = vpop.f32.mrb[0].mxu0
      %v2050 = vadd.f32 0.0, %v2049
      %v2051 = vpop.f32.mrb[0].mxu0
      %2052 = vmatprep.mubr.f32.mxu0 0.0
      %2053 = vmatmul.mubr.f32.gmra.mrb[0].mxu0 %v1825
      %v2054 = vpop.f32.mrb[0].mxu0
      %v2055 = vadd.f32 0.0, %v2054
      %v2056 = vpop.f32.mrb[0].mxu0
      %2057 = vmatprep.mubr.f32.mxu0 0.0
      %2058 = vmatmul.mubr.f32.gmra.mrb[0].mxu0 %v1827
      %v2059 = vpop.f32.mrb[0].mxu0
      %v2060 = vadd.f32 0.0, %v2059
      %v2061 = vpop.f32.mrb[0].mxu0
      %2062 = vmatprep.mubr.f32.mxu0 0.0
      %2063 = vmatmul.mubr.f32.gmra.mrb[0].mxu0 %v1829
      %v2064 = vpop.f32.mrb[0].mxu0
      %v2065 = vadd.f32 0.0, %v2064
      %v2066 = vpop.f32.mrb[0].mxu0
      %2067 = vmatprep.mubr.f32.mxu0 0.0
      %2068 = vmatmul.mubr.f32.gmra.mrb[0].mxu0 %v1831
      %v2069 = vpop.f32.mrb[0].mxu0
      %v2070 = vadd.f32 0.0, %v2069
      %v2071 = vpop.f32.mrb[0].mxu0
      %2072 = vdwg.mxu0
      %v2073 = vrcp.pop %v1833
      %v2074 = vrcp.pop %v1835
      %v2075 = vrcp.pop %v1837
      %v2076 = vrcp.pop %v1839
      %v2077 = vrcp.pop %v1841
      %v2078 = vrcp.pop %v1843
      %v2079 = vrcp.pop %v1845
      %v2080 = vrcp.pop %v1847
      %v2081 = vrcp.pop %v1849
      %v2082 = vrcp.pop %v1851
      %v2083 = vrcp.pop %v1853
      %v2084 = vrcp.pop %v1855
      %v2085 = vrcp.pop %v1857
      %v2086 = vrcp.pop %v1859
      %v2087 = vrcp.pop %v1861
      %v2088 = vrcp.pop %v1863
      %v2089 = vmul.f32 %v1995, %v2073
      %v2090 = vmul.f32 %v2000, %v2074
      %v2091 = vmul.f32 %v2005, %v2075
      %v2092 = vmul.f32 %v2010, %v2076
      %v2093 = vmul.f32 %v2015, %v2077
      %v2094 = vmul.f32 %v2020, %v2078
      %v2095 = vmul.f32 %v2025, %v2079
      %v2096 = vmul.f32 %v2030, %v2080
      %v2097 = vmul.f32 %v2035, %v2081
      %v2098 = vmul.f32 %v2040, %v2082
      %v2099 = vmul.f32 %v2045, %v2083
      %v2100 = vmul.f32 %v2050, %v2084
      %v2101 = vmul.f32 %v2055, %v2085
      %v2102 = vmul.f32 %v2060, %v2086
      %v2103 = vmul.f32 %v2065, %v2087
      %v2104 = vmul.f32 %v2070, %v2088
      %v2105 = vld [vmem:[%s4 + $0x40] sm:$0xff]
      %v2106 = vld [vmem:[%s4 + $0x48] sm:$0xff]
      %v2107 = vld [vmem:[%s4 + $0x50] sm:$0xff]
      %v2108 = vld [vmem:[%s4 + $0x58] sm:$0xff]
      %v2109 = vld [vmem:[%s4 + $0x60] sm:$0xff]
      %v2110 = vld [vmem:[%s4 + $0x68] sm:$0xff]
      %v2111 = vld [vmem:[%s4 + $0x70] sm:$0xff]
      %v2112 = vld [vmem:[%s4 + $0x78] sm:$0xff]
      %v2114 = vsel %vm870, %v2089, 0
      %v2117 = vsel %vm870, %v2090, 0
      %v2120 = vsel %vm870, %v2091, 0
      %v2123 = vsel %vm870, %v2092, 0
      %v2126 = vsel %vm870, %v2093, 0
      %v2129 = vsel %vm870, %v2094, 0
      %v2132 = vsel %vm870, %v2095, 0
      %v2135 = vsel %vm870, %v2096, 0
      %v2138 = vsel %vm870, %v2097, 0
      %v2141 = vsel %vm870, %v2098, 0
      %v2144 = vsel %vm870, %v2099, 0
      %v2147 = vsel %vm870, %v2100, 0
      %v2150 = vsel %vm870, %v2101, 0
      %v2153 = vsel %vm870, %v2102, 0
      %v2156 = vsel %vm870, %v2103, 0
      %v2159 = vsel %vm870, %v2104, 0
      %2161 = vmatprep.subr.mxu0 0.0
      %2162 = vmatpush1.msra.mxu0 %v2105
      %2163 = vmatprep.subr.mxu0 0.0
      %2164 = vmatpush1.msra.mxu0 %v2106
      %2165 = vmatprep.subr.mxu0 0.0
      %2166 = vmatpush1.msra.mxu0 %v2107
      %2167 = vmatprep.subr.mxu0 0.0
      %2168 = vmatpush1.msra.mxu0 %v2108
      %2169 = vmatprep.subr.mxu0 0.0
      %2170 = vmatpush1.msra.mxu0 %v2109
      %2171 = vmatprep.subr.mxu0 0.0
      %2172 = vmatpush1.msra.mxu0 %v2110
      %2173 = vmatprep.subr.mxu0 0.0
      %2174 = vmatpush1.msra.mxu0 %v2111
      %2175 = vmatprep.subr.mxu0 0.0
      %2176 = vmatpush1.msra.mxu0 %v2112
      %2177 = vmatprep.subr.mxu0 0.0
      %2178 = vmatpush1.msra.mxu0 0.0
      %2179 = vmatprep.subr.mxu0 0.0
      %2180 = vmatpush1.msra.mxu0 0.0
      %2181 = vmatprep.subr.mxu0 0.0
      %2182 = vmatpush1.msra.mxu0 0.0
      %2183 = vmatprep.subr.mxu0 0.0
      %2184 = vmatpush1.msra.mxu0 0.0
      %2185 = vmatprep.subr.mxu0 0.0
      %2186 = vmatpush1.msra.mxu0 0.0
      %2187 = vmatprep.subr.mxu0 0.0
      %2188 = vmatpush1.msra.mxu0 0.0
      %2189 = vmatprep.subr.mxu0 0.0
      %2190 = vmatpush1.msra.mxu0 0.0
      %2191 = vmatprep.subr.mxu0 0.0
      %2192 = vmatpush1.msra.mxu0 0.0
      %2193 = vmatprep.subr.mxu0 0.0
      %2194 = vmatpush1.msra.mxu0 0.0
      %2195 = vmatprep.subr.mxu0 0.0
      %2196 = vmatpush1.msra.mxu0 0.0
      %2197 = vmatprep.subr.mxu0 0.0
      %2198 = vmatpush1.msra.mxu0 0.0
      %2199 = vmatprep.subr.mxu0 0.0
      %2200 = vmatpush1.msra.mxu0 0.0
      %2201 = vmatprep.subr.mxu0 0.0
      %2202 = vmatpush1.msra.mxu0 0.0
      %2203 = vmatprep.subr.mxu0 0.0
      %2204 = vmatpush1.msra.mxu0 0.0
      %2205 = vmatprep.subr.mxu0 0.0
      %2206 = vmatpush1.msra.mxu0 0.0
      %2207 = vmatprep.subr.mxu0 0.0
      %2208 = vmatpush1.msra.mxu0 0.0
      %2209 = vmatprep.subr.mxu0 0.0
      %2210 = vmatpush1.msra.mxu0 0.0
      %2211 = vmatprep.subr.mxu0 0.0
      %2212 = vmatpush1.msra.mxu0 0.0
      %2213 = vmatprep.subr.mxu0 0.0
      %2214 = vmatpush1.msra.mxu0 0.0
      %2215 = vmatprep.subr.mxu0 0.0
      %2216 = vmatpush1.msra.mxu0 0.0
      %2217 = vmatprep.subr.mxu0 0.0
      %2218 = vmatpush1.msra.mxu0 0.0
      %2219 = vmatprep.subr.mxu0 0.0
      %2220 = vmatpush1.msra.mxu0 0.0
      %2221 = vmatprep.subr.mxu0 0.0
      %2222 = vmatpush1.msra.mxu0 0.0
      %2223 = vmatprep.subr.mxu0 0.0
      %2224 = vmatpush1.msra.mxu0 0.0
      %2225 = vmatprep.mubr.f32.mxu0 0.0
      %2226 = vmatmul.mubr.f32.gmra.mrb[0].mxu0 %v2114
      %v2227 = vpop.f32.mrb[0].mxu0
      %v2228 = vadd.f32 0.0, %v2227
      %v2229 = vpop.f32.mrb[0].mxu0
      %2230 = vmatprep.mubr.f32.mxu0 0.0
      %2231 = vmatmul.mubr.f32.gmra.mrb[0].mxu0 %v2117
      %v2232 = vpop.f32.mrb[0].mxu0
      %v2233 = vadd.f32 0.0, %v2232
      %v2234 = vpop.f32.mrb[0].mxu0
      %2235 = vmatprep.mubr.f32.mxu0 0.0
      %2236 = vmatmul.mubr.f32.gmra.mrb[0].mxu0 %v2120
      %v2237 = vpop.f32.mrb[0].mxu0
      %v2238 = vadd.f32 0.0, %v2237
      %v2239 = vpop.f32.mrb[0].mxu0
      %2240 = vmatprep.mubr.f32.mxu0 0.0
      %2241 = vmatmul.mubr.f32.gmra.mrb[0].mxu0 %v2123
      %v2242 = vpop.f32.mrb[0].mxu0
      %v2243 = vadd.f32 0.0, %v2242
      %v2244 = vpop.f32.mrb[0].mxu0
      %2245 = vmatprep.mubr.f32.mxu0 0.0
      %2246 = vmatmul.mubr.f32.gmra.mrb[0].mxu0 %v2126
      %v2247 = vpop.f32.mrb[0].mxu0
      %v2248 = vadd.f32 0.0, %v2247
      %v2249 = vpop.f32.mrb[0].mxu0
      %2250 = vmatprep.mubr.f32.mxu0 0.0
      %2251 = vmatmul.mubr.f32.gmra.mrb[0].mxu0 %v2129
      %v2252 = vpop.f32.mrb[0].mxu0
      %v2253 = vadd.f32 0.0, %v2252
      %v2254 = vpop.f32.mrb[0].mxu0
      %2255 = vmatprep.mubr.f32.mxu0 0.0
      %2256 = vmatmul.mubr.f32.gmra.mrb[0].mxu0 %v2132
      %v2257 = vpop.f32.mrb[0].mxu0
      %v2258 = vadd.f32 0.0, %v2257
      %v2259 = vpop.f32.mrb[0].mxu0
      %2260 = vmatprep.mubr.f32.mxu0 0.0
      %2261 = vmatmul.mubr.f32.gmra.mrb[0].mxu0 %v2135
      %v2262 = vpop.f32.mrb[0].mxu0
      %v2263 = vadd.f32 0.0, %v2262
      %v2264 = vpop.f32.mrb[0].mxu0
      %2265 = vmatprep.mubr.f32.mxu0 0.0
      %2266 = vmatmul.mubr.f32.gmra.mrb[0].mxu0 %v2138
      %v2267 = vpop.f32.mrb[0].mxu0
      %v2268 = vadd.f32 0.0, %v2267
      %v2269 = vpop.f32.mrb[0].mxu0
      %2270 = vmatprep.mubr.f32.mxu0 0.0
      %2271 = vmatmul.mubr.f32.gmra.mrb[0].mxu0 %v2141
      %v2272 = vpop.f32.mrb[0].mxu0
      %v2273 = vadd.f32 0.0, %v2272
      %v2274 = vpop.f32.mrb[0].mxu0
      %2275 = vmatprep.mubr.f32.mxu0 0.0
      %2276 = vmatmul.mubr.f32.gmra.mrb[0].mxu0 %v2144
      %v2277 = vpop.f32.mrb[0].mxu0
      %v2278 = vadd.f32 0.0, %v2277
      %v2279 = vpop.f32.mrb[0].mxu0
      %2280 = vmatprep.mubr.f32.mxu0 0.0
      %2281 = vmatmul.mubr.f32.gmra.mrb[0].mxu0 %v2147
      %v2282 = vpop.f32.mrb[0].mxu0
      %v2283 = vadd.f32 0.0, %v2282
      %v2284 = vpop.f32.mrb[0].mxu0
      %2285 = vmatprep.mubr.f32.mxu0 0.0
      %2286 = vmatmul.mubr.f32.gmra.mrb[0].mxu0 %v2150
      %v2287 = vpop.f32.mrb[0].mxu0
      %v2288 = vadd.f32 0.0, %v2287
      %v2289 = vpop.f32.mrb[0].mxu0
      %2290 = vmatprep.mubr.f32.mxu0 0.0
      %2291 = vmatmul.mubr.f32.gmra.mrb[0].mxu0 %v2153
      %v2292 = vpop.f32.mrb[0].mxu0
      %v2293 = vadd.f32 0.0, %v2292
      %v2294 = vpop.f32.mrb[0].mxu0
      %2295 = vmatprep.mubr.f32.mxu0 0.0
      %2296 = vmatmul.mubr.f32.gmra.mrb[0].mxu0 %v2156
      %v2297 = vpop.f32.mrb[0].mxu0
      %v2298 = vadd.f32 0.0, %v2297
      %v2299 = vpop.f32.mrb[0].mxu0
      %2300 = vmatprep.mubr.f32.mxu0 0.0
      %2301 = vmatmul.mubr.f32.gmra.mrb[0].mxu0 %v2159
      %v2302 = vpop.f32.mrb[0].mxu0
      %v2303 = vadd.f32 0.0, %v2302
      %v2304 = vpop.f32.mrb[0].mxu0
      %2305 = vdwg.mxu0
      %v2307 = vsel %vm870, %v1423, 0
      %v2310 = vsel %vm870, %v1424, 0
      %v2313 = vsel %vm870, %v1425, 0
      %v2316 = vsel %vm870, %v1426, 0
      %v2319 = vsel %vm870, %v1427, 0
      %v2322 = vsel %vm870, %v1428, 0
      %v2325 = vsel %vm870, %v1429, 0
      %v2328 = vsel %vm870, %v1430, 0
      %v2331 = vsel %vm870, %v1431, 0
      %v2334 = vsel %vm870, %v1432, 0
      %v2337 = vsel %vm870, %v1433, 0
      %v2340 = vsel %vm870, %v1434, 0
      %v2343 = vsel %vm870, %v1435, 0
      %v2346 = vsel %vm870, %v1436, 0
      %v2349 = vsel %vm870, %v1437, 0
      %v2352 = vsel %vm870, %v1438, 0
      %2354 = vmatprep.subr.mxu0 0.0
      %2355 = vmatpush1.msra.mxu0 %v1439
      %2356 = vmatprep.subr.mxu0 0.0
      %2357 = vmatpush1.msra.mxu0 %v1440
      %2358 = vmatprep.subr.mxu0 0.0
      %2359 = vmatpush1.msra.mxu0 %v1441
      %2360 = vmatprep.subr.mxu0 0.0
      %2361 = vmatpush1.msra.mxu0 %v1442
      %2362 = vmatprep.subr.mxu0 0.0
      %2363 = vmatpush1.msra.mxu0 %v1443
      %2364 = vmatprep.subr.mxu0 0.0
      %2365 = vmatpush1.msra.mxu0 %v1444
      %2366 = vmatprep.subr.mxu0 0.0
      %2367 = vmatpush1.msra.mxu0 %v1445
      %2368 = vmatprep.subr.mxu0 0.0
      %2369 = vmatpush1.msra.mxu0 %v1446
      %2370 = vmatprep.subr.mxu0 0.0
      %2371 = vmatpush1.msra.mxu0 0.0
      %2372 = vmatprep.subr.mxu0 0.0
      %2373 = vmatpush1.msra.mxu0 0.0
      %2374 = vmatprep.subr.mxu0 0.0
      %2375 = vmatpush1.msra.mxu0 0.0
      %2376 = vmatprep.subr.mxu0 0.0
      %2377 = vmatpush1.msra.mxu0 0.0
      %2378 = vmatprep.subr.mxu0 0.0
      %2379 = vmatpush1.msra.mxu0 0.0
      %2380 = vmatprep.subr.mxu0 0.0
      %2381 = vmatpush1.msra.mxu0 0.0
      %2382 = vmatprep.subr.mxu0 0.0
      %2383 = vmatpush1.msra.mxu0 0.0
      %2384 = vmatprep.subr.mxu0 0.0
      %2385 = vmatpush1.msra.mxu0 0.0
      %2386 = vmatprep.subr.mxu0 0.0
      %2387 = vmatpush1.msra.mxu0 0.0
      %2388 = vmatprep.subr.mxu0 0.0
      %2389 = vmatpush1.msra.mxu0 0.0
      %2390 = vmatprep.subr.mxu0 0.0
      %2391 = vmatpush1.msra.mxu0 0.0
      %2392 = vmatprep.subr.mxu0 0.0
      %2393 = vmatpush1.msra.mxu0 0.0
      %2394 = vmatprep.subr.mxu0 0.0
      %2395 = vmatpush1.msra.mxu0 0.0
      %2396 = vmatprep.subr.mxu0 0.0
      %2397 = vmatpush1.msra.mxu0 0.0
      %2398 = vmatprep.subr.mxu0 0.0
      %2399 = vmatpush1.msra.mxu0 0.0
      %2400 = vmatprep.subr.mxu0 0.0
      %2401 = vmatpush1.msra.mxu0 0.0
      %2402 = vmatprep.subr.mxu0 0.0
      %2403 = vmatpush1.msra.mxu0 0.0
      %2404 = vmatprep.subr.mxu0 0.0
      %2405 = vmatpush1.msra.mxu0 0.0
      %2406 = vmatprep.subr.mxu0 0.0
      %2407 = vmatpush1.msra.mxu0 0.0
      %2408 = vmatprep.subr.mxu0 0.0
      %2409 = vmatpush1.msra.mxu0 0.0
      %2410 = vmatprep.subr.mxu0 0.0
      %2411 = vmatpush1.msra.mxu0 0.0
      %2412 = vmatprep.subr.mxu0 0.0
      %2413 = vmatpush1.msra.mxu0 0.0
      %2414 = vmatprep.subr.mxu0 0.0
      %2415 = vmatpush1.msra.mxu0 0.0
      %2416 = vmatprep.subr.mxu0 0.0
      %2417 = vmatpush1.msra.mxu0 0.0
      %2418 = vmatprep.mubr.f32.mxu0 0.0
      %2419 = vmatmul.mubr.f32.gmra.mrb[0].mxu0 %v2307
      %v2420 = vpop.f32.mrb[0].mxu0
      %v2421 = vadd.f32 %v2228, %v2420
      %v2422 = vpop.f32.mrb[0].mxu0
      %2423 = vmatprep.mubr.f32.mxu0 0.0
      %2424 = vmatmul.mubr.f32.gmra.mrb[0].mxu0 %v2310
      %v2425 = vpop.f32.mrb[0].mxu0
      %v2426 = vadd.f32 %v2233, %v2425
      %v2427 = vpop.f32.mrb[0].mxu0
      %2428 = vmatprep.mubr.f32.mxu0 0.0
      %2429 = vmatmul.mubr.f32.gmra.mrb[0].mxu0 %v2313
      %v2430 = vpop.f32.mrb[0].mxu0
      %v2431 = vadd.f32 %v2238, %v2430
      %v2432 = vpop.f32.mrb[0].mxu0
      %2433 = vmatprep.mubr.f32.mxu0 0.0
      %2434 = vmatmul.mubr.f32.gmra.mrb[0].mxu0 %v2316
      %v2435 = vpop.f32.mrb[0].mxu0
      %v2436 = vadd.f32 %v2243, %v2435
      %v2437 = vpop.f32.mrb[0].mxu0
      %2438 = vmatprep.mubr.f32.mxu0 0.0
      %2439 = vmatmul.mubr.f32.gmra.mrb[0].mxu0 %v2319
      %v2440 = vpop.f32.mrb[0].mxu0
      %v2441 = vadd.f32 %v2248, %v2440
      %v2442 = vpop.f32.mrb[0].mxu0
      %2443 = vmatprep.mubr.f32.mxu0 0.0
      %2444 = vmatmul.mubr.f32.gmra.mrb[0].mxu0 %v2322
      %v2445 = vpop.f32.mrb[0].mxu0
      %v2446 = vadd.f32 %v2253, %v2445
      %v2447 = vpop.f32.mrb[0].mxu0
      %2448 = vmatprep.mubr.f32.mxu0 0.0
      %2449 = vmatmul.mubr.f32.gmra.mrb[0].mxu0 %v2325
      %v2450 = vpop.f32.mrb[0].mxu0
      %v2451 = vadd.f32 %v2258, %v2450
      %v2452 = vpop.f32.mrb[0].mxu0
      %2453 = vmatprep.mubr.f32.mxu0 0.0
      %2454 = vmatmul.mubr.f32.gmra.mrb[0].mxu0 %v2328
      %v2455 = vpop.f32.mrb[0].mxu0
      %v2456 = vadd.f32 %v2263, %v2455
      %v2457 = vpop.f32.mrb[0].mxu0
      %2458 = vmatprep.mubr.f32.mxu0 0.0
      %2459 = vmatmul.mubr.f32.gmra.mrb[0].mxu0 %v2331
      %v2460 = vpop.f32.mrb[0].mxu0
      %v2461 = vadd.f32 %v2268, %v2460
      %v2462 = vpop.f32.mrb[0].mxu0
      %2463 = vmatprep.mubr.f32.mxu0 0.0
      %2464 = vmatmul.mubr.f32.gmra.mrb[0].mxu0 %v2334
      %v2465 = vpop.f32.mrb[0].mxu0
      %v2466 = vadd.f32 %v2273, %v2465
      %v2467 = vpop.f32.mrb[0].mxu0
      %2468 = vmatprep.mubr.f32.mxu0 0.0
      %2469 = vmatmul.mubr.f32.gmra.mrb[0].mxu0 %v2337
      %v2470 = vpop.f32.mrb[0].mxu0
      %v2471 = vadd.f32 %v2278, %v2470
      %v2472 = vpop.f32.mrb[0].mxu0
      %2473 = vmatprep.mubr.f32.mxu0 0.0
      %2474 = vmatmul.mubr.f32.gmra.mrb[0].mxu0 %v2340
      %v2475 = vpop.f32.mrb[0].mxu0
      %v2476 = vadd.f32 %v2283, %v2475
      %v2477 = vpop.f32.mrb[0].mxu0
      %2478 = vmatprep.mubr.f32.mxu0 0.0
      %2479 = vmatmul.mubr.f32.gmra.mrb[0].mxu0 %v2343
      %v2480 = vpop.f32.mrb[0].mxu0
      %v2481 = vadd.f32 %v2288, %v2480
      %v2482 = vpop.f32.mrb[0].mxu0
      %2483 = vmatprep.mubr.f32.mxu0 0.0
      %2484 = vmatmul.mubr.f32.gmra.mrb[0].mxu0 %v2346
      %v2485 = vpop.f32.mrb[0].mxu0
      %v2486 = vadd.f32 %v2293, %v2485
      %v2487 = vpop.f32.mrb[0].mxu0
      %2488 = vmatprep.mubr.f32.mxu0 0.0
      %2489 = vmatmul.mubr.f32.gmra.mrb[0].mxu0 %v2349
      %v2490 = vpop.f32.mrb[0].mxu0
      %v2491 = vadd.f32 %v2298, %v2490
      %v2492 = vpop.f32.mrb[0].mxu0
      %2493 = vmatprep.mubr.f32.mxu0 0.0
      %2494 = vmatmul.mubr.f32.gmra.mrb[0].mxu0 %v2352
      %v2495 = vpop.f32.mrb[0].mxu0
      %v2496 = vadd.f32 %v2303, %v2495
      %v2497 = vpop.f32.mrb[0].mxu0
      %2498 = vdwg.mxu0
      %v2499 = vld [vmem:[%s5] sm:$0x1]
      %v2501 = vlaneseq
      %v2502 = vshrl.u32 %v2501, 7
      %v2503 = vsub.s32 0, %v2502
      %v2504 = vrot.slane %v2499, %v2503
      %v2506 = vadd.f32 %v2421, %v2504
      %v2507 = vadd.f32 %v2426, %v2504
      %v2508 = vadd.f32 %v2431, %v2504
      %v2509 = vadd.f32 %v2436, %v2504
      %v2510 = vadd.f32 %v2441, %v2504
      %v2511 = vadd.f32 %v2446, %v2504
      %v2512 = vadd.f32 %v2451, %v2504
      %v2513 = vadd.f32 %v2456, %v2504
      %v2514 = vadd.f32 %v2461, %v2504
      %v2515 = vadd.f32 %v2466, %v2504
      %v2516 = vadd.f32 %v2471, %v2504
      %v2517 = vadd.f32 %v2476, %v2504
      %v2518 = vadd.f32 %v2481, %v2504
      %v2519 = vadd.f32 %v2486, %v2504
      %v2520 = vadd.f32 %v2491, %v2504
      %v2521 = vadd.f32 %v2496, %v2504
      %v2522 = vadd.f32 %v2506, %v482
      %v2523 = vadd.f32 %v2507, %v483
      %v2524 = vadd.f32 %v2508, %v484
      %v2525 = vadd.f32 %v2509, %v485
      %v2526 = vadd.f32 %v2510, %v486
      %v2527 = vadd.f32 %v2511, %v487
      %v2528 = vadd.f32 %v2512, %v488
      %v2529 = vadd.f32 %v2513, %v489
      %v2530 = vadd.f32 %v2514, %v490
      %v2531 = vadd.f32 %v2515, %v491
      %v2532 = vadd.f32 %v2516, %v492
      %v2533 = vadd.f32 %v2517, %v493
      %v2534 = vadd.f32 %v2518, %v494
      %v2535 = vadd.f32 %v2519, %v495
      %v2536 = vadd.f32 %v2520, %v496
      %v2537 = vadd.f32 %v2521, %v497
      %v2538 = vld [vmem:[%s6] sm:$0x1]
      %v2539 = vld [vmem:[%s7] sm:$0x1]
      %2540 = vadd.xlane.f32.xlu0 %v2522
      %v2541 = vpop.xlane.xlu0 %2540
      %2542 = vadd.xlane.f32.xlu0 %v2523
      %v2543 = vpop.xlane.xlu0 %2542
      %2544 = vadd.xlane.f32.xlu0 %v2524
      %v2545 = vpop.xlane.xlu0 %2544
      %2546 = vadd.xlane.f32.xlu0 %v2525
      %v2547 = vpop.xlane.xlu0 %2546
      %2548 = vadd.xlane.f32.xlu0 %v2526
      %v2549 = vpop.xlane.xlu0 %2548
      %2550 = vadd.xlane.f32.xlu0 %v2527
      %v2551 = vpop.xlane.xlu0 %2550
      %2552 = vadd.xlane.f32.xlu0 %v2528
      %v2553 = vpop.xlane.xlu0 %2552
      %2554 = vadd.xlane.f32.xlu0 %v2529
      %v2555 = vpop.xlane.xlu0 %2554
      %2556 = vadd.xlane.f32.xlu0 %v2530
      %v2557 = vpop.xlane.xlu0 %2556
      %2558 = vadd.xlane.f32.xlu0 %v2531
      %v2559 = vpop.xlane.xlu0 %2558
      %2560 = vadd.xlane.f32.xlu0 %v2532
      %v2561 = vpop.xlane.xlu0 %2560
      %2562 = vadd.xlane.f32.xlu0 %v2533
      %v2563 = vpop.xlane.xlu0 %2562
      %2564 = vadd.xlane.f32.xlu0 %v2534
      %v2565 = vpop.xlane.xlu0 %2564
      %2566 = vadd.xlane.f32.xlu0 %v2535
      %v2567 = vpop.xlane.xlu0 %2566
      %2568 = vadd.xlane.f32.xlu0 %v2536
      %v2569 = vpop.xlane.xlu0 %2568
      %2570 = vadd.xlane.f32.xlu0 %v2537
      %v2571 = vpop.xlane.xlu0 %2570
      %v2572 = vrcp.pop 128.0
      %v2573 = vmul.f32 %v2541, %v2572
      %v2574 = vmul.f32 %v2543, %v2572
      %v2575 = vmul.f32 %v2545, %v2572
      %v2576 = vmul.f32 %v2547, %v2572
      %v2577 = vmul.f32 %v2549, %v2572
      %v2578 = vmul.f32 %v2551, %v2572
      %v2579 = vmul.f32 %v2553, %v2572
      %v2580 = vmul.f32 %v2555, %v2572
      %v2581 = vmul.f32 %v2557, %v2572
      %v2582 = vmul.f32 %v2559, %v2572
      %v2583 = vmul.f32 %v2561, %v2572
      %v2584 = vmul.f32 %v2563, %v2572
      %v2585 = vmul.f32 %v2565, %v2572
      %v2586 = vmul.f32 %v2567, %v2572
      %v2587 = vmul.f32 %v2569, %v2572
      %v2588 = vmul.f32 %v2571, %v2572
      %v2589 = vsub.f32 %v2522, %v2573
      %v2590 = vsub.f32 %v2523, %v2574
      %v2591 = vsub.f32 %v2524, %v2575
      %v2592 = vsub.f32 %v2525, %v2576
      %v2593 = vsub.f32 %v2526, %v2577
      %v2594 = vsub.f32 %v2527, %v2578
      %v2595 = vsub.f32 %v2528, %v2579
      %v2596 = vsub.f32 %v2529, %v2580
      %v2597 = vsub.f32 %v2530, %v2581
      %v2598 = vsub.f32 %v2531, %v2582
      %v2599 = vsub.f32 %v2532, %v2583
      %v2600 = vsub.f32 %v2533, %v2584
      %v2601 = vsub.f32 %v2534, %v2585
      %v2602 = vsub.f32 %v2535, %v2586
      %v2603 = vsub.f32 %v2536, %v2587
      %v2604 = vsub.f32 %v2537, %v2588
      %v2605 = vmul.f32 %v2589, %v2589
      %v2606 = vmul.f32 %v2590, %v2590
      %v2607 = vmul.f32 %v2591, %v2591
      %v2608 = vmul.f32 %v2592, %v2592
      %v2609 = vmul.f32 %v2593, %v2593
      %v2610 = vmul.f32 %v2594, %v2594
      %v2611 = vmul.f32 %v2595, %v2595
      %v2612 = vmul.f32 %v2596, %v2596
      %v2613 = vmul.f32 %v2597, %v2597
      %v2614 = vmul.f32 %v2598, %v2598
      %v2615 = vmul.f32 %v2599, %v2599
      %v2616 = vmul.f32 %v2600, %v2600
      %v2617 = vmul.f32 %v2601, %v2601
      %v2618 = vmul.f32 %v2602, %v2602
      %v2619 = vmul.f32 %v2603, %v2603
      %v2620 = vmul.f32 %v2604, %v2604
      %2621 = vadd.xlane.f32.xlu0 %v2605
      %v2622 = vpop.xlane.xlu0 %2621
      %2623 = vadd.xlane.f32.xlu0 %v2606
      %v2624 = vpop.xlane.xlu0 %2623
      %2625 = vadd.xlane.f32.xlu0 %v2607
      %v2626 = vpop.xlane.xlu0 %2625
      %2627 = vadd.xlane.f32.xlu0 %v2608
      %v2628 = vpop.xlane.xlu0 %2627
      %2629 = vadd.xlane.f32.xlu0 %v2609
      %v2630 = vpop.xlane.xlu0 %2629
      %2631 = vadd.xlane.f32.xlu0 %v2610
      %v2632 = vpop.xlane.xlu0 %2631
      %2633 = vadd.xlane.f32.xlu0 %v2611
      %v2634 = vpop.xlane.xlu0 %2633
      %2635 = vadd.xlane.f32.xlu0 %v2612
      %v2636 = vpop.xlane.xlu0 %2635
      %2637 = vadd.xlane.f32.xlu0 %v2613
      %v2638 = vpop.xlane.xlu0 %2637
      %2639 = vadd.xlane.f32.xlu0 %v2614
      %v2640 = vpop.xlane.xlu0 %2639
      %2641 = vadd.xlane.f32.xlu0 %v2615
      %v2642 = vpop.xlane.xlu0 %2641
      %2643 = vadd.xlane.f32.xlu0 %v2616
      %v2644 = vpop.xlane.xlu0 %2643
      %2645 = vadd.xlane.f32.xlu0 %v2617
      %v2646 = vpop.xlane.xlu0 %2645
      %2647 = vadd.xlane.f32.xlu0 %v2618
      %v2648 = vpop.xlane.xlu0 %2647
      %2649 = vadd.xlane.f32.xlu0 %v2619
      %v2650 = vpop.xlane.xlu0 %2649
      %2651 = vadd.xlane.f32.xlu0 %v2620
      %v2652 = vpop.xlane.xlu0 %2651
      %v2653 = vmul.f32 %v2622, %v2572
      %v2654 = vmul.f32 %v2624, %v2572
      %v2655 = vmul.f32 %v2626, %v2572
      %v2656 = vmul.f32 %v2628, %v2572
      %v2657 = vmul.f32 %v2630, %v2572
      %v2658 = vmul.f32 %v2632, %v2572
      %v2659 = vmul.f32 %v2634, %v2572
      %v2660 = vmul.f32 %v2636, %v2572
      %v2661 = vmul.f32 %v2638, %v2572
      %v2662 = vmul.f32 %v2640, %v2572
      %v2663 = vmul.f32 %v2642, %v2572
      %v2664 = vmul.f32 %v2644, %v2572
      %v2665 = vmul.f32 %v2646, %v2572
      %v2666 = vmul.f32 %v2648, %v2572
      %v2667 = vmul.f32 %v2650, %v2572
      %v2668 = vmul.f32 %v2652, %v2572
      %v2669 = vadd.f32 %v2653, 1e-12
      %v2670 = vadd.f32 %v2654, 1e-12
      %v2671 = vadd.f32 %v2655, 1e-12
      %v2672 = vadd.f32 %v2656, 1e-12
      %v2673 = vadd.f32 %v2657, 1e-12
      %v2674 = vadd.f32 %v2658, 1e-12
      %v2675 = vadd.f32 %v2659, 1e-12
      %v2676 = vadd.f32 %v2660, 1e-12
      %v2677 = vadd.f32 %v2661, 1e-12
      %v2678 = vadd.f32 %v2662, 1e-12
      %v2679 = vadd.f32 %v2663, 1e-12
      %v2680 = vadd.f32 %v2664, 1e-12
      %v2681 = vadd.f32 %v2665, 1e-12
      %v2682 = vadd.f32 %v2666, 1e-12
      %v2683 = vadd.f32 %v2667, 1e-12
      %v2684 = vadd.f32 %v2668, 1e-12
      %v2685 = vrsqrt.pop %v2669
      %v2686 = vrsqrt.pop %v2670
      %v2687 = vrsqrt.pop %v2671
      %v2688 = vrsqrt.pop %v2672
      %v2689 = vrsqrt.pop %v2673
      %v2690 = vrsqrt.pop %v2674
      %v2691 = vrsqrt.pop %v2675
      %v2692 = vrsqrt.pop %v2676
      %v2693 = vrsqrt.pop %v2677
      %v2694 = vrsqrt.pop %v2678
      %v2695 = vrsqrt.pop %v2679
      %v2696 = vrsqrt.pop %v2680
      %v2697 = vrsqrt.pop %v2681
      %v2698 = vrsqrt.pop %v2682
      %v2699 = vrsqrt.pop %v2683
      %v2700 = vrsqrt.pop %v2684
      %v2701 = vmul.f32 %v2589, %v2685
      %v2702 = vmul.f32 %v2590, %v2686
      %v2703 = vmul.f32 %v2591, %v2687
      %v2704 = vmul.f32 %v2592, %v2688
      %v2705 = vmul.f32 %v2593, %v2689
      %v2706 = vmul.f32 %v2594, %v2690
      %v2707 = vmul.f32 %v2595, %v2691
      %v2708 = vmul.f32 %v2596, %v2692
      %v2709 = vmul.f32 %v2597, %v2693
      %v2710 = vmul.f32 %v2598, %v2694
      %v2711 = vmul.f32 %v2599, %v2695
      %v2712 = vmul.f32 %v2600, %v2696
      %v2713 = vmul.f32 %v2601, %v2697
      %v2714 = vmul.f32 %v2602, %v2698
      %v2715 = vmul.f32 %v2603, %v2699
      %v2716 = vmul.f32 %v2604, %v2700
      %v2718 = vlaneseq
      %v2719 = vshrl.u32 %v2718, 7
      %v2720 = vsub.s32 0, %v2719
      %v2721 = vrot.slane %v2538, %v2720
      %v2723 = vmul.f32 %v2701, %v2721
      %v2724 = vmul.f32 %v2702, %v2721
      %v2725 = vmul.f32 %v2703, %v2721
      %v2726 = vmul.f32 %v2704, %v2721
      %v2727 = vmul.f32 %v2705, %v2721
      %v2728 = vmul.f32 %v2706, %v2721
      %v2729 = vmul.f32 %v2707, %v2721
      %v2730 = vmul.f32 %v2708, %v2721
      %v2731 = vmul.f32 %v2709, %v2721
      %v2732 = vmul.f32 %v2710, %v2721
      %v2733 = vmul.f32 %v2711, %v2721
      %v2734 = vmul.f32 %v2712, %v2721
      %v2735 = vmul.f32 %v2713, %v2721
      %v2736 = vmul.f32 %v2714, %v2721
      %v2737 = vmul.f32 %v2715, %v2721
      %v2738 = vmul.f32 %v2716, %v2721
      %v2740 = vlaneseq
      %v2741 = vshrl.u32 %v2740, 7
      %v2742 = vsub.s32 0, %v2741
      %v2743 = vrot.slane %v2539, %v2742
      %v2745 = vadd.f32 %v2723, %v2743
      %v2746 = vadd.f32 %v2724, %v2743
      %v2747 = vadd.f32 %v2725, %v2743
      %v2748 = vadd.f32 %v2726, %v2743
      %v2749 = vadd.f32 %v2727, %v2743
      %v2750 = vadd.f32 %v2728, %v2743
      %v2751 = vadd.f32 %v2729, %v2743
      %v2752 = vadd.f32 %v2730, %v2743
      %v2753 = vadd.f32 %v2731, %v2743
      %v2754 = vadd.f32 %v2732, %v2743
      %v2755 = vadd.f32 %v2733, %v2743
      %v2756 = vadd.f32 %v2734, %v2743
      %v2757 = vadd.f32 %v2735, %v2743
      %v2758 = vadd.f32 %v2736, %v2743
      %v2759 = vadd.f32 %v2737, %v2743
      %v2760 = vadd.f32 %v2738, %v2743
      %v2761 = vld [vmem:[%s8] sm:$0xff]
      %v2762 = vld [vmem:[%s8 + $0x8] sm:$0xff]
      %v2763 = vld [vmem:[%s8 + $0x10] sm:$0xff]
      %v2764 = vld [vmem:[%s8 + $0x18] sm:$0xff]
      %v2765 = vld [vmem:[%s8 + $0x20] sm:$0xff]
      %v2766 = vld [vmem:[%s8 + $0x28] sm:$0xff]
      %v2767 = vld [vmem:[%s8 + $0x30] sm:$0xff]
      %v2768 = vld [vmem:[%s8 + $0x38] sm:$0xff]
      %v2769 = vld [vmem:[%s8 + $0x40] sm:$0xff]
      %v2770 = vld [vmem:[%s8 + $0x48] sm:$0xff]
      %v2771 = vld [vmem:[%s8 + $0x50] sm:$0xff]
      %v2772 = vld [vmem:[%s8 + $0x58] sm:$0xff]
      %v2773 = vld [vmem:[%s8 + $0x60] sm:$0xff]
      %v2774 = vld [vmem:[%s8 + $0x68] sm:$0xff]
      %v2775 = vld [vmem:[%s8 + $0x70] sm:$0xff]
      %v2776 = vld [vmem:[%s8 + $0x78] sm:$0xff]
      %v2777 = vld [vmem:[%s8 + $0x80] sm:$0xff]
      %v2778 = vld [vmem:[%s8 + $0x88] sm:$0xff]
      %v2779 = vld [vmem:[%s8 + $0x90] sm:$0xff]
      %v2780 = vld [vmem:[%s8 + $0x98] sm:$0xff]
      %v2781 = vld [vmem:[%s8 + $0xa0] sm:$0xff]
      %v2782 = vld [vmem:[%s8 + $0xa8] sm:$0xff]
      %v2783 = vld [vmem:[%s8 + $0xb0] sm:$0xff]
      %v2784 = vld [vmem:[%s8 + $0xb8] sm:$0xff]
      %v2785 = vld [vmem:[%s8 + $0xc0] sm:$0xff]
      %v2786 = vld [vmem:[%s8 + $0xc8] sm:$0xff]
      %v2787 = vld [vmem:[%s8 + $0xd0] sm:$0xff]
      %v2788 = vld [vmem:[%s8 + $0xd8] sm:$0xff]
      %v2789 = vld [vmem:[%s8 + $0xe0] sm:$0xff]
      %v2790 = vld [vmem:[%s8 + $0xe8] sm:$0xff]
      %v2791 = vld [vmem:[%s8 + $0xf0] sm:$0xff]
      %v2792 = vld [vmem:[%s8 + $0xf8] sm:$0xff]
      %v2793 = vld [vmem:[%s8 + $0x100] sm:$0xff]
      %v2794 = vld [vmem:[%s8 + $0x108] sm:$0xff]
      %v2795 = vld [vmem:[%s8 + $0x110] sm:$0xff]
      %v2796 = vld [vmem:[%s8 + $0x118] sm:$0xff]
      %v2797 = vld [vmem:[%s8 + $0x120] sm:$0xff]
      %v2798 = vld [vmem:[%s8 + $0x128] sm:$0xff]
      %v2799 = vld [vmem:[%s8 + $0x130] sm:$0xff]
      %v2800 = vld [vmem:[%s8 + $0x138] sm:$0xff]
      %v2801 = vld [vmem:[%s8 + $0x140] sm:$0xff]
      %v2802 = vld [vmem:[%s8 + $0x148] sm:$0xff]
      %v2803 = vld [vmem:[%s8 + $0x150] sm:$0xff]
      %v2804 = vld [vmem:[%s8 + $0x158] sm:$0xff]
      %v2805 = vld [vmem:[%s8 + $0x160] sm:$0xff]
      %v2806 = vld [vmem:[%s8 + $0x168] sm:$0xff]
      %v2807 = vld [vmem:[%s8 + $0x170] sm:$0xff]
      %v2808 = vld [vmem:[%s8 + $0x178] sm:$0xff]
      %v2809 = vld [vmem:[%s8 + $0x180] sm:$0xff]
      %v2810 = vld [vmem:[%s8 + $0x188] sm:$0xff]
      %v2811 = vld [vmem:[%s8 + $0x190] sm:$0xff]
      %v2812 = vld [vmem:[%s8 + $0x198] sm:$0xff]
      %v2813 = vld [vmem:[%s8 + $0x1a0] sm:$0xff]
      %v2814 = vld [vmem:[%s8 + $0x1a8] sm:$0xff]
      %v2815 = vld [vmem:[%s8 + $0x1b0] sm:$0xff]
      %v2816 = vld [vmem:[%s8 + $0x1b8] sm:$0xff]
      %v2817 = vld [vmem:[%s8 + $0x1c0] sm:$0xff]
      %v2818 = vld [vmem:[%s8 + $0x1c8] sm:$0xff]
      %v2819 = vld [vmem:[%s8 + $0x1d0] sm:$0xff]
      %v2820 = vld [vmem:[%s8 + $0x1d8] sm:$0xff]
      %v2821 = vld [vmem:[%s8 + $0x1e0] sm:$0xff]
      %v2822 = vld [vmem:[%s8 + $0x1e8] sm:$0xff]
      %v2823 = vld [vmem:[%s8 + $0x1f0] sm:$0xff]
      %v2824 = vld [vmem:[%s8 + $0x1f8] sm:$0xff]
      %v2825 = vld [vmem:[%s9] sm:$0xf]
      %v2827 = vlaneseq
      %v2828 = vshrl.u32 %v2827, 7
      %v2829 = vsub.s32 0, %v2828
      %v2830 = vrot.slane %v2825, %v2829
      %v2831 = vlaneseq
      %v2832 = vshrl.u32 %v2831, 7
      %v2833 = vsub.s32 1, %v2832
      %v2834 = vrot.slane %v2825, %v2833
      %v2835 = vlaneseq
      %v2836 = vshrl.u32 %v2835, 7
      %v2837 = vsub.s32 2, %v2836
      %v2838 = vrot.slane %v2825, %v2837
      %v2839 = vlaneseq
      %v2840 = vshrl.u32 %v2839, 7
      %v2841 = vsub.s32 3, %v2840
      %v2842 = vrot.slane %v2825, %v2841
      %2847 = vmatprep.subr.mxu0 %v2762
      %2848 = vmatpush1.msra.mxu0 %v2761
      %2849 = vmatprep.subr.mxu0 %v2766
      %2850 = vmatpush1.msra.mxu0 %v2765
      %2851 = vmatprep.subr.mxu0 %v2770
      %2852 = vmatpush1.msra.mxu0 %v2769
      %2853 = vmatprep.subr.mxu0 %v2774
      %2854 = vmatpush1.msra.mxu0 %v2773
      %2855 = vmatprep.subr.mxu0 %v2778
      %2856 = vmatpush1.msra.mxu0 %v2777
      %2857 = vmatprep.subr.mxu0 %v2782
      %2858 = vmatpush1.msra.mxu0 %v2781
      %2859 = vmatprep.subr.mxu0 %v2786
      %2860 = vmatpush1.msra.mxu0 %v2785
      %2861 = vmatprep.subr.mxu0 %v2790
      %2862 = vmatpush1.msra.mxu0 %v2789
      %2863 = vmatprep.subr.mxu0 %v2794
      %2864 = vmatpush1.msra.mxu0 %v2793
      %2865 = vmatprep.subr.mxu0 %v2798
      %2866 = vmatpush1.msra.mxu0 %v2797
      %2867 = vmatprep.subr.mxu0 %v2802
      %2868 = vmatpush1.msra.mxu0 %v2801
      %2869 = vmatprep.subr.mxu0 %v2806
      %2870 = vmatpush1.msra.mxu0 %v2805
      %2871 = vmatprep.subr.mxu0 %v2810
      %2872 = vmatpush1.msra.mxu0 %v2809
      %2873 = vmatprep.subr.mxu0 %v2814
      %2874 = vmatpush1.msra.mxu0 %v2813
      %2875 = vmatprep.subr.mxu0 %v2818
      %2876 = vmatpush1.msra.mxu0 %v2817
      %2877 = vmatprep.subr.mxu0 %v2822
      %2878 = vmatpush1.msra.mxu0 %v2821
      %2879 = vmatprep.subr.mxu0 0.0
      %2880 = vmatpush1.msra.mxu0 0.0
      %2881 = vmatprep.subr.mxu0 0.0
      %2882 = vmatpush1.msra.mxu0 0.0
      %2883 = vmatprep.subr.mxu0 0.0
      %2884 = vmatpush1.msra.mxu0 0.0
      %2885 = vmatprep.subr.mxu0 0.0
      %2886 = vmatpush1.msra.mxu0 0.0
      %2887 = vmatprep.subr.mxu0 0.0
      %2888 = vmatpush1.msra.mxu0 0.0
      %2889 = vmatprep.subr.mxu0 0.0
      %2890 = vmatpush1.msra.mxu0 0.0
      %2891 = vmatprep.subr.mxu0 0.0
      %2892 = vmatpush1.msra.mxu0 0.0
      %2893 = vmatprep.subr.mxu0 0.0
      %2894 = vmatpush1.msra.mxu0 0.0
      %2895 = vmatprep.subr.mxu0 0.0
      %2896 = vmatpush1.msra.mxu0 0.0
      %2897 = vmatprep.subr.mxu0 0.0
      %2898 = vmatpush1.msra.mxu0 0.0
      %2899 = vmatprep.subr.mxu0 0.0
      %2900 = vmatpush1.msra.mxu0 0.0
      %2901 = vmatprep.subr.mxu0 0.0
      %2902 = vmatpush1.msra.mxu0 0.0
      %2903 = vmatprep.subr.mxu0 0.0
      %2904 = vmatpush1.msra.mxu0 0.0
      %2905 = vmatprep.subr.mxu0 0.0
      %2906 = vmatpush1.msra.mxu0 0.0
      %2907 = vmatprep.subr.mxu0 0.0
      %2908 = vmatpush1.msra.mxu0 0.0
      %2909 = vmatprep.subr.mxu0 0.0
      %2910 = vmatpush1.msra.mxu0 0.0
      %2911 = vmatprep.mubr.f32.mxu0 0.0
      %2912 = vmatmul.mubr.f32.gmra.mrb[0].mxu0 %v2745
      %v2913 = vpop.f32.mrb[0].mxu0
      %v2914 = vadd.f32 %v2830, %v2913
      %v2915 = vpop.f32.mrb[0].mxu0
      %v2916 = vadd.f32 %v2834, %v2915
      %2917 = vmatprep.mubr.f32.mxu0 0.0
      %2918 = vmatmul.mubr.f32.gmra.mrb[0].mxu0 %v2746
      %v2919 = vpop.f32.mrb[0].mxu0
      %v2920 = vadd.f32 %v2830, %v2919
      %v2921 = vpop.f32.mrb[0].mxu0
      %v2922 = vadd.f32 %v2834, %v2921
      %2923 = vmatprep.mubr.f32.mxu0 0.0
      %2924 = vmatmul.mubr.f32.gmra.mrb[0].mxu0 %v2747
      %v2925 = vpop.f32.mrb[0].mxu0
      %v2926 = vadd.f32 %v2830, %v2925
      %v2927 = vpop.f32.mrb[0].mxu0
      %v2928 = vadd.f32 %v2834, %v2927
      %2929 = vmatprep.mubr.f32.mxu0 0.0
      %2930 = vmatmul.mubr.f32.gmra.mrb[0].mxu0 %v2748
      %v2931 = vpop.f32.mrb[0].mxu0
      %v2932 = vadd.f32 %v2830, %v2931
      %v2933 = vpop.f32.mrb[0].mxu0
      %v2934 = vadd.f32 %v2834, %v2933
      %2935 = vmatprep.mubr.f32.mxu0 0.0
      %2936 = vmatmul.mubr.f32.gmra.mrb[0].mxu0 %v2749
      %v2937 = vpop.f32.mrb[0].mxu0
      %v2938 = vadd.f32 %v2830, %v2937
      %v2939 = vpop.f32.mrb[0].mxu0
      %v2940 = vadd.f32 %v2834, %v2939
      %2941 = vmatprep.mubr.f32.mxu0 0.0
      %2942 = vmatmul.mubr.f32.gmra.mrb[0].mxu0 %v2750
      %v2943 = vpop.f32.mrb[0].mxu0
      %v2944 = vadd.f32 %v2830, %v2943
      %v2945 = vpop.f32.mrb[0].mxu0
      %v2946 = vadd.f32 %v2834, %v2945
      %2947 = vmatprep.mubr.f32.mxu0 0.0
      %2948 = vmatmul.mubr.f32.gmra.mrb[0].mxu0 %v2751
      %v2949 = vpop.f32.mrb[0].mxu0
      %v2950 = vadd.f32 %v2830, %v2949
      %v2951 = vpop.f32.mrb[0].mxu0
      %v2952 = vadd.f32 %v2834, %v2951
      %2953 = vmatprep.mubr.f32.mxu0 0.0
      %2954 = vmatmul.mubr.f32.gmra.mrb[0].mxu0 %v2752
      %v2955 = vpop.f32.mrb[0].mxu0
      %v2956 = vadd.f32 %v2830, %v2955
      %v2957 = vpop.f32.mrb[0].mxu0
      %v2958 = vadd.f32 %v2834, %v2957
      %2959 = vmatprep.mubr.f32.mxu0 0.0
      %2960 = vmatmul.mubr.f32.gmra.mrb[0].mxu0 %v2753
      %v2961 = vpop.f32.mrb[0].mxu0
      %v2962 = vadd.f32 %v2830, %v2961
      %v2963 = vpop.f32.mrb[0].mxu0
      %v2964 = vadd.f32 %v2834, %v2963
      %2965 = vmatprep.mubr.f32.mxu0 0.0
      %2966 = vmatmul.mubr.f32.gmra.mrb[0].mxu0 %v2754
      %v2967 = vpop.f32.mrb[0].mxu0
      %v2968 = vadd.f32 %v2830, %v2967
      %v2969 = vpop.f32.mrb[0].mxu0
      %v2970 = vadd.f32 %v2834, %v2969
      %2971 = vmatprep.mubr.f32.mxu0 0.0
      %2972 = vmatmul.mubr.f32.gmra.mrb[0].mxu0 %v2755
      %v2973 = vpop.f32.mrb[0].mxu0
      %v2974 = vadd.f32 %v2830, %v2973
      %v2975 = vpop.f32.mrb[0].mxu0
      %v2976 = vadd.f32 %v2834, %v2975
      %2977 = vmatprep.mubr.f32.mxu0 0.0
      %2978 = vmatmul.mubr.f32.gmra.mrb[0].mxu0 %v2756
      %v2979 = vpop.f32.mrb[0].mxu0
      %v2980 = vadd.f32 %v2830, %v2979
      %v2981 = vpop.f32.mrb[0].mxu0
      %v2982 = vadd.f32 %v2834, %v2981
      %2983 = vmatprep.mubr.f32.mxu0 0.0
      %2984 = vmatmul.mubr.f32.gmra.mrb[0].mxu0 %v2757
      %v2985 = vpop.f32.mrb[0].mxu0
      %v2986 = vadd.f32 %v2830, %v2985
      %v2987 = vpop.f32.mrb[0].mxu0
      %v2988 = vadd.f32 %v2834, %v2987
      %2989 = vmatprep.mubr.f32.mxu0 0.0
      %2990 = vmatmul.mubr.f32.gmra.mrb[0].mxu0 %v2758
      %v2991 = vpop.f32.mrb[0].mxu0
      %v2992 = vadd.f32 %v2830, %v2991
      %v2993 = vpop.f32.mrb[0].mxu0
      %v2994 = vadd.f32 %v2834, %v2993
      %2995 = vmatprep.mubr.f32.mxu0 0.0
      %2996 = vmatmul.mubr.f32.gmra.mrb[0].mxu0 %v2759
      %v2997 = vpop.f32.mrb[0].mxu0
      %v2998 = vadd.f32 %v2830, %v2997
      %v2999 = vpop.f32.mrb[0].mxu0
      %v3000 = vadd.f32 %v2834, %v2999
      %3001 = vmatprep.mubr.f32.mxu0 0.0
      %3002 = vmatmul.mubr.f32.gmra.mrb[0].mxu0 %v2760
      %v3003 = vpop.f32.mrb[0].mxu0
      %v3004 = vadd.f32 %v2830, %v3003
      %v3005 = vpop.f32.mrb[0].mxu0
      %v3006 = vadd.f32 %v2834, %v3005
      %3007 = vdwg.mxu0
      %3008 = vmatprep.subr.mxu0 %v2764
      %3009 = vmatpush1.msra.mxu0 %v2763
      %3010 = vmatprep.subr.mxu0 %v2768
      %3011 = vmatpush1.msra.mxu0 %v2767
      %3012 = vmatprep.subr.mxu0 %v2772
      %3013 = vmatpush1.msra.mxu0 %v2771
      %3014 = vmatprep.subr.mxu0 %v2776
      %3015 = vmatpush1.msra.mxu0 %v2775
      %3016 = vmatprep.subr.mxu0 %v2780
      %3017 = vmatpush1.msra.mxu0 %v2779
      %3018 = vmatprep.subr.mxu0 %v2784
      %3019 = vmatpush1.msra.mxu0 %v2783
      %3020 = vmatprep.subr.mxu0 %v2788
      %3021 = vmatpush1.msra.mxu0 %v2787
      %3022 = vmatprep.subr.mxu0 %v2792
      %3023 = vmatpush1.msra.mxu0 %v2791
      %3024 = vmatprep.subr.mxu0 %v2796
      %3025 = vmatpush1.msra.mxu0 %v2795
      %3026 = vmatprep.subr.mxu0 %v2800
      %3027 = vmatpush1.msra.mxu0 %v2799
      %3028 = vmatprep.subr.mxu0 %v2804
      %3029 = vmatpush1.msra.mxu0 %v2803
      %3030 = vmatprep.subr.mxu0 %v2808
      %3031 = vmatpush1.msra.mxu0 %v2807
      %3032 = vmatprep.subr.mxu0 %v2812
      %3033 = vmatpush1.msra.mxu0 %v2811
      %3034 = vmatprep.subr.mxu0 %v2816
      %3035 = vmatpush1.msra.mxu0 %v2815
      %3036 = vmatprep.subr.mxu0 %v2820
      %3037 = vmatpush1.msra.mxu0 %v2819
      %3038 = vmatprep.subr.mxu0 %v2824
      %3039 = vmatpush1.msra.mxu0 %v2823
      %3040 = vmatprep.subr.mxu0 0.0
      %3041 = vmatpush1.msra.mxu0 0.0
      %3042 = vmatprep.subr.mxu0 0.0
      %3043 = vmatpush1.msra.mxu0 0.0
      %3044 = vmatprep.subr.mxu0 0.0
      %3045 = vmatpush1.msra.mxu0 0.0
      %3046 = vmatprep.subr.mxu0 0.0
      %3047 = vmatpush1.msra.mxu0 0.0
      %3048 = vmatprep.subr.mxu0 0.0
      %3049 = vmatpush1.msra.mxu0 0.0
      %3050 = vmatprep.subr.mxu0 0.0
      %3051 = vmatpush1.msra.mxu0 0.0
      %3052 = vmatprep.subr.mxu0 0.0
      %3053 = vmatpush1.msra.mxu0 0.0
      %3054 = vmatprep.subr.mxu0 0.0
      %3055 = vmatpush1.msra.mxu0 0.0
      %3056 = vmatprep.subr.mxu0 0.0
      %3057 = vmatpush1.msra.mxu0 0.0
      %3058 = vmatprep.subr.mxu0 0.0
      %3059 = vmatpush1.msra.mxu0 0.0
      %3060 = vmatprep.subr.mxu0 0.0
      %3061 = vmatpush1.msra.mxu0 0.0
      %3062 = vmatprep.subr.mxu0 0.0
      %3063 = vmatpush1.msra.mxu0 0.0
      %3064 = vmatprep.subr.mxu0 0.0
      %3065 = vmatpush1.msra.mxu0 0.0
      %3066 = vmatprep.subr.mxu0 0.0
      %3067 = vmatpush1.msra.mxu0 0.0
      %3068 = vmatprep.subr.mxu0 0.0
      %3069 = vmatpush1.msra.mxu0 0.0
      %3070 = vmatprep.subr.mxu0 0.0
      %3071 = vmatpush1.msra.mxu0 0.0
      %3072 = vmatprep.mubr.f32.mxu0 0.0
      %3073 = vmatmul.mubr.f32.gmra.mrb[0].mxu0 %v2745
      %v3074 = vpop.f32.mrb[0].mxu0
      %v3075 = vadd.f32 %v2838, %v3074
      %v3076 = vpop.f32.mrb[0].mxu0
      %v3077 = vadd.f32 %v2842, %v3076
      %3078 = vmatprep.mubr.f32.mxu0 0.0
      %3079 = vmatmul.mubr.f32.gmra.mrb[0].mxu0 %v2746
      %v3080 = vpop.f32.mrb[0].mxu0
      %v3081 = vadd.f32 %v2838, %v3080
      %v3082 = vpop.f32.mrb[0].mxu0
      %v3083 = vadd.f32 %v2842, %v3082
      %3084 = vmatprep.mubr.f32.mxu0 0.0
      %3085 = vmatmul.mubr.f32.gmra.mrb[0].mxu0 %v2747
      %v3086 = vpop.f32.mrb[0].mxu0
      %v3087 = vadd.f32 %v2838, %v3086
      %v3088 = vpop.f32.mrb[0].mxu0
      %v3089 = vadd.f32 %v2842, %v3088
      %3090 = vmatprep.mubr.f32.mxu0 0.0
      %3091 = vmatmul.mubr.f32.gmra.mrb[0].mxu0 %v2748
      %v3092 = vpop.f32.mrb[0].mxu0
      %v3093 = vadd.f32 %v2838, %v3092
      %v3094 = vpop.f32.mrb[0].mxu0
      %v3095 = vadd.f32 %v2842, %v3094
      %3096 = vmatprep.mubr.f32.mxu0 0.0
      %3097 = vmatmul.mubr.f32.gmra.mrb[0].mxu0 %v2749
      %v3098 = vpop.f32.mrb[0].mxu0
      %v3099 = vadd.f32 %v2838, %v3098
      %v3100 = vpop.f32.mrb[0].mxu0
      %v3101 = vadd.f32 %v2842, %v3100
      %3102 = vmatprep.mubr.f32.mxu0 0.0
      %3103 = vmatmul.mubr.f32.gmra.mrb[0].mxu0 %v2750
      %v3104 = vpop.f32.mrb[0].mxu0
      %v3105 = vadd.f32 %v2838, %v3104
      %v3106 = vpop.f32.mrb[0].mxu0
      %v3107 = vadd.f32 %v2842, %v3106
      %3108 = vmatprep.mubr.f32.mxu0 0.0
      %3109 = vmatmul.mubr.f32.gmra.mrb[0].mxu0 %v2751
      %v3110 = vpop.f32.mrb[0].mxu0
      %v3111 = vadd.f32 %v2838, %v3110
      %v3112 = vpop.f32.mrb[0].mxu0
      %v3113 = vadd.f32 %v2842, %v3112
      %3114 = vmatprep.mubr.f32.mxu0 0.0
      %3115 = vmatmul.mubr.f32.gmra.mrb[0].mxu0 %v2752
      %v3116 = vpop.f32.mrb[0].mxu0
      %v3117 = vadd.f32 %v2838, %v3116
      %v3118 = vpop.f32.mrb[0].mxu0
      %v3119 = vadd.f32 %v2842, %v3118
      %3120 = vmatprep.mubr.f32.mxu0 0.0
      %3121 = vmatmul.mubr.f32.gmra.mrb[0].mxu0 %v2753
      %v3122 = vpop.f32.mrb[0].mxu0
      %v3123 = vadd.f32 %v2838, %v3122
      %v3124 = vpop.f32.mrb[0].mxu0
      %v3125 = vadd.f32 %v2842, %v3124
      %3126 = vmatprep.mubr.f32.mxu0 0.0
      %3127 = vmatmul.mubr.f32.gmra.mrb[0].mxu0 %v2754
      %v3128 = vpop.f32.mrb[0].mxu0
      %v3129 = vadd.f32 %v2838, %v3128
      %v3130 = vpop.f32.mrb[0].mxu0
      %v3131 = vadd.f32 %v2842, %v3130
      %3132 = vmatprep.mubr.f32.mxu0 0.0
      %3133 = vmatmul.mubr.f32.gmra.mrb[0].mxu0 %v2755
      %v3134 = vpop.f32.mrb[0].mxu0
      %v3135 = vadd.f32 %v2838, %v3134
      %v3136 = vpop.f32.mrb[0].mxu0
      %v3137 = vadd.f32 %v2842, %v3136
      %3138 = vmatprep.mubr.f32.mxu0 0.0
      %3139 = vmatmul.mubr.f32.gmra.mrb[0].mxu0 %v2756
      %v3140 = vpop.f32.mrb[0].mxu0
      %v3141 = vadd.f32 %v2838, %v3140
      %v3142 = vpop.f32.mrb[0].mxu0
      %v3143 = vadd.f32 %v2842, %v3142
      %3144 = vmatprep.mubr.f32.mxu0 0.0
      %3145 = vmatmul.mubr.f32.gmra.mrb[0].mxu0 %v2757
      %v3146 = vpop.f32.mrb[0].mxu0
      %v3147 = vadd.f32 %v2838, %v3146
      %v3148 = vpop.f32.mrb[0].mxu0
      %v3149 = vadd.f32 %v2842, %v3148
      %3150 = vmatprep.mubr.f32.mxu0 0.0
      %3151 = vmatmul.mubr.f32.gmra.mrb[0].mxu0 %v2758
      %v3152 = vpop.f32.mrb[0].mxu0
      %v3153 = vadd.f32 %v2838, %v3152
      %v3154 = vpop.f32.mrb[0].mxu0
      %v3155 = vadd.f32 %v2842, %v3154
      %3156 = vmatprep.mubr.f32.mxu0 0.0
      %3157 = vmatmul.mubr.f32.gmra.mrb[0].mxu0 %v2759
      %v3158 = vpop.f32.mrb[0].mxu0
      %v3159 = vadd.f32 %v2838, %v3158
      %v3160 = vpop.f32.mrb[0].mxu0
      %v3161 = vadd.f32 %v2842, %v3160
      %3162 = vmatprep.mubr.f32.mxu0 0.0
      %3163 = vmatmul.mubr.f32.gmra.mrb[0].mxu0 %v2760
      %v3164 = vpop.f32.mrb[0].mxu0
      %v3165 = vadd.f32 %v2838, %v3164
      %v3166 = vpop.f32.mrb[0].mxu0
      %v3167 = vadd.f32 %v2842, %v3166
      %3168 = vdwg.mxu0
      %v3169 = vmul.f32 %v2914, 0.5
      %v3170 = vmul.f32 %v2916, 0.5
      %v3171 = vmul.f32 %v3075, 0.5
      %v3172 = vmul.f32 %v3077, 0.5
      %v3173 = vmul.f32 %v2920, 0.5
      %v3174 = vmul.f32 %v2922, 0.5
      %v3175 = vmul.f32 %v3081, 0.5
      %v3176 = vmul.f32 %v3083, 0.5
      %v3177 = vmul.f32 %v2926, 0.5
      %v3178 = vmul.f32 %v2928, 0.5
      %v3179 = vmul.f32 %v3087, 0.5
      %v3180 = vmul.f32 %v3089, 0.5
      %v3181 = vmul.f32 %v2932, 0.5
      %v3182 = vmul.f32 %v2934, 0.5
      %v3183 = vmul.f32 %v3093, 0.5
      %v3184 = vmul.f32 %v3095, 0.5
      %v3185 = vmul.f32 %v2938, 0.5
      %v3186 = vmul.f32 %v2940, 0.5
      %v3187 = vmul.f32 %v3099, 0.5
      %v3188 = vmul.f32 %v3101, 0.5
      %v3189 = vmul.f32 %v2944, 0.5
      %v3190 = vmul.f32 %v2946, 0.5
      %v3191 = vmul.f32 %v3105, 0.5
      %v3192 = vmul.f32 %v3107, 0.5
      %v3193 = vmul.f32 %v2950, 0.5
      %v3194 = vmul.f32 %v2952, 0.5
      %v3195 = vmul.f32 %v3111, 0.5
      %v3196 = vmul.f32 %v3113, 0.5
      %v3197 = vmul.f32 %v2956, 0.5
      %v3198 = vmul.f32 %v2958, 0.5
      %v3199 = vmul.f32 %v3117, 0.5
      %v3200 = vmul.f32 %v3119, 0.5
      %v3201 = vmul.f32 %v2962, 0.5
      %v3202 = vmul.f32 %v2964, 0.5
      %v3203 = vmul.f32 %v3123, 0.5
      %v3204 = vmul.f32 %v3125, 0.5
      %v3205 = vmul.f32 %v2968, 0.5
      %v3206 = vmul.f32 %v2970, 0.5
      %v3207 = vmul.f32 %v3129, 0.5
      %v3208 = vmul.f32 %v3131, 0.5
      %v3209 = vmul.f32 %v2974, 0.5
      %v3210 = vmul.f32 %v2976, 0.5
      %v3211 = vmul.f32 %v3135, 0.5
      %v3212 = vmul.f32 %v3137, 0.5
      %v3213 = vmul.f32 %v2980, 0.5
      %v3214 = vmul.f32 %v2982, 0.5
      %v3215 = vmul.f32 %v3141, 0.5
      %v3216 = vmul.f32 %v3143, 0.5
      %v3217 = vmul.f32 %v2986, 0.5
      %v3218 = vmul.f32 %v2988, 0.5
      %v3219 = vmul.f32 %v3147, 0.5
      %v3220 = vmul.f32 %v3149, 0.5
      %v3221 = vmul.f32 %v2992, 0.5
      %v3222 = vmul.f32 %v2994, 0.5
      %v3223 = vmul.f32 %v3153, 0.5
      %v3224 = vmul.f32 %v3155, 0.5
      %v3225 = vmul.f32 %v2998, 0.5
      %v3226 = vmul.f32 %v3000, 0.5
      %v3227 = vmul.f32 %v3159, 0.5
      %v3228 = vmul.f32 %v3161, 0.5
      %v3229 = vmul.f32 %v3004, 0.5
      %v3230 = vmul.f32 %v3006, 0.5
      %v3231 = vmul.f32 %v3165, 0.5
      %v3232 = vmul.f32 %v3167, 0.5
      %v3233 = vmul.f32 %v2914, 0.044715
      %v3234 = vmul.f32 %v2916, 0.044715
      %v3235 = vmul.f32 %v3075, 0.044715
      %v3236 = vmul.f32 %v3077, 0.044715
      %v3237 = vmul.f32 %v2920, 0.044715
      %v3238 = vmul.f32 %v2922, 0.044715
      %v3239 = vmul.f32 %v3081, 0.044715
      %v3240 = vmul.f32 %v3083, 0.044715
      %v3241 = vmul.f32 %v2926, 0.044715
      %v3242 = vmul.f32 %v2928, 0.044715
      %v3243 = vmul.f32 %v3087, 0.044715
      %v3244 = vmul.f32 %v3089, 0.044715
      %v3245 = vmul.f32 %v2932, 0.044715
      %v3246 = vmul.f32 %v2934, 0.044715
      %v3247 = vmul.f32 %v3093, 0.044715
      %v3248 = vmul.f32 %v3095, 0.044715
      %v3249 = vmul.f32 %v2938, 0.044715
      %v3250 = vmul.f32 %v2940, 0.044715
      %v3251 = vmul.f32 %v3099, 0.044715
      %v3252 = vmul.f32 %v3101, 0.044715
      %v3253 = vmul.f32 %v2944, 0.044715
      %v3254 = vmul.f32 %v2946, 0.044715
      %v3255 = vmul.f32 %v3105, 0.044715
      %v3256 = vmul.f32 %v3107, 0.044715
      %v3257 = vmul.f32 %v2950, 0.044715
      %v3258 = vmul.f32 %v2952, 0.044715
      %v3259 = vmul.f32 %v3111, 0.044715
      %v3260 = vmul.f32 %v3113, 0.044715
      %v3261 = vmul.f32 %v2956, 0.044715
      %v3262 = vmul.f32 %v2958, 0.044715
      %v3263 = vmul.f32 %v3117, 0.044715
      %v3264 = vmul.f32 %v3119, 0.044715
      %v3265 = vmul.f32 %v2962, 0.044715
      %v3266 = vmul.f32 %v2964, 0.044715
      %v3267 = vmul.f32 %v3123, 0.044715
      %v3268 = vmul.f32 %v3125, 0.044715
      %v3269 = vmul.f32 %v2968, 0.044715
      %v3270 = vmul.f32 %v2970, 0.044715
      %v3271 = vmul.f32 %v3129, 0.044715
      %v3272 = vmul.f32 %v3131, 0.044715
      %v3273 = vmul.f32 %v2974, 0.044715
      %v3274 = vmul.f32 %v2976, 0.044715
      %v3275 = vmul.f32 %v3135, 0.044715
      %v3276 = vmul.f32 %v3137, 0.044715
      %v3277 = vmul.f32 %v2980, 0.044715
      %v3278 = vmul.f32 %v2982, 0.044715
      %v3279 = vmul.f32 %v3141, 0.044715
      %v3280 = vmul.f32 %v3143, 0.044715
      %v3281 = vmul.f32 %v2986, 0.044715
      %v3282 = vmul.f32 %v2988, 0.044715
      %v3283 = vmul.f32 %v3147, 0.044715
      %v3284 = vmul.f32 %v3149, 0.044715
      %v3285 = vmul.f32 %v2992, 0.044715
      %v3286 = vmul.f32 %v2994, 0.044715
      %v3287 = vmul.f32 %v3153, 0.044715
      %v3288 = vmul.f32 %v3155, 0.044715
      %v3289 = vmul.f32 %v2998, 0.044715
      %v3290 = vmul.f32 %v3000, 0.044715
      %v3291 = vmul.f32 %v3159, 0.044715
      %v3292 = vmul.f32 %v3161, 0.044715
      %v3293 = vmul.f32 %v3004, 0.044715
      %v3294 = vmul.f32 %v3006, 0.044715
      %v3295 = vmul.f32 %v3165, 0.044715
      %v3296 = vmul.f32 %v3167, 0.044715
      %v3297 = vmul.f32 %v3233, %v2914
      %v3298 = vmul.f32 %v3234, %v2916
      %v3299 = vmul.f32 %v3235, %v3075
      %v3300 = vmul.f32 %v3236, %v3077
      %v3301 = vmul.f32 %v3237, %v2920
      %v3302 = vmul.f32 %v3238, %v2922
      %v3303 = vmul.f32 %v3239, %v3081
      %v3304 = vmul.f32 %v3240, %v3083
      %v3305 = vmul.f32 %v3241, %v2926
      %v3306 = vmul.f32 %v3242, %v2928
      %v3307 = vmul.f32 %v3243, %v3087
      %v3308 = vmul.f32 %v3244, %v3089
      %v3309 = vmul.f32 %v3245, %v2932
      %v3310 = vmul.f32 %v3246, %v2934
      %v3311 = vmul.f32 %v3247, %v3093
      %v3312 = vmul.f32 %v3248, %v3095
      %v3313 = vmul.f32 %v3249, %v2938
      %v3314 = vmul.f32 %v3250, %v2940
      %v3315 = vmul.f32 %v3251, %v3099
      %v3316 = vmul.f32 %v3252, %v3101
      %v3317 = vmul.f32 %v3253, %v2944
      %v3318 = vmul.f32 %v3254, %v2946
      %v3319 = vmul.f32 %v3255, %v3105
      %v3320 = vmul.f32 %v3256, %v3107
      %v3321 = vmul.f32 %v3257, %v2950
      %v3322 = vmul.f32 %v3258, %v2952
      %v3323 = vmul.f32 %v3259, %v3111
      %v3324 = vmul.f32 %v3260, %v3113
      %v3325 = vmul.f32 %v3261, %v2956
      %v3326 = vmul.f32 %v3262, %v2958
      %v3327 = vmul.f32 %v3263, %v3117
      %v3328 = vmul.f32 %v3264, %v3119
      %v3329 = vmul.f32 %v3265, %v2962
      %v3330 = vmul.f32 %v3266, %v2964
      %v3331 = vmul.f32 %v3267, %v3123
      %v3332 = vmul.f32 %v3268, %v3125
      %v3333 = vmul.f32 %v3269, %v2968
      %v3334 = vmul.f32 %v3270, %v2970
      %v3335 = vmul.f32 %v3271, %v3129
      %v3336 = vmul.f32 %v3272, %v3131
      %v3337 = vmul.f32 %v3273, %v2974
      %v3338 = vmul.f32 %v3274, %v2976
      %v3339 = vmul.f32 %v3275, %v3135
      %v3340 = vmul.f32 %v3276, %v3137
      %v3341 = vmul.f32 %v3277, %v2980
      %v3342 = vmul.f32 %v3278, %v2982
      %v3343 = vmul.f32 %v3279, %v3141
      %v3344 = vmul.f32 %v3280, %v3143
      %v3345 = vmul.f32 %v3281, %v2986
      %v3346 = vmul.f32 %v3282, %v2988
      %v3347 = vmul.f32 %v3283, %v3147
      %v3348 = vmul.f32 %v3284, %v3149
      %v3349 = vmul.f32 %v3285, %v2992
      %v3350 = vmul.f32 %v3286, %v2994
      %v3351 = vmul.f32 %v3287, %v3153
      %v3352 = vmul.f32 %v3288, %v3155
      %v3353 = vmul.f32 %v3289, %v2998
      %v3354 = vmul.f32 %v3290, %v3000
      %v3355 = vmul.f32 %v3291, %v3159
      %v3356 = vmul.f32 %v3292, %v3161
      %v3357 = vmul.f32 %v3293, %v3004
      %v3358 = vmul.f32 %v3294, %v3006
      %v3359 = vmul.f32 %v3295, %v3165
      %v3360 = vmul.f32 %v3296, %v3167
      %v3361 = vmul.f32 %v3297, %v2914
      %v3362 = vmul.f32 %v3298, %v2916
      %v3363 = vmul.f32 %v3299, %v3075
      %v3364 = vmul.f32 %v3300, %v3077
      %v3365 = vmul.f32 %v3301, %v2920
      %v3366 = vmul.f32 %v3302, %v2922
      %v3367 = vmul.f32 %v3303, %v3081
      %v3368 = vmul.f32 %v3304, %v3083
      %v3369 = vmul.f32 %v3305, %v2926
      %v3370 = vmul.f32 %v3306, %v2928
      %v3371 = vmul.f32 %v3307, %v3087
      %v3372 = vmul.f32 %v3308, %v3089
      %v3373 = vmul.f32 %v3309, %v2932
      %v3374 = vmul.f32 %v3310, %v2934
      %v3375 = vmul.f32 %v3311, %v3093
      %v3376 = vmul.f32 %v3312, %v3095
      %v3377 = vmul.f32 %v3313, %v2938
      %v3378 = vmul.f32 %v3314, %v2940
      %v3379 = vmul.f32 %v3315, %v3099
      %v3380 = vmul.f32 %v3316, %v3101
      %v3381 = vmul.f32 %v3317, %v2944
      %v3382 = vmul.f32 %v3318, %v2946
      %v3383 = vmul.f32 %v3319, %v3105
      %v3384 = vmul.f32 %v3320, %v3107
      %v3385 = vmul.f32 %v3321, %v2950
      %v3386 = vmul.f32 %v3322, %v2952
      %v3387 = vmul.f32 %v3323, %v3111
      %v3388 = vmul.f32 %v3324, %v3113
      %v3389 = vmul.f32 %v3325, %v2956
      %v3390 = vmul.f32 %v3326, %v2958
      %v3391 = vmul.f32 %v3327, %v3117
      %v3392 = vmul.f32 %v3328, %v3119
      %v3393 = vmul.f32 %v3329, %v2962
      %v3394 = vmul.f32 %v3330, %v2964
      %v3395 = vmul.f32 %v3331, %v3123
      %v3396 = vmul.f32 %v3332, %v3125
      %v3397 = vmul.f32 %v3333, %v2968
      %v3398 = vmul.f32 %v3334, %v2970
      %v3399 = vmul.f32 %v3335, %v3129
      %v3400 = vmul.f32 %v3336, %v3131
      %v3401 = vmul.f32 %v3337, %v2974
      %v3402 = vmul.f32 %v3338, %v2976
      %v3403 = vmul.f32 %v3339, %v3135
      %v3404 = vmul.f32 %v3340, %v3137
      %v3405 = vmul.f32 %v3341, %v2980
      %v3406 = vmul.f32 %v3342, %v2982
      %v3407 = vmul.f32 %v3343, %v3141
      %v3408 = vmul.f32 %v3344, %v3143
      %v3409 = vmul.f32 %v3345, %v2986
      %v3410 = vmul.f32 %v3346, %v2988
      %v3411 = vmul.f32 %v3347, %v3147
      %v3412 = vmul.f32 %v3348, %v3149
      %v3413 = vmul.f32 %v3349, %v2992
      %v3414 = vmul.f32 %v3350, %v2994
      %v3415 = vmul.f32 %v3351, %v3153
      %v3416 = vmul.f32 %v3352, %v3155
      %v3417 = vmul.f32 %v3353, %v2998
      %v3418 = vmul.f32 %v3354, %v3000
      %v3419 = vmul.f32 %v3355, %v3159
      %v3420 = vmul.f32 %v3356, %v3161
      %v3421 = vmul.f32 %v3357, %v3004
      %v3422 = vmul.f32 %v3358, %v3006
      %v3423 = vmul.f32 %v3359, %v3165
      %v3424 = vmul.f32 %v3360, %v3167
      %v3425 = vadd.f32 %v2914, %v3361
      %v3426 = vadd.f32 %v2916, %v3362
      %v3427 = vadd.f32 %v3075, %v3363
      %v3428 = vadd.f32 %v3077, %v3364
      %v3429 = vadd.f32 %v2920, %v3365
      %v3430 = vadd.f32 %v2922, %v3366
      %v3431 = vadd.f32 %v3081, %v3367
      %v3432 = vadd.f32 %v3083, %v3368
      %v3433 = vadd.f32 %v2926, %v3369
      %v3434 = vadd.f32 %v2928, %v3370
      %v3435 = vadd.f32 %v3087, %v3371
      %v3436 = vadd.f32 %v3089, %v3372
      %v3437 = vadd.f32 %v2932, %v3373
      %v3438 = vadd.f32 %v2934, %v3374
      %v3439 = vadd.f32 %v3093, %v3375
      %v3440 = vadd.f32 %v3095, %v3376
      %v3441 = vadd.f32 %v2938, %v3377
      %v3442 = vadd.f32 %v2940, %v3378
      %v3443 = vadd.f32 %v3099, %v3379
      %v3444 = vadd.f32 %v3101, %v3380
      %v3445 = vadd.f32 %v2944, %v3381
      %v3446 = vadd.f32 %v2946, %v3382
      %v3447 = vadd.f32 %v3105, %v3383
      %v3448 = vadd.f32 %v3107, %v3384
      %v3449 = vadd.f32 %v2950, %v3385
      %v3450 = vadd.f32 %v2952, %v3386
      %v3451 = vadd.f32 %v3111, %v3387
      %v3452 = vadd.f32 %v3113, %v3388
      %v3453 = vadd.f32 %v2956, %v3389
      %v3454 = vadd.f32 %v2958, %v3390
      %v3455 = vadd.f32 %v3117, %v3391
      %v3456 = vadd.f32 %v3119, %v3392
      %v3457 = vadd.f32 %v2962, %v3393
      %v3458 = vadd.f32 %v2964, %v3394
      %v3459 = vadd.f32 %v3123, %v3395
      %v3460 = vadd.f32 %v3125, %v3396
      %v3461 = vadd.f32 %v2968, %v3397
      %v3462 = vadd.f32 %v2970, %v3398
      %v3463 = vadd.f32 %v3129, %v3399
      %v3464 = vadd.f32 %v3131, %v3400
      %v3465 = vadd.f32 %v2974, %v3401
      %v3466 = vadd.f32 %v2976, %v3402
      %v3467 = vadd.f32 %v3135, %v3403
      %v3468 = vadd.f32 %v3137, %v3404
      %v3469 = vadd.f32 %v2980, %v3405
      %v3470 = vadd.f32 %v2982, %v3406
      %v3471 = vadd.f32 %v3141, %v3407
      %v3472 = vadd.f32 %v3143, %v3408
      %v3473 = vadd.f32 %v2986, %v3409
      %v3474 = vadd.f32 %v2988, %v3410
      %v3475 = vadd.f32 %v3147, %v3411
      %v3476 = vadd.f32 %v3149, %v3412
      %v3477 = vadd.f32 %v2992, %v3413
      %v3478 = vadd.f32 %v2994, %v3414
      %v3479 = vadd.f32 %v3153, %v3415
      %v3480 = vadd.f32 %v3155, %v3416
      %v3481 = vadd.f32 %v2998, %v3417
      %v3482 = vadd.f32 %v3000, %v3418
      %v3483 = vadd.f32 %v3159, %v3419
      %v3484 = vadd.f32 %v3161, %v3420
      %v3485 = vadd.f32 %v3004, %v3421
      %v3486 = vadd.f32 %v3006, %v3422
      %v3487 = vadd.f32 %v3165, %v3423
      %v3488 = vadd.f32 %v3167, %v3424
      %v3489 = vmul.f32 %v3425, 0.7978846
      %v3490 = vmul.f32 %v3426, 0.7978846
      %v3491 = vmul.f32 %v3427, 0.7978846
      %v3492 = vmul.f32 %v3428, 0.7978846
      %v3493 = vmul.f32 %v3429, 0.7978846
      %v3494 = vmul.f32 %v3430, 0.7978846
      %v3495 = vmul.f32 %v3431, 0.7978846
      %v3496 = vmul.f32 %v3432, 0.7978846
      %v3497 = vmul.f32 %v3433, 0.7978846
      %v3498 = vmul.f32 %v3434, 0.7978846
      %v3499 = vmul.f32 %v3435, 0.7978846
      %v3500 = vmul.f32 %v3436, 0.7978846
      %v3501 = vmul.f32 %v3437, 0.7978846
      %v3502 = vmul.f32 %v3438, 0.7978846
      %v3503 = vmul.f32 %v3439, 0.7978846
      %v3504 = vmul.f32 %v3440, 0.7978846
      %v3505 = vmul.f32 %v3441, 0.7978846
      %v3506 = vmul.f32 %v3442, 0.7978846
      %v3507 = vmul.f32 %v3443, 0.7978846
      %v3508 = vmul.f32 %v3444, 0.7978846
      %v3509 = vmul.f32 %v3445, 0.7978846
      %v3510 = vmul.f32 %v3446, 0.7978846
      %v3511 = vmul.f32 %v3447, 0.7978846
      %v3512 = vmul.f32 %v3448, 0.7978846
      %v3513 = vmul.f32 %v3449, 0.7978846
      %v3514 = vmul.f32 %v3450, 0.7978846
      %v3515 = vmul.f32 %v3451, 0.7978846
      %v3516 = vmul.f32 %v3452, 0.7978846
      %v3517 = vmul.f32 %v3453, 0.7978846
      %v3518 = vmul.f32 %v3454, 0.7978846
      %v3519 = vmul.f32 %v3455, 0.7978846
      %v3520 = vmul.f32 %v3456, 0.7978846
      %v3521 = vmul.f32 %v3457, 0.7978846
      %v3522 = vmul.f32 %v3458, 0.7978846
      %v3523 = vmul.f32 %v3459, 0.7978846
      %v3524 = vmul.f32 %v3460, 0.7978846
      %v3525 = vmul.f32 %v3461, 0.7978846
      %v3526 = vmul.f32 %v3462, 0.7978846
      %v3527 = vmul.f32 %v3463, 0.7978846
      %v3528 = vmul.f32 %v3464, 0.7978846
      %v3529 = vmul.f32 %v3465, 0.7978846
      %v3530 = vmul.f32 %v3466, 0.7978846
      %v3531 = vmul.f32 %v3467, 0.7978846
      %v3532 = vmul.f32 %v3468, 0.7978846
      %v3533 = vmul.f32 %v3469, 0.7978846
      %v3534 = vmul.f32 %v3470, 0.7978846
      %v3535 = vmul.f32 %v3471, 0.7978846
      %v3536 = vmul.f32 %v3472, 0.7978846
      %v3537 = vmul.f32 %v3473, 0.7978846
      %v3538 = vmul.f32 %v3474, 0.7978846
      %v3539 = vmul.f32 %v3475, 0.7978846
      %v3540 = vmul.f32 %v3476, 0.7978846
      %v3541 = vmul.f32 %v3477, 0.7978846
      %v3542 = vmul.f32 %v3478, 0.7978846
      %v3543 = vmul.f32 %v3479, 0.7978846
      %v3544 = vmul.f32 %v3480, 0.7978846
      %v3545 = vmul.f32 %v3481, 0.7978846
      %v3546 = vmul.f32 %v3482, 0.7978846
      %v3547 = vmul.f32 %v3483, 0.7978846
      %v3548 = vmul.f32 %v3484, 0.7978846
      %v3549 = vmul.f32 %v3485, 0.7978846
      %v3550 = vmul.f32 %v3486, 0.7978846
      %v3551 = vmul.f32 %v3487, 0.7978846
      %v3552 = vmul.f32 %v3488, 0.7978846
      %v3553 = vtanh.pop %v3489
      %v3554 = vtanh.pop %v3490
      %v3555 = vtanh.pop %v3491
      %v3556 = vtanh.pop %v3492
      %v3557 = vtanh.pop %v3493
      %v3558 = vtanh.pop %v3494
      %v3559 = vtanh.pop %v3495
      %v3560 = vtanh.pop %v3496
      %v3561 = vtanh.pop %v3497
      %v3562 = vtanh.pop %v3498
      %v3563 = vtanh.pop %v3499
      %v3564 = vtanh.pop %v3500
      %v3565 = vtanh.pop %v3501
      %v3566 = vtanh.pop %v3502
      %v3567 = vtanh.pop %v3503
      %v3568 = vtanh.pop %v3504
      %v3569 = vtanh.pop %v3505
      %v3570 = vtanh.pop %v3506
      %v3571 = vtanh.pop %v3507
      %v3572 = vtanh.pop %v3508
      %v3573 = vtanh.pop %v3509
      %v3574 = vtanh.pop %v3510
      %v3575 = vtanh.pop %v3511
      %v3576 = vtanh.pop %v3512
      %v3577 = vtanh.pop %v3513
      %v3578 = vtanh.pop %v3514
      %v3579 = vtanh.pop %v3515
      %v3580 = vtanh.pop %v3516
      %v3581 = vtanh.pop %v3517
      %v3582 = vtanh.pop %v3518
      %v3583 = vtanh.pop %v3519
      %v3584 = vtanh.pop %v3520
      %v3585 = vtanh.pop %v3521
      %v3586 = vtanh.pop %v3522
      %v3587 = vtanh.pop %v3523
      %v3588 = vtanh.pop %v3524
      %v3589 = vtanh.pop %v3525
      %v3590 = vtanh.pop %v3526
      %v3591 = vtanh.pop %v3527
      %v3592 = vtanh.pop %v3528
      %v3593 = vtanh.pop %v3529
      %v3594 = vtanh.pop %v3530
      %v3595 = vtanh.pop %v3531
      %v3596 = vtanh.pop %v3532
      %v3597 = vtanh.pop %v3533
      %v3598 = vtanh.pop %v3534
      %v3599 = vtanh.pop %v3535
      %v3600 = vtanh.pop %v3536
      %v3601 = vtanh.pop %v3537
      %v3602 = vtanh.pop %v3538
      %v3603 = vtanh.pop %v3539
      %v3604 = vtanh.pop %v3540
      %v3605 = vtanh.pop %v3541
      %v3606 = vtanh.pop %v3542
      %v3607 = vtanh.pop %v3543
      %v3608 = vtanh.pop %v3544
      %v3609 = vtanh.pop %v3545
      %v3610 = vtanh.pop %v3546
      %v3611 = vtanh.pop %v3547
      %v3612 = vtanh.pop %v3548
      %v3613 = vtanh.pop %v3549
      %v3614 = vtanh.pop %v3550
      %v3615 = vtanh.pop %v3551
      %v3616 = vtanh.pop %v3552
      %v3617 = vadd.f32 %v3553, 1.0
      %v3618 = vadd.f32 %v3554, 1.0
      %v3619 = vadd.f32 %v3555, 1.0
      %v3620 = vadd.f32 %v3556, 1.0
      %v3621 = vadd.f32 %v3557, 1.0
      %v3622 = vadd.f32 %v3558, 1.0
      %v3623 = vadd.f32 %v3559, 1.0
      %v3624 = vadd.f32 %v3560, 1.0
      %v3625 = vadd.f32 %v3561, 1.0
      %v3626 = vadd.f32 %v3562, 1.0
      %v3627 = vadd.f32 %v3563, 1.0
      %v3628 = vadd.f32 %v3564, 1.0
      %v3629 = vadd.f32 %v3565, 1.0
      %v3630 = vadd.f32 %v3566, 1.0
      %v3631 = vadd.f32 %v3567, 1.0
      %v3632 = vadd.f32 %v3568, 1.0
      %v3633 = vadd.f32 %v3569, 1.0
      %v3634 = vadd.f32 %v3570, 1.0
      %v3635 = vadd.f32 %v3571, 1.0
      %v3636 = vadd.f32 %v3572, 1.0
      %v3637 = vadd.f32 %v3573, 1.0
      %v3638 = vadd.f32 %v3574, 1.0
      %v3639 = vadd.f32 %v3575, 1.0
      %v3640 = vadd.f32 %v3576, 1.0
      %v3641 = vadd.f32 %v3577, 1.0
      %v3642 = vadd.f32 %v3578, 1.0
      %v3643 = vadd.f32 %v3579, 1.0
      %v3644 = vadd.f32 %v3580, 1.0
      %v3645 = vadd.f32 %v3581, 1.0
      %v3646 = vadd.f32 %v3582, 1.0
      %v3647 = vadd.f32 %v3583, 1.0
      %v3648 = vadd.f32 %v3584, 1.0
      %v3649 = vadd.f32 %v3585, 1.0
      %v3650 = vadd.f32 %v3586, 1.0
      %v3651 = vadd.f32 %v3587, 1.0
      %v3652 = vadd.f32 %v3588, 1.0
      %v3653 = vadd.f32 %v3589, 1.0
      %v3654 = vadd.f32 %v3590, 1.0
      %v3655 = vadd.f32 %v3591, 1.0
      %v3656 = vadd.f32 %v3592, 1.0
      %v3657 = vadd.f32 %v3593, 1.0
      %v3658 = vadd.f32 %v3594, 1.0
      %v3659 = vadd.f32 %v3595, 1.0
      %v3660 = vadd.f32 %v3596, 1.0
      %v3661 = vadd.f32 %v3597, 1.0
      %v3662 = vadd.f32 %v3598, 1.0
      %v3663 = vadd.f32 %v3599, 1.0
      %v3664 = vadd.f32 %v3600, 1.0
      %v3665 = vadd.f32 %v3601, 1.0
      %v3666 = vadd.f32 %v3602, 1.0
      %v3667 = vadd.f32 %v3603, 1.0
      %v3668 = vadd.f32 %v3604, 1.0
      %v3669 = vadd.f32 %v3605, 1.0
      %v3670 = vadd.f32 %v3606, 1.0
      %v3671 = vadd.f32 %v3607, 1.0
      %v3672 = vadd.f32 %v3608, 1.0
      %v3673 = vadd.f32 %v3609, 1.0
      %v3674 = vadd.f32 %v3610, 1.0
      %v3675 = vadd.f32 %v3611, 1.0
      %v3676 = vadd.f32 %v3612, 1.0
      %v3677 = vadd.f32 %v3613, 1.0
      %v3678 = vadd.f32 %v3614, 1.0
      %v3679 = vadd.f32 %v3615, 1.0
      %v3680 = vadd.f32 %v3616, 1.0
      %v3681 = vmul.f32 %v3169, %v3617
      %v3682 = vmul.f32 %v3170, %v3618
      %v3683 = vmul.f32 %v3171, %v3619
      %v3684 = vmul.f32 %v3172, %v3620
      %v3685 = vmul.f32 %v3173, %v3621
      %v3686 = vmul.f32 %v3174, %v3622
      %v3687 = vmul.f32 %v3175, %v3623
      %v3688 = vmul.f32 %v3176, %v3624
      %v3689 = vmul.f32 %v3177, %v3625
      %v3690 = vmul.f32 %v3178, %v3626
      %v3691 = vmul.f32 %v3179, %v3627
      %v3692 = vmul.f32 %v3180, %v3628
      %v3693 = vmul.f32 %v3181, %v3629
      %v3694 = vmul.f32 %v3182, %v3630
      %v3695 = vmul.f32 %v3183, %v3631
      %v3696 = vmul.f32 %v3184, %v3632
      %v3697 = vmul.f32 %v3185, %v3633
      %v3698 = vmul.f32 %v3186, %v3634
      %v3699 = vmul.f32 %v3187, %v3635
      %v3700 = vmul.f32 %v3188, %v3636
      %v3701 = vmul.f32 %v3189, %v3637
      %v3702 = vmul.f32 %v3190, %v3638
      %v3703 = vmul.f32 %v3191, %v3639
      %v3704 = vmul.f32 %v3192, %v3640
      %v3705 = vmul.f32 %v3193, %v3641
      %v3706 = vmul.f32 %v3194, %v3642
      %v3707 = vmul.f32 %v3195, %v3643
      %v3708 = vmul.f32 %v3196, %v3644
      %v3709 = vmul.f32 %v3197, %v3645
      %v3710 = vmul.f32 %v3198, %v3646
      %v3711 = vmul.f32 %v3199, %v3647
      %v3712 = vmul.f32 %v3200, %v3648
      %v3713 = vmul.f32 %v3201, %v3649
      %v3714 = vmul.f32 %v3202, %v3650
      %v3715 = vmul.f32 %v3203, %v3651
      %v3716 = vmul.f32 %v3204, %v3652
      %v3717 = vmul.f32 %v3205, %v3653
      %v3718 = vmul.f32 %v3206, %v3654
      %v3719 = vmul.f32 %v3207, %v3655
      %v3720 = vmul.f32 %v3208, %v3656
      %v3721 = vmul.f32 %v3209, %v3657
      %v3722 = vmul.f32 %v3210, %v3658
      %v3723 = vmul.f32 %v3211, %v3659
      %v3724 = vmul.f32 %v3212, %v3660
      %v3725 = vmul.f32 %v3213, %v3661
      %v3726 = vmul.f32 %v3214, %v3662
      %v3727 = vmul.f32 %v3215, %v3663
      %v3728 = vmul.f32 %v3216, %v3664
      %v3729 = vmul.f32 %v3217, %v3665
      %v3730 = vmul.f32 %v3218, %v3666
      %v3731 = vmul.f32 %v3219, %v3667
      %v3732 = vmul.f32 %v3220, %v3668
      %v3733 = vmul.f32 %v3221, %v3669
      %v3734 = vmul.f32 %v3222, %v3670
      %v3735 = vmul.f32 %v3223, %v3671
      %v3736 = vmul.f32 %v3224, %v3672
      %v3737 = vmul.f32 %v3225, %v3673
      %v3738 = vmul.f32 %v3226, %v3674
      %v3739 = vmul.f32 %v3227, %v3675
      %v3740 = vmul.f32 %v3228, %v3676
      %v3741 = vmul.f32 %v3229, %v3677
      %v3742 = vmul.f32 %v3230, %v3678
      %v3743 = vmul.f32 %v3231, %v3679
      %v3744 = vmul.f32 %v3232, %v3680
      %v3745 = vld [vmem:[%s10] sm:$0xff]
      %v3746 = vld [vmem:[%s10 + $0x8] sm:$0xff]
      %v3747 = vld [vmem:[%s10 + $0x10] sm:$0xff]
      %v3748 = vld [vmem:[%s10 + $0x18] sm:$0xff]
      %v3749 = vld [vmem:[%s10 + $0x20] sm:$0xff]
      %v3750 = vld [vmem:[%s10 + $0x28] sm:$0xff]
      %v3751 = vld [vmem:[%s10 + $0x30] sm:$0xff]
      %v3752 = vld [vmem:[%s10 + $0x38] sm:$0xff]
      %v3753 = vld [vmem:[%s10 + $0x40] sm:$0xff]
      %v3754 = vld [vmem:[%s10 + $0x48] sm:$0xff]
      %v3755 = vld [vmem:[%s10 + $0x50] sm:$0xff]
      %v3756 = vld [vmem:[%s10 + $0x58] sm:$0xff]
      %v3757 = vld [vmem:[%s10 + $0x60] sm:$0xff]
      %v3758 = vld [vmem:[%s10 + $0x68] sm:$0xff]
      %v3759 = vld [vmem:[%s10 + $0x70] sm:$0xff]
      %v3760 = vld [vmem:[%s10 + $0x78] sm:$0xff]
      %v3761 = vld [vmem:[%s10 + $0x80] sm:$0xff]
      %v3762 = vld [vmem:[%s10 + $0x88] sm:$0xff]
      %v3763 = vld [vmem:[%s10 + $0x90] sm:$0xff]
      %v3764 = vld [vmem:[%s10 + $0x98] sm:$0xff]
      %v3765 = vld [vmem:[%s10 + $0xa0] sm:$0xff]
      %v3766 = vld [vmem:[%s10 + $0xa8] sm:$0xff]
      %v3767 = vld [vmem:[%s10 + $0xb0] sm:$0xff]
      %v3768 = vld [vmem:[%s10 + $0xb8] sm:$0xff]
      %v3769 = vld [vmem:[%s10 + $0xc0] sm:$0xff]
      %v3770 = vld [vmem:[%s10 + $0xc8] sm:$0xff]
      %v3771 = vld [vmem:[%s10 + $0xd0] sm:$0xff]
      %v3772 = vld [vmem:[%s10 + $0xd8] sm:$0xff]
      %v3773 = vld [vmem:[%s10 + $0xe0] sm:$0xff]
      %v3774 = vld [vmem:[%s10 + $0xe8] sm:$0xff]
      %v3775 = vld [vmem:[%s10 + $0xf0] sm:$0xff]
      %v3776 = vld [vmem:[%s10 + $0xf8] sm:$0xff]
      %v3777 = vld [vmem:[%s10 + $0x100] sm:$0xff]
      %v3778 = vld [vmem:[%s10 + $0x108] sm:$0xff]
      %v3779 = vld [vmem:[%s10 + $0x110] sm:$0xff]
      %v3780 = vld [vmem:[%s10 + $0x118] sm:$0xff]
      %v3781 = vld [vmem:[%s10 + $0x120] sm:$0xff]
      %v3782 = vld [vmem:[%s10 + $0x128] sm:$0xff]
      %v3783 = vld [vmem:[%s10 + $0x130] sm:$0xff]
      %v3784 = vld [vmem:[%s10 + $0x138] sm:$0xff]
      %v3785 = vld [vmem:[%s10 + $0x140] sm:$0xff]
      %v3786 = vld [vmem:[%s10 + $0x148] sm:$0xff]
      %v3787 = vld [vmem:[%s10 + $0x150] sm:$0xff]
      %v3788 = vld [vmem:[%s10 + $0x158] sm:$0xff]
      %v3789 = vld [vmem:[%s10 + $0x160] sm:$0xff]
      %v3790 = vld [vmem:[%s10 + $0x168] sm:$0xff]
      %v3791 = vld [vmem:[%s10 + $0x170] sm:$0xff]
      %v3792 = vld [vmem:[%s10 + $0x178] sm:$0xff]
      %v3793 = vld [vmem:[%s10 + $0x180] sm:$0xff]
      %v3794 = vld [vmem:[%s10 + $0x188] sm:$0xff]
      %v3795 = vld [vmem:[%s10 + $0x190] sm:$0xff]
      %v3796 = vld [vmem:[%s10 + $0x198] sm:$0xff]
      %v3797 = vld [vmem:[%s10 + $0x1a0] sm:$0xff]
      %v3798 = vld [vmem:[%s10 + $0x1a8] sm:$0xff]
      %v3799 = vld [vmem:[%s10 + $0x1b0] sm:$0xff]
      %v3800 = vld [vmem:[%s10 + $0x1b8] sm:$0xff]
      %v3801 = vld [vmem:[%s10 + $0x1c0] sm:$0xff]
      %v3802 = vld [vmem:[%s10 + $0x1c8] sm:$0xff]
      %v3803 = vld [vmem:[%s10 + $0x1d0] sm:$0xff]
      %v3804 = vld [vmem:[%s10 + $0x1d8] sm:$0xff]
      %v3805 = vld [vmem:[%s10 + $0x1e0] sm:$0xff]
      %v3806 = vld [vmem:[%s10 + $0x1e8] sm:$0xff]
      %v3807 = vld [vmem:[%s10 + $0x1f0] sm:$0xff]
      %v3808 = vld [vmem:[%s10 + $0x1f8] sm:$0xff]
      %v3809 = vld [vmem:[%s11] sm:$0x1]
      %v3811 = vlaneseq
      %v3812 = vshrl.u32 %v3811, 7
      %v3813 = vsub.s32 0, %v3812
      %v3814 = vrot.slane %v3809, %v3813
      %3816 = vmatprep.subr.mxu0 0.0
      %3817 = vmatpush1.msra.mxu0 %v3745
      %3818 = vmatprep.subr.mxu0 0.0
      %3819 = vmatpush1.msra.mxu0 %v3746
      %3820 = vmatprep.subr.mxu0 0.0
      %3821 = vmatpush1.msra.mxu0 %v3747
      %3822 = vmatprep.subr.mxu0 0.0
      %3823 = vmatpush1.msra.mxu0 %v3748
      %3824 = vmatprep.subr.mxu0 0.0
      %3825 = vmatpush1.msra.mxu0 %v3749
      %3826 = vmatprep.subr.mxu0 0.0
      %3827 = vmatpush1.msra.mxu0 %v3750
      %3828 = vmatprep.subr.mxu0 0.0
      %3829 = vmatpush1.msra.mxu0 %v3751
      %3830 = vmatprep.subr.mxu0 0.0
      %3831 = vmatpush1.msra.mxu0 %v3752
      %3832 = vmatprep.subr.mxu0 0.0
      %3833 = vmatpush1.msra.mxu0 %v3753
      %3834 = vmatprep.subr.mxu0 0.0
      %3835 = vmatpush1.msra.mxu0 %v3754
      %3836 = vmatprep.subr.mxu0 0.0
      %3837 = vmatpush1.msra.mxu0 %v3755
      %3838 = vmatprep.subr.mxu0 0.0
      %3839 = vmatpush1.msra.mxu0 %v3756
      %3840 = vmatprep.subr.mxu0 0.0
      %3841 = vmatpush1.msra.mxu0 %v3757
      %3842 = vmatprep.subr.mxu0 0.0
      %3843 = vmatpush1.msra.mxu0 %v3758
      %3844 = vmatprep.subr.mxu0 0.0
      %3845 = vmatpush1.msra.mxu0 %v3759
      %3846 = vmatprep.subr.mxu0 0.0
      %3847 = vmatpush1.msra.mxu0 %v3760
      %3848 = vmatprep.subr.mxu0 0.0
      %3849 = vmatpush1.msra.mxu0 %v3761
      %3850 = vmatprep.subr.mxu0 0.0
      %3851 = vmatpush1.msra.mxu0 %v3762
      %3852 = vmatprep.subr.mxu0 0.0
      %3853 = vmatpush1.msra.mxu0 %v3763
      %3854 = vmatprep.subr.mxu0 0.0
      %3855 = vmatpush1.msra.mxu0 %v3764
      %3856 = vmatprep.subr.mxu0 0.0
      %3857 = vmatpush1.msra.mxu0 %v3765
      %3858 = vmatprep.subr.mxu0 0.0
      %3859 = vmatpush1.msra.mxu0 %v3766
      %3860 = vmatprep.subr.mxu0 0.0
      %3861 = vmatpush1.msra.mxu0 %v3767
      %3862 = vmatprep.subr.mxu0 0.0
      %3863 = vmatpush1.msra.mxu0 %v3768
      %3864 = vmatprep.subr.mxu0 0.0
      %3865 = vmatpush1.msra.mxu0 %v3769
      %3866 = vmatprep.subr.mxu0 0.0
      %3867 = vmatpush1.msra.mxu0 %v3770
      %3868 = vmatprep.subr.mxu0 0.0
      %3869 = vmatpush1.msra.mxu0 %v3771
      %3870 = vmatprep.subr.mxu0 0.0
      %3871 = vmatpush1.msra.mxu0 %v3772
      %3872 = vmatprep.subr.mxu0 0.0
      %3873 = vmatpush1.msra.mxu0 %v3773
      %3874 = vmatprep.subr.mxu0 0.0
      %3875 = vmatpush1.msra.mxu0 %v3774
      %3876 = vmatprep.subr.mxu0 0.0
      %3877 = vmatpush1.msra.mxu0 %v3775
      %3878 = vmatprep.subr.mxu0 0.0
      %3879 = vmatpush1.msra.mxu0 %v3776
      %3880 = vmatprep.mubr.f32.mxu0 %v3682
      %3881 = vmatmul.mubr.f32.gmra.mrb[0].mxu0 %v3681
      %v3882 = vpop.f32.mrb[0].mxu0
      %v3883 = vadd.f32 %v3814, %v3882
      %v3884 = vpop.f32.mrb[0].mxu0
      %3885 = vmatprep.mubr.f32.mxu0 %v3686
      %3886 = vmatmul.mubr.f32.gmra.mrb[0].mxu0 %v3685
      %v3887 = vpop.f32.mrb[0].mxu0
      %v3888 = vadd.f32 %v3814, %v3887
      %v3889 = vpop.f32.mrb[0].mxu0
      %3890 = vmatprep.mubr.f32.mxu0 %v3690
      %3891 = vmatmul.mubr.f32.gmra.mrb[0].mxu0 %v3689
      %v3892 = vpop.f32.mrb[0].mxu0
      %v3893 = vadd.f32 %v3814, %v3892
      %v3894 = vpop.f32.mrb[0].mxu0
      %3895 = vmatprep.mubr.f32.mxu0 %v3694
      %3896 = vmatmul.mubr.f32.gmra.mrb[0].mxu0 %v3693
      %v3897 = vpop.f32.mrb[0].mxu0
      %v3898 = vadd.f32 %v3814, %v3897
      %v3899 = vpop.f32.mrb[0].mxu0
      %3900 = vmatprep.mubr.f32.mxu0 %v3698
      %3901 = vmatmul.mubr.f32.gmra.mrb[0].mxu0 %v3697
      %v3902 = vpop.f32.mrb[0].mxu0
      %v3903 = vadd.f32 %v3814, %v3902
      %v3904 = vpop.f32.mrb[0].mxu0
      %3905 = vmatprep.mubr.f32.mxu0 %v3702
      %3906 = vmatmul.mubr.f32.gmra.mrb[0].mxu0 %v3701
      %v3907 = vpop.f32.mrb[0].mxu0
      %v3908 = vadd.f32 %v3814, %v3907
      %v3909 = vpop.f32.mrb[0].mxu0
      %3910 = vmatprep.mubr.f32.mxu0 %v3706
      %3911 = vmatmul.mubr.f32.gmra.mrb[0].mxu0 %v3705
      %v3912 = vpop.f32.mrb[0].mxu0
      %v3913 = vadd.f32 %v3814, %v3912
      %v3914 = vpop.f32.mrb[0].mxu0
      %3915 = vmatprep.mubr.f32.mxu0 %v3710
      %3916 = vmatmul.mubr.f32.gmra.mrb[0].mxu0 %v3709
      %v3917 = vpop.f32.mrb[0].mxu0
      %v3918 = vadd.f32 %v3814, %v3917
      %v3919 = vpop.f32.mrb[0].mxu0
      %3920 = vmatprep.mubr.f32.mxu0 %v3714
      %3921 = vmatmul.mubr.f32.gmra.mrb[0].mxu0 %v3713
      %v3922 = vpop.f32.mrb[0].mxu0
      %v3923 = vadd.f32 %v3814, %v3922
      %v3924 = vpop.f32.mrb[0].mxu0
      %3925 = vmatprep.mubr.f32.mxu0 %v3718
      %3926 = vmatmul.mubr.f32.gmra.mrb[0].mxu0 %v3717
      %v3927 = vpop.f32.mrb[0].mxu0
      %v3928 = vadd.f32 %v3814, %v3927
      %v3929 = vpop.f32.mrb[0].mxu0
      %3930 = vmatprep.mubr.f32.mxu0 %v3722
      %3931 = vmatmul.mubr.f32.gmra.mrb[0].mxu0 %v3721
      %v3932 = vpop.f32.mrb[0].mxu0
      %v3933 = vadd.f32 %v3814, %v3932
      %v3934 = vpop.f32.mrb[0].mxu0
      %3935 = vmatprep.mubr.f32.mxu0 %v3726
      %3936 = vmatmul.mubr.f32.gmra.mrb[0].mxu0 %v3725
      %v3937 = vpop.f32.mrb[0].mxu0
      %v3938 = vadd.f32 %v3814, %v3937
      %v3939 = vpop.f32.mrb[0].mxu0
      %3940 = vmatprep.mubr.f32.mxu0 %v3730
      %3941 = vmatmul.mubr.f32.gmra.mrb[0].mxu0 %v3729
      %v3942 = vpop.f32.mrb[0].mxu0
      %v3943 = vadd.f32 %v3814, %v3942
      %v3944 = vpop.f32.mrb[0].mxu0
      %3945 = vmatprep.mubr.f32.mxu0 %v3734
      %3946 = vmatmul.mubr.f32.gmra.mrb[0].mxu0 %v3733
      %v3947 = vpop.f32.mrb[0].mxu0
      %v3948 = vadd.f32 %v3814, %v3947
      %v3949 = vpop.f32.mrb[0].mxu0
      %3950 = vmatprep.mubr.f32.mxu0 %v3738
      %3951 = vmatmul.mubr.f32.gmra.mrb[0].mxu0 %v3737
      %v3952 = vpop.f32.mrb[0].mxu0
      %v3953 = vadd.f32 %v3814, %v3952
      %v3954 = vpop.f32.mrb[0].mxu0
      %3955 = vmatprep.mubr.f32.mxu0 %v3742
      %3956 = vmatmul.mubr.f32.gmra.mrb[0].mxu0 %v3741
      %v3957 = vpop.f32.mrb[0].mxu0
      %v3958 = vadd.f32 %v3814, %v3957
      %v3959 = vpop.f32.mrb[0].mxu0
      %3960 = vdwg.mxu0
      %3961 = vmatprep.subr.mxu0 0.0
      %3962 = vmatpush1.msra.mxu0 %v3777
      %3963 = vmatprep.subr.mxu0 0.0
      %3964 = vmatpush1.msra.mxu0 %v3778
      %3965 = vmatprep.subr.mxu0 0.0
      %3966 = vmatpush1.msra.mxu0 %v3779
      %3967 = vmatprep.subr.mxu0 0.0
      %3968 = vmatpush1.msra.mxu0 %v3780
      %3969 = vmatprep.subr.mxu0 0.0
      %3970 = vmatpush1.msra.mxu0 %v3781
      %3971 = vmatprep.subr.mxu0 0.0
      %3972 = vmatpush1.msra.mxu0 %v3782
      %3973 = vmatprep.subr.mxu0 0.0
      %3974 = vmatpush1.msra.mxu0 %v3783
      %3975 = vmatprep.subr.mxu0 0.0
      %3976 = vmatpush1.msra.mxu0 %v3784
      %3977 = vmatprep.subr.mxu0 0.0
      %3978 = vmatpush1.msra.mxu0 %v3785
      %3979 = vmatprep.subr.mxu0 0.0
      %3980 = vmatpush1.msra.mxu0 %v3786
      %3981 = vmatprep.subr.mxu0 0.0
      %3982 = vmatpush1.msra.mxu0 %v3787
      %3983 = vmatprep.subr.mxu0 0.0
      %3984 = vmatpush1.msra.mxu0 %v3788
      %3985 = vmatprep.subr.mxu0 0.0
      %3986 = vmatpush1.msra.mxu0 %v3789
      %3987 = vmatprep.subr.mxu0 0.0
      %3988 = vmatpush1.msra.mxu0 %v3790
      %3989 = vmatprep.subr.mxu0 0.0
      %3990 = vmatpush1.msra.mxu0 %v3791
      %3991 = vmatprep.subr.mxu0 0.0
      %3992 = vmatpush1.msra.mxu0 %v3792
      %3993 = vmatprep.subr.mxu0 0.0
      %3994 = vmatpush1.msra.mxu0 %v3793
      %3995 = vmatprep.subr.mxu0 0.0
      %3996 = vmatpush1.msra.mxu0 %v3794
      %3997 = vmatprep.subr.mxu0 0.0
      %3998 = vmatpush1.msra.mxu0 %v3795
      %3999 = vmatprep.subr.mxu0 0.0
      %4000 = vmatpush1.msra.mxu0 %v3796
      %4001 = vmatprep.subr.mxu0 0.0
      %4002 = vmatpush1.msra.mxu0 %v3797
      %4003 = vmatprep.subr.mxu0 0.0
      %4004 = vmatpush1.msra.mxu0 %v3798
      %4005 = vmatprep.subr.mxu0 0.0
      %4006 = vmatpush1.msra.mxu0 %v3799
      %4007 = vmatprep.subr.mxu0 0.0
      %4008 = vmatpush1.msra.mxu0 %v3800
      %4009 = vmatprep.subr.mxu0 0.0
      %4010 = vmatpush1.msra.mxu0 %v3801
      %4011 = vmatprep.subr.mxu0 0.0
      %4012 = vmatpush1.msra.mxu0 %v3802
      %4013 = vmatprep.subr.mxu0 0.0
      %4014 = vmatpush1.msra.mxu0 %v3803
      %4015 = vmatprep.subr.mxu0 0.0
      %4016 = vmatpush1.msra.mxu0 %v3804
      %4017 = vmatprep.subr.mxu0 0.0
      %4018 = vmatpush1.msra.mxu0 %v3805
      %4019 = vmatprep.subr.mxu0 0.0
      %4020 = vmatpush1.msra.mxu0 %v3806
      %4021 = vmatprep.subr.mxu0 0.0
      %4022 = vmatpush1.msra.mxu0 %v3807
      %4023 = vmatprep.subr.mxu0 0.0
      %4024 = vmatpush1.msra.mxu0 %v3808
      %4025 = vmatprep.mubr.f32.mxu0 %v3684
      %4026 = vmatmul.mubr.f32.gmra.mrb[0].mxu0 %v3683
      %v4027 = vpop.f32.mrb[0].mxu0
      %v4028 = vadd.f32 %v3883, %v4027
      %v4029 = vpop.f32.mrb[0].mxu0
      %4030 = vmatprep.mubr.f32.mxu0 %v3688
      %4031 = vmatmul.mubr.f32.gmra.mrb[0].mxu0 %v3687
      %v4032 = vpop.f32.mrb[0].mxu0
      %v4033 = vadd.f32 %v3888, %v4032
      %v4034 = vpop.f32.mrb[0].mxu0
      %4035 = vmatprep.mubr.f32.mxu0 %v3692
      %4036 = vmatmul.mubr.f32.gmra.mrb[0].mxu0 %v3691
      %v4037 = vpop.f32.mrb[0].mxu0
      %v4038 = vadd.f32 %v3893, %v4037
      %v4039 = vpop.f32.mrb[0].mxu0
      %4040 = vmatprep.mubr.f32.mxu0 %v3696
      %4041 = vmatmul.mubr.f32.gmra.mrb[0].mxu0 %v3695
      %v4042 = vpop.f32.mrb[0].mxu0
      %v4043 = vadd.f32 %v3898, %v4042
      %v4044 = vpop.f32.mrb[0].mxu0
      %4045 = vmatprep.mubr.f32.mxu0 %v3700
      %4046 = vmatmul.mubr.f32.gmra.mrb[0].mxu0 %v3699
      %v4047 = vpop.f32.mrb[0].mxu0
      %v4048 = vadd.f32 %v3903, %v4047
      %v4049 = vpop.f32.mrb[0].mxu0
      %4050 = vmatprep.mubr.f32.mxu0 %v3704
      %4051 = vmatmul.mubr.f32.gmra.mrb[0].mxu0 %v3703
      %v4052 = vpop.f32.mrb[0].mxu0
      %v4053 = vadd.f32 %v3908, %v4052
      %v4054 = vpop.f32.mrb[0].mxu0
      %4055 = vmatprep.mubr.f32.mxu0 %v3708
      %4056 = vmatmul.mubr.f32.gmra.mrb[0].mxu0 %v3707
      %v4057 = vpop.f32.mrb[0].mxu0
      %v4058 = vadd.f32 %v3913, %v4057
      %v4059 = vpop.f32.mrb[0].mxu0
      %4060 = vmatprep.mubr.f32.mxu0 %v3712
      %4061 = vmatmul.mubr.f32.gmra.mrb[0].mxu0 %v3711
      %v4062 = vpop.f32.mrb[0].mxu0
      %v4063 = vadd.f32 %v3918, %v4062
      %v4064 = vpop.f32.mrb[0].mxu0
      %4065 = vmatprep.mubr.f32.mxu0 %v3716
      %4066 = vmatmul.mubr.f32.gmra.mrb[0].mxu0 %v3715
      %v4067 = vpop.f32.mrb[0].mxu0
      %v4068 = vadd.f32 %v3923, %v4067
      %v4069 = vpop.f32.mrb[0].mxu0
      %4070 = vmatprep.mubr.f32.mxu0 %v3720
      %4071 = vmatmul.mubr.f32.gmra.mrb[0].mxu0 %v3719
      %v4072 = vpop.f32.mrb[0].mxu0
      %v4073 = vadd.f32 %v3928, %v4072
      %v4074 = vpop.f32.mrb[0].mxu0
      %4075 = vmatprep.mubr.f32.mxu0 %v3724
      %4076 = vmatmul.mubr.f32.gmra.mrb[0].mxu0 %v3723
      %v4077 = vpop.f32.mrb[0].mxu0
      %v4078 = vadd.f32 %v3933, %v4077
      %v4079 = vpop.f32.mrb[0].mxu0
      %4080 = vmatprep.mubr.f32.mxu0 %v3728
      %4081 = vmatmul.mubr.f32.gmra.mrb[0].mxu0 %v3727
      %v4082 = vpop.f32.mrb[0].mxu0
      %v4083 = vadd.f32 %v3938, %v4082
      %v4084 = vpop.f32.mrb[0].mxu0
      %4085 = vmatprep.mubr.f32.mxu0 %v3732
      %4086 = vmatmul.mubr.f32.gmra.mrb[0].mxu0 %v3731
      %v4087 = vpop.f32.mrb[0].mxu0
      %v4088 = vadd.f32 %v3943, %v4087
      %v4089 = vpop.f32.mrb[0].mxu0
      %4090 = vmatprep.mubr.f32.mxu0 %v3736
      %4091 = vmatmul.mubr.f32.gmra.mrb[0].mxu0 %v3735
      %v4092 = vpop.f32.mrb[0].mxu0
      %v4093 = vadd.f32 %v3948, %v4092
      %v4094 = vpop.f32.mrb[0].mxu0
      %4095 = vmatprep.mubr.f32.mxu0 %v3740
      %4096 = vmatmul.mubr.f32.gmra.mrb[0].mxu0 %v3739
      %v4097 = vpop.f32.mrb[0].mxu0
      %v4098 = vadd.f32 %v3953, %v4097
      %v4099 = vpop.f32.mrb[0].mxu0
      %4100 = vmatprep.mubr.f32.mxu0 %v3744
      %4101 = vmatmul.mubr.f32.gmra.mrb[0].mxu0 %v3743
      %v4102 = vpop.f32.mrb[0].mxu0
      %v4103 = vadd.f32 %v3958, %v4102
      %v4104 = vpop.f32.mrb[0].mxu0
      %4105 = vdwg.mxu0
      %v4106 = vadd.f32 %v4028, %v2745
      %v4107 = vadd.f32 %v4033, %v2746
      %v4108 = vadd.f32 %v4038, %v2747
      %v4109 = vadd.f32 %v4043, %v2748
      %v4110 = vadd.f32 %v4048, %v2749
      %v4111 = vadd.f32 %v4053, %v2750
      %v4112 = vadd.f32 %v4058, %v2751
      %v4113 = vadd.f32 %v4063, %v2752
      %v4114 = vadd.f32 %v4068, %v2753
      %v4115 = vadd.f32 %v4073, %v2754
      %v4116 = vadd.f32 %v4078, %v2755
      %v4117 = vadd.f32 %v4083, %v2756
      %v4118 = vadd.f32 %v4088, %v2757
      %v4119 = vadd.f32 %v4093, %v2758
      %v4120 = vadd.f32 %v4098, %v2759
      %v4121 = vadd.f32 %v4103, %v2760
      %v4122 = vld [vmem:[%s12] sm:$0x1]
      %v4123 = vld [vmem:[%s13] sm:$0x1]
      %4124 = vadd.xlane.f32.xlu0 %v4106
      %v4125 = vpop.xlane.xlu0 %4124
      %4126 = vadd.xlane.f32.xlu0 %v4107
      %v4127 = vpop.xlane.xlu0 %4126
      %4128 = vadd.xlane.f32.xlu0 %v4108
      %v4129 = vpop.xlane.xlu0 %4128
      %4130 = vadd.xlane.f32.xlu0 %v4109
      %v4131 = vpop.xlane.xlu0 %4130
      %4132 = vadd.xlane.f32.xlu0 %v4110
      %v4133 = vpop.xlane.xlu0 %4132
      %4134 = vadd.xlane.f32.xlu0 %v4111
      %v4135 = vpop.xlane.xlu0 %4134
      %4136 = vadd.xlane.f32.xlu0 %v4112
      %v4137 = vpop.xlane.xlu0 %4136
      %4138 = vadd.xlane.f32.xlu0 %v4113
      %v4139 = vpop.xlane.xlu0 %4138
      %4140 = vadd.xlane.f32.xlu0 %v4114
      %v4141 = vpop.xlane.xlu0 %4140
      %4142 = vadd.xlane.f32.xlu0 %v4115
      %v4143 = vpop.xlane.xlu0 %4142
      %4144 = vadd.xlane.f32.xlu0 %v4116
      %v4145 = vpop.xlane.xlu0 %4144
      %4146 = vadd.xlane.f32.xlu0 %v4117
      %v4147 = vpop.xlane.xlu0 %4146
      %4148 = vadd.xlane.f32.xlu0 %v4118
      %v4149 = vpop.xlane.xlu0 %4148
      %4150 = vadd.xlane.f32.xlu0 %v4119
      %v4151 = vpop.xlane.xlu0 %4150
      %4152 = vadd.xlane.f32.xlu0 %v4120
      %v4153 = vpop.xlane.xlu0 %4152
      %4154 = vadd.xlane.f32.xlu0 %v4121
      %v4155 = vpop.xlane.xlu0 %4154
      %v4156 = vmul.f32 %v4125, %v2572
      %v4157 = vmul.f32 %v4127, %v2572
      %v4158 = vmul.f32 %v4129, %v2572
      %v4159 = vmul.f32 %v4131, %v2572
      %v4160 = vmul.f32 %v4133, %v2572
      %v4161 = vmul.f32 %v4135, %v2572
      %v4162 = vmul.f32 %v4137, %v2572
      %v4163 = vmul.f32 %v4139, %v2572
      %v4164 = vmul.f32 %v4141, %v2572
      %v4165 = vmul.f32 %v4143, %v2572
      %v4166 = vmul.f32 %v4145, %v2572
      %v4167 = vmul.f32 %v4147, %v2572
      %v4168 = vmul.f32 %v4149, %v2572
      %v4169 = vmul.f32 %v4151, %v2572
      %v4170 = vmul.f32 %v4153, %v2572
      %v4171 = vmul.f32 %v4155, %v2572
      %v4172 = vsub.f32 %v4106, %v4156
      %v4173 = vsub.f32 %v4107, %v4157
      %v4174 = vsub.f32 %v4108, %v4158
      %v4175 = vsub.f32 %v4109, %v4159
      %v4176 = vsub.f32 %v4110, %v4160
      %v4177 = vsub.f32 %v4111, %v4161
      %v4178 = vsub.f32 %v4112, %v4162
      %v4179 = vsub.f32 %v4113, %v4163
      %v4180 = vsub.f32 %v4114, %v4164
      %v4181 = vsub.f32 %v4115, %v4165
      %v4182 = vsub.f32 %v4116, %v4166
      %v4183 = vsub.f32 %v4117, %v4167
      %v4184 = vsub.f32 %v4118, %v4168
      %v4185 = vsub.f32 %v4119, %v4169
      %v4186 = vsub.f32 %v4120, %v4170
      %v4187 = vsub.f32 %v4121, %v4171
      %v4188 = vmul.f32 %v4172, %v4172
      %v4189 = vmul.f32 %v4173, %v4173
      %v4190 = vmul.f32 %v4174, %v4174
      %v4191 = vmul.f32 %v4175, %v4175
      %v4192 = vmul.f32 %v4176, %v4176
      %v4193 = vmul.f32 %v4177, %v4177
      %v4194 = vmul.f32 %v4178, %v4178
      %v4195 = vmul.f32 %v4179, %v4179
      %v4196 = vmul.f32 %v4180, %v4180
      %v4197 = vmul.f32 %v4181, %v4181
      %v4198 = vmul.f32 %v4182, %v4182
      %v4199 = vmul.f32 %v4183, %v4183
      %v4200 = vmul.f32 %v4184, %v4184
      %v4201 = vmul.f32 %v4185, %v4185
      %v4202 = vmul.f32 %v4186, %v4186
      %v4203 = vmul.f32 %v4187, %v4187
      %4204 = vadd.xlane.f32.xlu0 %v4188
      %v4205 = vpop.xlane.xlu0 %4204
      %4206 = vadd.xlane.f32.xlu0 %v4189
      %v4207 = vpop.xlane.xlu0 %4206
      %4208 = vadd.xlane.f32.xlu0 %v4190
      %v4209 = vpop.xlane.xlu0 %4208
      %4210 = vadd.xlane.f32.xlu0 %v4191
      %v4211 = vpop.xlane.xlu0 %4210
      %4212 = vadd.xlane.f32.xlu0 %v4192
      %v4213 = vpop.xlane.xlu0 %4212
      %4214 = vadd.xlane.f32.xlu0 %v4193
      %v4215 = vpop.xlane.xlu0 %4214
      %4216 = vadd.xlane.f32.xlu0 %v4194
      %v4217 = vpop.xlane.xlu0 %4216
      %4218 = vadd.xlane.f32.xlu0 %v4195
      %v4219 = vpop.xlane.xlu0 %4218
      %4220 = vadd.xlane.f32.xlu0 %v4196
      %v4221 = vpop.xlane.xlu0 %4220
      %4222 = vadd.xlane.f32.xlu0 %v4197
      %v4223 = vpop.xlane.xlu0 %4222
      %4224 = vadd.xlane.f32.xlu0 %v4198
      %v4225 = vpop.xlane.xlu0 %4224
      %4226 = vadd.xlane.f32.xlu0 %v4199
      %v4227 = vpop.xlane.xlu0 %4226
      %4228 = vadd.xlane.f32.xlu0 %v4200
      %v4229 = vpop.xlane.xlu0 %4228
      %4230 = vadd.xlane.f32.xlu0 %v4201
      %v4231 = vpop.xlane.xlu0 %4230
      %4232 = vadd.xlane.f32.xlu0 %v4202
      %v4233 = vpop.xlane.xlu0 %4232
      %4234 = vadd.xlane.f32.xlu0 %v4203
      %v4235 = vpop.xlane.xlu0 %4234
      %v4236 = vmul.f32 %v4205, %v2572
      %v4237 = vmul.f32 %v4207, %v2572
      %v4238 = vmul.f32 %v4209, %v2572
      %v4239 = vmul.f32 %v4211, %v2572
      %v4240 = vmul.f32 %v4213, %v2572
      %v4241 = vmul.f32 %v4215, %v2572
      %v4242 = vmul.f32 %v4217, %v2572
      %v4243 = vmul.f32 %v4219, %v2572
      %v4244 = vmul.f32 %v4221, %v2572
      %v4245 = vmul.f32 %v4223, %v2572
      %v4246 = vmul.f32 %v4225, %v2572
      %v4247 = vmul.f32 %v4227, %v2572
      %v4248 = vmul.f32 %v4229, %v2572
      %v4249 = vmul.f32 %v4231, %v2572
      %v4250 = vmul.f32 %v4233, %v2572
      %v4251 = vmul.f32 %v4235, %v2572
      %v4252 = vadd.f32 %v4236, 1e-12
      %v4253 = vadd.f32 %v4237, 1e-12
      %v4254 = vadd.f32 %v4238, 1e-12
      %v4255 = vadd.f32 %v4239, 1e-12
      %v4256 = vadd.f32 %v4240, 1e-12
      %v4257 = vadd.f32 %v4241, 1e-12
      %v4258 = vadd.f32 %v4242, 1e-12
      %v4259 = vadd.f32 %v4243, 1e-12
      %v4260 = vadd.f32 %v4244, 1e-12
      %v4261 = vadd.f32 %v4245, 1e-12
      %v4262 = vadd.f32 %v4246, 1e-12
      %v4263 = vadd.f32 %v4247, 1e-12
      %v4264 = vadd.f32 %v4248, 1e-12
      %v4265 = vadd.f32 %v4249, 1e-12
      %v4266 = vadd.f32 %v4250, 1e-12
      %v4267 = vadd.f32 %v4251, 1e-12
      %v4268 = vrsqrt.pop %v4252
      %v4269 = vrsqrt.pop %v4253
      %v4270 = vrsqrt.pop %v4254
      %v4271 = vrsqrt.pop %v4255
      %v4272 = vrsqrt.pop %v4256
      %v4273 = vrsqrt.pop %v4257
      %v4274 = vrsqrt.pop %v4258
      %v4275 = vrsqrt.pop %v4259
      %v4276 = vrsqrt.pop %v4260
      %v4277 = vrsqrt.pop %v4261
      %v4278 = vrsqrt.pop %v4262
      %v4279 = vrsqrt.pop %v4263
      %v4280 = vrsqrt.pop %v4264
      %v4281 = vrsqrt.pop %v4265
      %v4282 = vrsqrt.pop %v4266
      %v4283 = vrsqrt.pop %v4267
      %v4284 = vmul.f32 %v4172, %v4268
      %v4285 = vmul.f32 %v4173, %v4269
      %v4286 = vmul.f32 %v4174, %v4270
      %v4287 = vmul.f32 %v4175, %v4271
      %v4288 = vmul.f32 %v4176, %v4272
      %v4289 = vmul.f32 %v4177, %v4273
      %v4290 = vmul.f32 %v4178, %v4274
      %v4291 = vmul.f32 %v4179, %v4275
      %v4292 = vmul.f32 %v4180, %v4276
      %v4293 = vmul.f32 %v4181, %v4277
      %v4294 = vmul.f32 %v4182, %v4278
      %v4295 = vmul.f32 %v4183, %v4279
      %v4296 = vmul.f32 %v4184, %v4280
      %v4297 = vmul.f32 %v4185, %v4281
      %v4298 = vmul.f32 %v4186, %v4282
      %v4299 = vmul.f32 %v4187, %v4283
      %v4301 = vlaneseq
      %v4302 = vshrl.u32 %v4301, 7
      %v4303 = vsub.s32 0, %v4302
      %v4304 = vrot.slane %v4122, %v4303
      %v4306 = vmul.f32 %v4284, %v4304
      %v4307 = vmul.f32 %v4285, %v4304
      %v4308 = vmul.f32 %v4286, %v4304
      %v4309 = vmul.f32 %v4287, %v4304
      %v4310 = vmul.f32 %v4288, %v4304
      %v4311 = vmul.f32 %v4289, %v4304
      %v4312 = vmul.f32 %v4290, %v4304
      %v4313 = vmul.f32 %v4291, %v4304
      %v4314 = vmul.f32 %v4292, %v4304
      %v4315 = vmul.f32 %v4293, %v4304
      %v4316 = vmul.f32 %v4294, %v4304
      %v4317 = vmul.f32 %v4295, %v4304
      %v4318 = vmul.f32 %v4296, %v4304
      %v4319 = vmul.f32 %v4297, %v4304
      %v4320 = vmul.f32 %v4298, %v4304
      %v4321 = vmul.f32 %v4299, %v4304
      %v4323 = vlaneseq
      %v4324 = vshrl.u32 %v4323, 7
      %v4325 = vsub.s32 0, %v4324
      %v4326 = vrot.slane %v4123, %v4325
      %v4328 = vadd.f32 %v4306, %v4326
      %v4329 = vadd.f32 %v4307, %v4326
      %v4330 = vadd.f32 %v4308, %v4326
      %v4331 = vadd.f32 %v4309, %v4326
      %v4332 = vadd.f32 %v4310, %v4326
      %v4333 = vadd.f32 %v4311, %v4326
      %v4334 = vadd.f32 %v4312, %v4326
      %v4335 = vadd.f32 %v4313, %v4326
      %v4336 = vadd.f32 %v4314, %v4326
      %v4337 = vadd.f32 %v4315, %v4326
      %v4338 = vadd.f32 %v4316, %v4326
      %v4339 = vadd.f32 %v4317, %v4326
      %v4340 = vadd.f32 %v4318, %v4326
      %v4341 = vadd.f32 %v4319, %v4326
      %v4342 = vadd.f32 %v4320, %v4326
      %v4343 = vadd.f32 %v4321, %v4326
      %4344 = vst [vmem:[%s481] sm:$0xff] %v4328
      %4345 = vst [vmem:[%s481 + $0x8] sm:$0xff] %v4329
      %4346 = vst [vmem:[%s481 + $0x10] sm:$0xff] %v4330
      %4347 = vst [vmem:[%s481 + $0x18] sm:$0xff] %v4331
      %4348 = vst [vmem:[%s481 + $0x20] sm:$0xff] %v4332
      %4349 = vst [vmem:[%s481 + $0x28] sm:$0xff] %v4333
      %4350 = vst [vmem:[%s481 + $0x30] sm:$0xff] %v4334
      %4351 = vst [vmem:[%s481 + $0x38] sm:$0xff] %v4335
      %4352 = vst [vmem:[%s481 + $0x40] sm:$0xff] %v4336
      %4353 = vst [vmem:[%s481 + $0x48] sm:$0xff] %v4337
      %4354 = vst [vmem:[%s481 + $0x50] sm:$0xff] %v4338
      %4355 = vst [vmem:[%s481 + $0x58] sm:$0xff] %v4339
      %4356 = vst [vmem:[%s481 + $0x60] sm:$0xff] %v4340
      %4357 = vst [vmem:[%s481 + $0x68] sm:$0xff] %v4341
      %4358 = vst [vmem:[%s481 + $0x70] sm:$0xff] %v4342
      %4359 = vst [vmem:[%s481 + $0x78] sm:$0xff] %v4343
      %p4360 = scmp.lt.s32.totalorder %s25, 1
      %s4361 = scalar_select %p4360, %s25, 1
      %s4362 = smul.addr %s4361, 16
      %s4363 = smul.addr %s4362, 8
      %s4364 = scalar_lea.vmem %s14, %s4363
      // Predicated region
      $region77: #{bert_encoder_forward.5} parent=75 // pred_check
        %p4365 = pneg %p347
      $region78: #{bert_encoder_forward.5} parent=75 // pred_check_branch
        %4367 = sbr.rel (%p4365) target = $region80
      $region79: #{bert_encoder_forward.5} parent=75 // pred_region
        _
      $region80: #{bert_encoder_forward.5} parent=75 // pred_fallthru
        _
    $region76: #{bert_encoder_forward.5} parent=5 // pred_fallthru
      _
    %p4368 = scmp.le.s32.totalorder 2, %s20
    // Predicated region
    $region81: #{bert_encoder_forward.5} parent=5 // pred_check
      %p4369 = pneg %p4368
    $region82: #{bert_encoder_forward.5} parent=5 // pred_check_branch
      %4371 = sbr.rel (%p4369) target = $region84
    $region83: #{bert_encoder_forward.5} parent=5 // pred_region
      %s4372 = ssub.s32 %s20, 2
      // Predicated region
      $region85: #{bert_encoder_forward.5} parent=83 // pred_check
        %p4373 = pneg %p353
      $region86: #{bert_encoder_forward.5} parent=83 // pred_check_branch
        %4375 = sbr.rel (%p4373) target = $region88
      $region87: #{bert_encoder_forward.5} parent=83 // pred_region
        %p4376 = scmp.lt.s32.totalorder %s26, 1
        %s4377 = scalar_select %p4376, %s26, 1
        %s4378 = smul.addr %s4377, 16
        %s4379 = smul.addr %s4378, 8
        %s4380 = scalar_lea.vmem %s14, %s4379
      $region88: #{bert_encoder_forward.5} parent=83 // pred_fallthru
        _
    $region84: #{bert_encoder_forward.5} parent=5 // pred_fallthru
      _
  $region6: #{bert_encoder_forward.5} parent=0 // loop_footer
    %s24 = sadd.s32 1, %s20
  $region7: #{bert_encoder_forward.5} parent=0 // loop_footer_branch
    %19 = sbr.rel target = $region3
  $region8: #{bert_encoder_forward.5} parent=0 // loop_exit
    _

</llo_original>
